<compile_context>
chip_gen: v7x
topology: tpu7x:2x2x1
jax: 0.10.0
libtpu: 0.0.40
codegen_flags: <defaults>
</compile_context>

<pallas_src>
import functools

import jax
import jax.numpy as jnp
from jax import lax
from jax.experimental import pallas as pl
from jax.experimental.pallas import tpu as pltpu


def _conv_bn_relu_stage(x_hwc, xpad_ref, w2d, shift, k, Wp):
    """k x k conv (pad 0 if k==1 else 1) + folded-BN shift + ReLU.

    x_hwc:    (H, W, Ci) bf16 value.
    xpad_ref: VMEM scratch (H+3, Wp, Ci) used for in-kernel zero padding (k==3).
    w2d:      (k*k*Ci, Co) bf16, taps stacked along K in (dy, dx, ci) order.
    shift:    (1, Co) f32 (conv bias + BN folded).
    Returns   (H, W, Co) f32.
    """
    H, W, Ci = x_hwc.shape
    Co = w2d.shape[-1]

    if k == 1:
        acc = jnp.dot(x_hwc.reshape(H * W, Ci), w2d,
                      preferred_element_type=jnp.float32)
        y = jnp.maximum(acc + shift, 0.0)
        return y.reshape(H, W, Co)

    # k == 3: zero-pad into a VMEM scratch.  Padded layout (rows = yp, cols =
    # xp): 1 top pad row, 2 bottom pad rows, 1 left pad col, Wp-W-1 right pad
    # cols; the image occupies [1:H+1, 1:W+1, :].
    xpad_ref[...] = jnp.zeros_like(xpad_ref)
    xpad_ref[1:H + 1, 1:W + 1, :] = x_hwc

    # Flatten padded rows: row index r = yp * Wp + xp (cheap: Wp % 16 == 0).
    xflat = xpad_ref[...].reshape((H + 3) * Wp, Ci)

    # Shifted-row im2col: output element i corresponds to (y, x) with
    # i = y*Wp + x (x < W valid); tap (dy, dx) reads padded row i + dy*Wp + dx.
    # Every tap is a contiguous, in-bounds row-window slice (no gather copies).
    M = H * Wp
    taps = [xflat[dy * Wp + dx: dy * Wp + dx + M, :]
            for dy in range(3) for dx in range(3)]
    patches = jnp.concatenate(taps, axis=-1)               # (M, 9*Ci) bf16

    # Single MXU matmul with K = 9*Ci, f32 accumulation.
    acc = jnp.dot(patches, w2d, preferred_element_type=jnp.float32)   # (M, Co)
    y = jnp.maximum(acc + shift, 0.0)                       # f32 epilogue
    return y.reshape(H, Wp, Co)[:, :W, :]                   # drop right-pad cols


def _double_conv_kernel(k, Wp, x_ref, w1_ref, s1_ref, w2_ref, s2_ref, o_ref,
                        xp1_ref, xp2_ref):
    """One grid step = one batch element; both conv stages fused in VMEM."""
    _, H, W, _ = x_ref.shape

    x = x_ref[0]                                            # (H, W, Cin) bf16
    y1 = _conv_bn_relu_stage(x, xp1_ref, w1_ref[...], s1_ref[...], k, Wp)
    y2 = _conv_bn_relu_stage(y1.astype(jnp.bfloat16), xp2_ref,
                             w2_ref[...], s2_ref[...], k, Wp)
    o_ref[...] = y2[None].astype(o_ref.dtype)               # (1, H, W, Cout)


def double_conv_pallas(x_nhwc, w1_2d, shift1, w2_2d, shift2, kernel_size=3):
    """Fused (conv -> BN(eval) -> ReLU) x 2 in NHWC; weights pre-folded."""
    assert kernel_size in (1, 3), "only kernel_size 1 (pad 0) or 3 (pad 1)"
    k = kernel_size
    N, H, W, Cin = x_nhwc.shape
    Cmid = w1_2d.shape[-1]
    Cout = w2_2d.shape[-1]

    # Padded width, rounded to the bf16 sublane tile (16) so in-kernel
    # flatten/split reshapes do not cross (8,128)/(16,128) tile boundaries.
    Wp = ((W + 2 + 15) // 16) * 16 if k == 3 else W

    xb = x_nhwc.astype(jnp.bfloat16)   # bf16 into the MXU / halved HBM bytes

    kernel = functools.partial(_double_conv_kernel, k, Wp)
    return pl.pallas_call(
        kernel,
        out_shape=jax.ShapeDtypeStruct((N, H, W, Cout), jnp.float32),
        grid_spec=pltpu.PrefetchScalarGridSpec(
            num_scalar_prefetch=0,
            grid=(N,),
            in_specs=[
                pl.BlockSpec((1, H, W, Cin), lambda n: (n, 0, 0, 0)),
                pl.BlockSpec((k * k * Cin, Cmid), lambda n: (0, 0)),
                pl.BlockSpec((1, Cmid), lambda n: (0, 0)),
                pl.BlockSpec((k * k * Cmid, Cout), lambda n: (0, 0)),
                pl.BlockSpec((1, Cout), lambda n: (0, 0)),
            ],
            out_specs=pl.BlockSpec((1, H, W, Cout), lambda n: (n, 0, 0, 0)),
            scratch_shapes=[
                pltpu.VMEM((H + 3, Wp, Cin), jnp.bfloat16),   # padded stage-1 in
                pltpu.VMEM((H + 3, Wp, Cmid), jnp.bfloat16),  # padded stage-2 in
            ],
        ),
        compiler_params=pltpu.CompilerParams(
            dimension_semantics=("parallel",),
            # Explicit VMEM budget (review): usage here is ~a few hundred KiB;
            # 64 MiB leaves headroom for larger images on v5e/v6e and equals
            # v7x physical VMEM.
            vmem_limit_bytes=64 * 1024 * 1024),
    )(xb, w1_2d, shift1, w2_2d, shift2)


def _fold_conv_bn(w_oihw, bias, gamma, beta, mean, var, eps=1e-5):
    """Fold conv bias + eval-mode BN into (scaled weights, shift).

    Returns w2d (k*k*Cin, Cout) bf16 and shift (1, Cout) f32 so that
      relu(conv(x, w2d) + shift) == relu(BN(conv(x, w) + b)).
    """
    cout, cin, k, _ = w_oihw.shape
    scale = gamma * lax.rsqrt(var + eps)                       # (Cout,)
    w_hwio = jnp.transpose(w_oihw, (2, 3, 1, 0)) * scale[None, None, None, :]
    w2d = w_hwio.reshape(k * k * cin, cout).astype(jnp.bfloat16)
    shift = ((bias - mean) * scale + beta).reshape(1, cout).astype(jnp.float32)
    return w2d, shift


def init_double_conv_params(key, in_channels, out_channels,
                            mid_channels=None, kernel_size=3):
    """Deterministic synthetic parameters, PyTorch shape conventions."""
    if not mid_channels:
        mid_channels = out_channels
    ks = jax.random.split(key, 8)
    p = {}
    p["w1"] = 0.1 * jax.random.normal(
        ks[0], (mid_channels, in_channels, kernel_size, kernel_size), jnp.float32)
    p["b1"] = 0.1 * jax.random.normal(ks[1], (mid_channels,), jnp.float32)
    p["gamma1"] = 1.0 + 0.1 * jax.random.normal(ks[2], (mid_channels,), jnp.float32)
    p["beta1"] = 0.1 * jax.random.normal(ks[3], (mid_channels,), jnp.float32)
    p["mean1"] = jnp.zeros((mid_channels,), jnp.float32)
    p["var1"] = jnp.ones((mid_channels,), jnp.float32)
    p["w2"] = 0.1 * jax.random.normal(
        ks[4], (out_channels, mid_channels, kernel_size, kernel_size), jnp.float32)
    p["b2"] = 0.1 * jax.random.normal(ks[5], (out_channels,), jnp.float32)
    p["gamma2"] = 1.0 + 0.1 * jax.random.normal(ks[6], (out_channels,), jnp.float32)
    p["beta2"] = 0.1 * jax.random.normal(ks[7], (out_channels,), jnp.float32)
    p["mean2"] = jnp.zeros((out_channels,), jnp.float32)
    p["var2"] = jnp.ones((out_channels,), jnp.float32)
    return p


def double_conv_forward(x_nchw, params, kernel_size=3):
    """Matches DoubleConv.forward (eval mode): NCHW in, NCHW out."""
    x = jnp.transpose(x_nchw, (0, 2, 3, 1))                    # NCHW -> NHWC
    w1, s1 = _fold_conv_bn(params["w1"], params["b1"], params["gamma1"],
                           params["beta1"], params["mean1"], params["var1"])
    w2, s2 = _fold_conv_bn(params["w2"], params["b2"], params["gamma2"],
                           params["beta2"], params["mean2"], params["var2"])
    y = double_conv_pallas(x, w1, s1, w2, s2, kernel_size)
    return jnp.transpose(y, (0, 3, 1, 2))                      # NHWC -> NCHW


# ---------------- pure-JAX reference (for correctness check) ----------------
def _ref_conv_bn_relu(x_nchw, w_oihw, b, gamma, beta, mean, var, eps=1e-5):
    k = w_oihw.shape[-1]
    pad = 0 if k == 1 else 1
    y = lax.conv_general_dilated(
        x_nchw, w_oihw, (1, 1), [(pad, pad), (pad, pad)],
        dimension_numbers=("NCHW", "OIHW", "NCHW"))
    y = y + b[None, :, None, None]
    y = (y - mean[None, :, None, None]) / jnp.sqrt(var + eps)[None, :, None, None]
    y = y * gamma[None, :, None, None] + beta[None, :, None, None]
    return jnp.maximum(y, 0.0)


def double_conv_reference(x_nchw, p):
    y = _ref_conv_bn_relu(x_nchw, p["w1"], p["b1"], p["gamma1"], p["beta1"],
                          p["mean1"], p["var1"])
    y = _ref_conv_bn_relu(y, p["w2"], p["b2"], p["gamma2"], p["beta2"],
                          p["mean2"], p["var2"])
    return y


if __name__ == "__main__":
    key = jax.random.PRNGKey(0)
    k_x, k_p = jax.random.split(key)

    N, Cin, H, W = 2, 4, 16, 16
    Cout = 8  # mid_channels defaults to out_channels
    x = jax.random.normal(k_x, (N, Cin, H, W), jnp.float32)   # NCHW like PyTorch

    params = init_double_conv_params(k_p, Cin, Cout, mid_channels=None,
                                     kernel_size=3)

    out = jax.block_until_ready(double_conv_forward(x, params))
    ref = jax.block_until_ready(double_conv_reference(x, params))

    assert out.shape == (N, Cout, H, W), out.shape
    max_err = float(jnp.max(jnp.abs(out - ref)))
    # bf16 MXU inputs with f32 accumulation -> small deviation vs f32 reference.
    assert jnp.allclose(out, ref, atol=3e-2, rtol=3e-2), max_err

    print("KERNEL_OK")
</pallas_src>

<mosaic_0001>
module attributes {stable_mosaic.version = 11 : i64} {
  func.func @_double_conv_kernel(%arg0: i32, %arg1: memref<1x16x16x4xbf16, #tpu.memory_space<vmem>>, %arg2: memref<36x8xbf16, #tpu.memory_space<vmem>>, %arg3: memref<1x8xf32, #tpu.memory_space<vmem>>, %arg4: memref<72x8xbf16, #tpu.memory_space<vmem>>, %arg5: memref<1x8xf32, #tpu.memory_space<vmem>>, %arg6: memref<1x16x16x8xf32, #tpu.memory_space<vmem>>, %arg7: memref<19x32x4xbf16, #tpu.memory_space<vmem>>, %arg8: memref<19x32x8xbf16, #tpu.memory_space<vmem>>) attributes {dimension_semantics = [#tpu.dimension_semantics<parallel>], iteration_bounds = array<i64: 2>, scalar_prefetch = 0 : i64, scratch_operands = 2 : i64, tpu.core_type = #tpu.core_type<tc>, window_params = [{transform_indices = @transform_0, window_bounds = array<i64: 1, 16, 16, 4>}, {pipeline_mode = #tpu.pipeline_mode<synchronous>, transform_indices = @transform_1, window_bounds = array<i64: 36, 8>}, {pipeline_mode = #tpu.pipeline_mode<synchronous>, transform_indices = @transform_2, window_bounds = array<i64: 1, 8>}, {pipeline_mode = #tpu.pipeline_mode<synchronous>, transform_indices = @transform_3, window_bounds = array<i64: 72, 8>}, {pipeline_mode = #tpu.pipeline_mode<synchronous>, transform_indices = @transform_4, window_bounds = array<i64: 1, 8>}, {transform_indices = @transform_5, window_bounds = array<i64: 1, 16, 16, 8>}]} {
    %c0 = arith.constant 0 : index
    %c0_0 = arith.constant 0 : index
    %c0_1 = arith.constant 0 : index
    %c0_2 = arith.constant 0 : index
    %0 = vector.load %arg1[%c0, %c0_0, %c0_1, %c0_2] : memref<1x16x16x4xbf16, #tpu.memory_space<vmem>>, vector<1x16x16x4xbf16>
    %1 = vector.shape_cast %0 : vector<1x16x16x4xbf16> to vector<16x16x4xbf16>
    %c0_3 = arith.constant 0 : index
    %c0_4 = arith.constant 0 : index
    %2 = vector.load %arg2[%c0_3, %c0_4] : memref<36x8xbf16, #tpu.memory_space<vmem>>, vector<36x8xbf16>
    %c0_5 = arith.constant 0 : index
    %c0_6 = arith.constant 0 : index
    %3 = vector.load %arg3[%c0_5, %c0_6] : memref<1x8xf32, #tpu.memory_space<vmem>>, vector<1x8xf32>
    %cst = arith.constant 0.000000e+00 : bf16
    %4 = vector.broadcast %cst : bf16 to vector<19x32x4xbf16>
    %c0_7 = arith.constant 0 : index
    %c0_8 = arith.constant 0 : index
    %c0_9 = arith.constant 0 : index
    %5 = vector.load %arg7[%c0_7, %c0_8, %c0_9] : memref<19x32x4xbf16, #tpu.memory_space<vmem>>, vector<19x32x4xbf16>
    tpu.vector_store %arg7[%c0_7, %c0_8, %c0_9], %4 {strides = array<i32>} : memref<19x32x4xbf16, #tpu.memory_space<vmem>>, vector<19x32x4xbf16>,
    %c1 = arith.constant 1 : index
    %c1_10 = arith.constant 1 : index
    %c0_11 = arith.constant 0 : index
    %6 = vector.load %arg7[%c1, %c1_10, %c0_11] : memref<19x32x4xbf16, #tpu.memory_space<vmem>>, vector<16x16x4xbf16>
    tpu.vector_store %arg7[%c1, %c1_10, %c0_11], %1 {strides = array<i32>} : memref<19x32x4xbf16, #tpu.memory_space<vmem>>, vector<16x16x4xbf16>,
    %c0_12 = arith.constant 0 : index
    %c0_13 = arith.constant 0 : index
    %c0_14 = arith.constant 0 : index
    %7 = vector.load %arg7[%c0_12, %c0_13, %c0_14] : memref<19x32x4xbf16, #tpu.memory_space<vmem>>, vector<19x32x4xbf16>
    %8 = vector.shape_cast %7 : vector<19x32x4xbf16> to vector<608x4xbf16>
    %9 = vector.extract_strided_slice %8 {offsets = [0, 0], sizes = [512, 4], strides = [1, 1]} : vector<608x4xbf16> to vector<512x4xbf16>
    %10 = vector.extract_strided_slice %8 {offsets = [1, 0], sizes = [512, 4], strides = [1, 1]} : vector<608x4xbf16> to vector<512x4xbf16>
    %11 = vector.extract_strided_slice %8 {offsets = [2, 0], sizes = [512, 4], strides = [1, 1]} : vector<608x4xbf16> to vector<512x4xbf16>
    %12 = vector.extract_strided_slice %8 {offsets = [32, 0], sizes = [512, 4], strides = [1, 1]} : vector<608x4xbf16> to vector<512x4xbf16>
    %13 = vector.extract_strided_slice %8 {offsets = [33, 0], sizes = [512, 4], strides = [1, 1]} : vector<608x4xbf16> to vector<512x4xbf16>
    %14 = vector.extract_strided_slice %8 {offsets = [34, 0], sizes = [512, 4], strides = [1, 1]} : vector<608x4xbf16> to vector<512x4xbf16>
    %15 = vector.extract_strided_slice %8 {offsets = [64, 0], sizes = [512, 4], strides = [1, 1]} : vector<608x4xbf16> to vector<512x4xbf16>
    %16 = vector.extract_strided_slice %8 {offsets = [65, 0], sizes = [512, 4], strides = [1, 1]} : vector<608x4xbf16> to vector<512x4xbf16>
    %17 = vector.extract_strided_slice %8 {offsets = [66, 0], sizes = [512, 4], strides = [1, 1]} : vector<608x4xbf16> to vector<512x4xbf16>
    %18 = tpu.concatenate %9, %10, %11, %12, %13, %14, %15, %16, %17 in 1 : vector<512x4xbf16>, vector<512x4xbf16>, vector<512x4xbf16>, vector<512x4xbf16>, vector<512x4xbf16>, vector<512x4xbf16>, vector<512x4xbf16>, vector<512x4xbf16>, vector<512x4xbf16> -> vector<512x36xbf16>
    %cst_15 = arith.constant dense<0.000000e+00> : vector<512x8xf32>
    %19 = tpu.matmul %18, %2, %cst_15 {dimension_numbers = #tpu.dot_dimension_numbers<[1], [0], [0], [1], [0, 0, 1, 1], [], []>} : vector<512x36xbf16>, vector<36x8xbf16>, vector<512x8xf32> -> vector<512x8xf32>
    %20 = vector.broadcast %3 : vector<1x8xf32> to vector<512x8xf32>
    %21 = arith.addf %19, %20 : vector<512x8xf32>
    %cst_16 = arith.constant 0.000000e+00 : f32
    %22 = vector.broadcast %cst_16 : f32 to vector<512x8xf32>
    %23 = arith.maximumf %21, %22 : vector<512x8xf32>
    %24 = vector.shape_cast %23 : vector<512x8xf32> to vector<16x32x8xf32>
    %25 = vector.extract_strided_slice %24 {offsets = [0, 0, 0], sizes = [16, 16, 8], strides = [1, 1, 1]} : vector<16x32x8xf32> to vector<16x16x8xf32>
    %26 = arith.truncf %25 : vector<16x16x8xf32> to vector<16x16x8xbf16>
    %c0_17 = arith.constant 0 : index
    %c0_18 = arith.constant 0 : index
    %27 = vector.load %arg4[%c0_17, %c0_18] : memref<72x8xbf16, #tpu.memory_space<vmem>>, vector<72x8xbf16>
    %c0_19 = arith.constant 0 : index
    %c0_20 = arith.constant 0 : index
    %28 = vector.load %arg5[%c0_19, %c0_20] : memref<1x8xf32, #tpu.memory_space<vmem>>, vector<1x8xf32>
    %cst_21 = arith.constant 0.000000e+00 : bf16
    %29 = vector.broadcast %cst_21 : bf16 to vector<19x32x8xbf16>
    %c0_22 = arith.constant 0 : index
    %c0_23 = arith.constant 0 : index
    %c0_24 = arith.constant 0 : index
    %30 = vector.load %arg8[%c0_22, %c0_23, %c0_24] : memref<19x32x8xbf16, #tpu.memory_space<vmem>>, vector<19x32x8xbf16>
    tpu.vector_store %arg8[%c0_22, %c0_23, %c0_24], %29 {strides = array<i32>} : memref<19x32x8xbf16, #tpu.memory_space<vmem>>, vector<19x32x8xbf16>,
    %c1_25 = arith.constant 1 : index
    %c1_26 = arith.constant 1 : index
    %c0_27 = arith.constant 0 : index
    %31 = vector.load %arg8[%c1_25, %c1_26, %c0_27] : memref<19x32x8xbf16, #tpu.memory_space<vmem>>, vector<16x16x8xbf16>
    tpu.vector_store %arg8[%c1_25, %c1_26, %c0_27], %26 {strides = array<i32>} : memref<19x32x8xbf16, #tpu.memory_space<vmem>>, vector<16x16x8xbf16>,
    %c0_28 = arith.constant 0 : index
    %c0_29 = arith.constant 0 : index
    %c0_30 = arith.constant 0 : index
    %32 = vector.load %arg8[%c0_28, %c0_29, %c0_30] : memref<19x32x8xbf16, #tpu.memory_space<vmem>>, vector<19x32x8xbf16>
    %33 = vector.shape_cast %32 : vector<19x32x8xbf16> to vector<608x8xbf16>
    %34 = vector.extract_strided_slice %33 {offsets = [0, 0], sizes = [512, 8], strides = [1, 1]} : vector<608x8xbf16> to vector<512x8xbf16>
    %35 = vector.extract_strided_slice %33 {offsets = [1, 0], sizes = [512, 8], strides = [1, 1]} : vector<608x8xbf16> to vector<512x8xbf16>
    %36 = vector.extract_strided_slice %33 {offsets = [2, 0], sizes = [512, 8], strides = [1, 1]} : vector<608x8xbf16> to vector<512x8xbf16>
    %37 = vector.extract_strided_slice %33 {offsets = [32, 0], sizes = [512, 8], strides = [1, 1]} : vector<608x8xbf16> to vector<512x8xbf16>
    %38 = vector.extract_strided_slice %33 {offsets = [33, 0], sizes = [512, 8], strides = [1, 1]} : vector<608x8xbf16> to vector<512x8xbf16>
    %39 = vector.extract_strided_slice %33 {offsets = [34, 0], sizes = [512, 8], strides = [1, 1]} : vector<608x8xbf16> to vector<512x8xbf16>
    %40 = vector.extract_strided_slice %33 {offsets = [64, 0], sizes = [512, 8], strides = [1, 1]} : vector<608x8xbf16> to vector<512x8xbf16>
    %41 = vector.extract_strided_slice %33 {offsets = [65, 0], sizes = [512, 8], strides = [1, 1]} : vector<608x8xbf16> to vector<512x8xbf16>
    %42 = vector.extract_strided_slice %33 {offsets = [66, 0], sizes = [512, 8], strides = [1, 1]} : vector<608x8xbf16> to vector<512x8xbf16>
    %43 = tpu.concatenate %34, %35, %36, %37, %38, %39, %40, %41, %42 in 1 : vector<512x8xbf16>, vector<512x8xbf16>, vector<512x8xbf16>, vector<512x8xbf16>, vector<512x8xbf16>, vector<512x8xbf16>, vector<512x8xbf16>, vector<512x8xbf16>, vector<512x8xbf16> -> vector<512x72xbf16>
    %cst_31 = arith.constant dense<0.000000e+00> : vector<512x8xf32>
    %44 = tpu.matmul %43, %27, %cst_31 {dimension_numbers = #tpu.dot_dimension_numbers<[1], [0], [0], [1], [0, 0, 1, 1], [], []>} : vector<512x72xbf16>, vector<72x8xbf16>, vector<512x8xf32> -> vector<512x8xf32>
    %45 = vector.broadcast %28 : vector<1x8xf32> to vector<512x8xf32>
    %46 = arith.addf %44, %45 : vector<512x8xf32>
    %cst_32 = arith.constant 0.000000e+00 : f32
    %47 = vector.broadcast %cst_32 : f32 to vector<512x8xf32>
    %48 = arith.maximumf %46, %47 : vector<512x8xf32>
    %49 = vector.shape_cast %48 : vector<512x8xf32> to vector<16x32x8xf32>
    %50 = vector.extract_strided_slice %49 {offsets = [0, 0, 0], sizes = [16, 16, 8], strides = [1, 1, 1]} : vector<16x32x8xf32> to vector<16x16x8xf32>
    %51 = vector.shape_cast %50 : vector<16x16x8xf32> to vector<1x16x16x8xf32>
    %c0_33 = arith.constant 0 : index
    %c0_34 = arith.constant 0 : index
    %c0_35 = arith.constant 0 : index
    %c0_36 = arith.constant 0 : index
    %52 = vector.load %arg6[%c0_33, %c0_34, %c0_35, %c0_36] : memref<1x16x16x8xf32, #tpu.memory_space<vmem>>, vector<1x16x16x8xf32>
    tpu.vector_store %arg6[%c0_33, %c0_34, %c0_35, %c0_36], %51 {strides = array<i32>} : memref<1x16x16x8xf32, #tpu.memory_space<vmem>>, vector<1x16x16x8xf32>,
    return
  }
  func.func @transform_0(%arg0: i32) -> (i32, i32, i32, i32) {
    %c0_i32 = arith.constant 0 : i32
    %c0_i32_0 = arith.constant 0 : i32
    %c0_i32_1 = arith.constant 0 : i32
    %c0_i32_2 = arith.constant 0 : i32
    return %arg0, %c0_i32, %c0_i32_0, %c0_i32_1 : i32, i32, i32, i32
  }
  func.func @transform_1(%arg0: i32) -> (i32, i32) {
    %c0_i32 = arith.constant 0 : i32
    %c0_i32_0 = arith.constant 0 : i32
    %c0_i32_1 = arith.constant 0 : i32
    return %c0_i32, %c0_i32_0 : i32, i32
  }
  func.func @transform_2(%arg0: i32) -> (i32, i32) {
    %c0_i32 = arith.constant 0 : i32
    %c0_i32_0 = arith.constant 0 : i32
    %c0_i32_1 = arith.constant 0 : i32
    return %c0_i32, %c0_i32_0 : i32, i32
  }
  func.func @transform_3(%arg0: i32) -> (i32, i32) {
    %c0_i32 = arith.constant 0 : i32
    %c0_i32_0 = arith.constant 0 : i32
    %c0_i32_1 = arith.constant 0 : i32
    return %c0_i32, %c0_i32_0 : i32, i32
  }
  func.func @transform_4(%arg0: i32) -> (i32, i32) {
    %c0_i32 = arith.constant 0 : i32
    %c0_i32_0 = arith.constant 0 : i32
    %c0_i32_1 = arith.constant 0 : i32
    return %c0_i32, %c0_i32_0 : i32, i32
  }
  func.func @transform_5(%arg0: i32) -> (i32, i32, i32, i32) {
    %c0_i32 = arith.constant 0 : i32
    %c0_i32_0 = arith.constant 0 : i32
    %c0_i32_1 = arith.constant 0 : i32
    %c0_i32_2 = arith.constant 0 : i32
    return %arg0, %c0_i32, %c0_i32_0, %c0_i32_1 : i32, i32, i32, i32
  }
}

</mosaic_0001>

<llo_original>
// kernel: tpu_custom_call.1
$region0: #{tpu_custom_call.1}
  #allocation0 [shape = 'u32[]', space=smem, size = 0x4, offset = 0x4, fixed_abs, tag = 'smem constant byte address 0x4 - core index']
  #allocation1 [shape = 'u32[144,128]{1,0:T(1,128)}', space=vmem, size = 0x12000, scoped, tag = 'internal scratch']
  #allocation2 [shape = 'bf16[19,32,4]{2,1,0:T(16,128)(2,1)}', space=vmem, size = 0x26000, scoped, tag = 'scratch operand']
  #allocation3 [shape = 'bf16[19,32,8]{2,1,0:T(16,128)(2,1)}', space=vmem, size = 0x26000, scoped, tag = 'scratch operand']
  %s0 = inlined_call_operand.hbm [shape: bf16[2,16,16,4], index: 0, kind: input, shape index: {}]
  %s1 = inlined_call_operand.hbm [shape: bf16[36,8], index: 1, kind: input, shape index: {}]
  %s2 = inlined_call_operand.hbm [shape: f32[1,8], index: 2, kind: input, shape index: {}]
  %s3 = inlined_call_operand.hbm [shape: bf16[72,8], index: 3, kind: input, shape index: {}]
  %s4 = inlined_call_operand.hbm [shape: f32[1,8], index: 4, kind: input, shape index: {}]
  %s5 = inlined_call_operand.hbm [shape: f32[2,16,16,8], index: 5, kind: output, shape index: {}]
  %s6 = sld [smem:[#allocation0]]
  $region73: #{tpu_custom_call.1} parent=0
    _
  %s8 = ssub.s32 1, %s6
  %s9 = scalar_select 0, %s8, %s6
  $region1: #{tpu_custom_call.1} parent=0
    #allocation4 [shape = 'u8[131072]{0}', space=vmem, size = 0x20000, scoped, tag = 'input window, operand 0']
    #allocation5 [shape = 's32[2]{0}', space=sflag, size = 0x8, scoped, tag = 'scoped memory for tpu_custom_call.1']
    #allocation6 [shape = 's32[2]{0}', space=sflag, size = 0x8, scoped, tag = 'scoped memory for tpu_custom_call.1']
    #allocation7 [shape = 'u8[10240]{0}', space=vmem, size = 0x2800, scoped, tag = 'input window, operand 1, single buffered']
    #allocation8 [shape = 's32[1]{0}', space=sflag, size = 0x4, scoped, tag = 'scoped memory for tpu_custom_call.1']
    #allocation9 [shape = 'u8[512]{0}', space=vmem, size = 0x400, scoped, tag = 'input window, operand 2, single buffered']
    #allocation10 [shape = 'u8[18432]{0}', space=vmem, size = 0x4800, scoped, tag = 'input window, operand 3, single buffered']
    #allocation11 [shape = 's32[1]{0}', space=sflag, size = 0x4, scoped, tag = 'scoped memory for tpu_custom_call.1']
    #allocation12 [shape = 'u8[512]{0}', space=vmem, size = 0x400, scoped, tag = 'input window, operand 4, single buffered']
    #allocation13 [shape = 'u8[262144]{0}', space=vmem, size = 0x40000, scoped, tag = 'output window, operand 0']
    %10 = vsyncpa [#allocation5], 0
    %s11 = scalar_lea.sflag [#allocation5], 1
    %12 = vsyncpa %s11, 0
    %13 = vsyncpa [#allocation8], 0
    %14 = vsyncpa [#allocation11], 0
    %15 = vsyncpa [#allocation6], 0
    %s16 = scalar_lea.sflag [#allocation6], 1
    %17 = vsyncpa %s16, 0
    loop: start=0, step=1, limit=4
    $region2: #{tpu_custom_call.1} parent=1 // loop_pre_header
      _
    $region3: #{tpu_custom_call.1} parent=1 // loop_header
      %s19 = sphi 0, %s23
      %p20 = scmp.ge.s32.totalorder %s19, 4
      %s29 = sphi 0, %s31
      %s32 = sphi 0, %s29
      %s33 = sphi 0, %s32
      %s49 = sphi 0, %s33
      %s53 = sphi 0, %s53
      %s55 = sphi 0, %s53
      %s56 = sphi 0, %s55
      %s70 = sphi 0, %s56
      %s74 = sphi 0, %s74
      %s76 = sphi 0, %s74
      %s77 = sphi 0, %s76
      %s91 = sphi 0, %s77
      %s95 = sphi 0, %s95
      %s97 = sphi 0, %s95
      %s98 = sphi 0, %s97
      %s112 = sphi 0, %s98
      %s116 = sphi 0, %s116
      %s118 = sphi 0, %s116
      %s119 = sphi 0, %s118
      %s133 = sphi 0, %s119
      %s139 = sphi 0, %s141
      %s142 = sphi 0, %s139
      %s143 = sphi 0, %s142
      %s159 = sphi 0, %s143
    $region4: #{tpu_custom_call.1} parent=1 // loop_header_branch
      %22 = sbr.rel (%p20) target = $region8
    $region5: #{tpu_custom_call.1} parent=1 // loop_body
      %s24 = ssub.s32 %s19, 1
      %s25 = ssub.s32 %s19, 2
      %s26 = sadd.s32 %s19, 1
      %s27 = ssub.s32 %s19, %s26
      %p28 = scmp.eq.s32.totalorder %s27, 0
      %s30 = sadd.s32 %s29, 1
      %s31 = scalar_select %p28, %s29, %s30
      %p34 = pneg %p28
      %p35 = scmp.eq.s32.totalorder %s19, 1
      %p36 = por %p34, %p35
      %p37 = scmp.ne.s32.totalorder %s29, %s32
      %p38 = scmp.eq.s32.totalorder %s19, 0
      %p39 = por %p37, %p38
      %p40 = scmp.ne.s32.totalorder %s29, %s32
      %p41 = scmp.eq.s32.totalorder %s24, 1
      %p42 = por %p40, %p41
      %p43 = scmp.ne.s32.totalorder %s32, %s33
      %p44 = scmp.eq.s32.totalorder %s24, 0
      %p45 = por %p43, %p44
      %p46 = scmp.ne.s32.totalorder %s32, %s33
      %p47 = scmp.eq.s32.totalorder %s25, 1
      %p48 = por %p46, %p47
      %p50 = scmp.ne.s32.totalorder %s33, %s49
      %p51 = scmp.eq.s32.totalorder %s25, 0
      %p52 = por %p50, %p51
      %s54 = sadd.s32 %s53, 1
      %p57 = scmp.eq.s32.totalorder %s19, 1
      %p58 = scmp.ne.s32.totalorder %s53, %s55
      %p59 = scmp.eq.s32.totalorder %s19, 0
      %p60 = por %p58, %p59
      %p61 = scmp.ne.s32.totalorder %s53, %s55
      %p62 = scmp.eq.s32.totalorder %s24, 1
      %p63 = por %p61, %p62
      %p64 = scmp.ne.s32.totalorder %s55, %s56
      %p65 = scmp.eq.s32.totalorder %s24, 0
      %p66 = por %p64, %p65
      %p67 = scmp.ne.s32.totalorder %s55, %s56
      %p68 = scmp.eq.s32.totalorder %s25, 1
      %p69 = por %p67, %p68
      %p71 = scmp.ne.s32.totalorder %s56, %s70
      %p72 = scmp.eq.s32.totalorder %s25, 0
      %p73 = por %p71, %p72
      %s75 = sadd.s32 %s74, 1
      %p78 = scmp.eq.s32.totalorder %s19, 1
      %p79 = scmp.ne.s32.totalorder %s74, %s76
      %p80 = scmp.eq.s32.totalorder %s19, 0
      %p81 = por %p79, %p80
      %p82 = scmp.ne.s32.totalorder %s74, %s76
      %p83 = scmp.eq.s32.totalorder %s24, 1
      %p84 = por %p82, %p83
      %p85 = scmp.ne.s32.totalorder %s76, %s77
      %p86 = scmp.eq.s32.totalorder %s24, 0
      %p87 = por %p85, %p86
      %p88 = scmp.ne.s32.totalorder %s76, %s77
      %p89 = scmp.eq.s32.totalorder %s25, 1
      %p90 = por %p88, %p89
      %p92 = scmp.ne.s32.totalorder %s77, %s91
      %p93 = scmp.eq.s32.totalorder %s25, 0
      %p94 = por %p92, %p93
      %s96 = sadd.s32 %s95, 1
      %p99 = scmp.eq.s32.totalorder %s19, 1
      %p100 = scmp.ne.s32.totalorder %s95, %s97
      %p101 = scmp.eq.s32.totalorder %s19, 0
      %p102 = por %p100, %p101
      %p103 = scmp.ne.s32.totalorder %s95, %s97
      %p104 = scmp.eq.s32.totalorder %s24, 1
      %p105 = por %p103, %p104
      %p106 = scmp.ne.s32.totalorder %s97, %s98
      %p107 = scmp.eq.s32.totalorder %s24, 0
      %p108 = por %p106, %p107
      %p109 = scmp.ne.s32.totalorder %s97, %s98
      %p110 = scmp.eq.s32.totalorder %s25, 1
      %p111 = por %p109, %p110
      %p113 = scmp.ne.s32.totalorder %s98, %s112
      %p114 = scmp.eq.s32.totalorder %s25, 0
      %p115 = por %p113, %p114
      %s117 = sadd.s32 %s116, 1
      %p120 = scmp.eq.s32.totalorder %s19, 1
      %p121 = scmp.ne.s32.totalorder %s116, %s118
      %p122 = scmp.eq.s32.totalorder %s19, 0
      %p123 = por %p121, %p122
      %p124 = scmp.ne.s32.totalorder %s116, %s118
      %p125 = scmp.eq.s32.totalorder %s24, 1
      %p126 = por %p124, %p125
      %p127 = scmp.ne.s32.totalorder %s118, %s119
      %p128 = scmp.eq.s32.totalorder %s24, 0
      %p129 = por %p127, %p128
      %p130 = scmp.ne.s32.totalorder %s118, %s119
      %p131 = scmp.eq.s32.totalorder %s25, 1
      %p132 = por %p130, %p131
      %p134 = scmp.ne.s32.totalorder %s119, %s133
      %p135 = scmp.eq.s32.totalorder %s25, 0
      %p136 = por %p134, %p135
      %s137 = ssub.s32 %s19, %s26
      %p138 = scmp.eq.s32.totalorder %s137, 0
      %s140 = sadd.s32 %s139, 1
      %s141 = scalar_select %p138, %s139, %s140
      %p144 = pneg %p138
      %p145 = scmp.eq.s32.totalorder %s19, 1
      %p146 = por %p144, %p145
      %p147 = scmp.ne.s32.totalorder %s139, %s142
      %p148 = scmp.eq.s32.totalorder %s19, 0
      %p149 = por %p147, %p148
      %p150 = scmp.ne.s32.totalorder %s139, %s142
      %p151 = scmp.eq.s32.totalorder %s24, 1
      %p152 = por %p150, %p151
      %p153 = scmp.ne.s32.totalorder %s142, %s143
      %p154 = scmp.eq.s32.totalorder %s24, 0
      %p155 = por %p153, %p154
      %p156 = scmp.ne.s32.totalorder %s142, %s143
      %p157 = scmp.eq.s32.totalorder %s25, 1
      %p158 = por %p156, %p157
      %p160 = scmp.ne.s32.totalorder %s143, %s159
      %p161 = scmp.eq.s32.totalorder %s25, 0
      %p162 = por %p160, %p161
      %p163 = scmp.le.s32.totalorder 1, %s19
      %p164 = scmp.lt.s32.totalorder %s19, 3
      %p165 = pnand %p163, %p164
      %p166 = pneg %p165
      // Predicated region
      $region9: #{tpu_custom_call.1} parent=5 // pred_check
        _
      $region10: #{tpu_custom_call.1} parent=5 // pred_check_branch
        %168 = sbr.rel (%p165) target = $region12
      $region11: #{tpu_custom_call.1} parent=5 // pred_region
        %s169 = ssub.s32 %s19, 1
        // Predicated region
        $region13: #{tpu_custom_call.1} parent=11 // pred_check
          %p170 = pneg %p66
        $region14: #{tpu_custom_call.1} parent=11 // pred_check_branch
          %172 = sbr.rel (%p170) target = $region16
        $region15: #{tpu_custom_call.1} parent=11 // pred_region
          %s174 = ssub.s32 320, 320
          %175 = vsyncadd [#allocation8], %s174
          %s176 = sshll.u32 [#allocation7], 4
          %s177 = int_to_ptr.vmem [resolvable:$true] %s176
          %182 = dma.hbm_to_vmem [thread:$0]  %s1, 320, %s177, [#allocation8], 64, 64, 4
        $region16: #{tpu_custom_call.1} parent=11 // pred_fallthru
          _
        // Predicated region
        $region17: #{tpu_custom_call.1} parent=11 // pred_check
          %p183 = pneg %p87
        $region18: #{tpu_custom_call.1} parent=11 // pred_check_branch
          %185 = sbr.rel (%p183) target = $region20
        $region19: #{tpu_custom_call.1} parent=11 // pred_region
          %s187 = ssub.s32 16, 16
          %188 = vsyncadd [#allocation8], %s187
          %s190 = sshll.u32 [#allocation9], 4
          %s191 = int_to_ptr.vmem [resolvable:$true] %s190
          %193 = dma.hbm_to_vmem [thread:$0]  %s2, 16, %s191, [#allocation8]
        $region20: #{tpu_custom_call.1} parent=11 // pred_fallthru
          _
        // Predicated region
        $region21: #{tpu_custom_call.1} parent=11 // pred_check
          %p194 = pneg %p108
        $region22: #{tpu_custom_call.1} parent=11 // pred_check_branch
          %196 = sbr.rel (%p194) target = $region24
        $region23: #{tpu_custom_call.1} parent=11 // pred_region
          %s198 = ssub.s32 576, 576
          %199 = vsyncadd [#allocation11], %s198
          %s200 = sshll.u32 [#allocation10], 4
          %s201 = int_to_ptr.vmem [resolvable:$true] %s200
          %206 = dma.hbm_to_vmem [thread:$0]  %s3, 576, %s201, [#allocation11], 64, 64, 4
        $region24: #{tpu_custom_call.1} parent=11 // pred_fallthru
          _
        // Predicated region
        $region25: #{tpu_custom_call.1} parent=11 // pred_check
          %p207 = pneg %p129
        $region26: #{tpu_custom_call.1} parent=11 // pred_check_branch
          %209 = sbr.rel (%p207) target = $region28
        $region27: #{tpu_custom_call.1} parent=11 // pred_region
          %s211 = ssub.s32 16, 16
          %212 = vsyncadd [#allocation11], %s211
          %s214 = sshll.u32 [#allocation12], 4
          %s215 = int_to_ptr.vmem [resolvable:$true] %s214
          %217 = dma.hbm_to_vmem [thread:$0]  %s4, 16, %s215, [#allocation11]
        $region28: #{tpu_custom_call.1} parent=11 // pred_fallthru
          _
      $region12: #{tpu_custom_call.1} parent=5 // pred_fallthru
        _
      %p218 = scmp.lt.s32.totalorder %s19, 2
      // Predicated region
      $region29: #{tpu_custom_call.1} parent=5 // pred_check
        %p219 = pneg %p218
      $region30: #{tpu_custom_call.1} parent=5 // pred_check_branch
        %221 = sbr.rel (%p219) target = $region32
      $region31: #{tpu_custom_call.1} parent=5 // pred_region
        // Predicated region
        $region33: #{tpu_custom_call.1} parent=31 // pred_check
          %p222 = pneg %p39
        $region34: #{tpu_custom_call.1} parent=31 // pred_check_branch
          %224 = sbr.rel (%p222) target = $region36
        $region35: #{tpu_custom_call.1} parent=31 // pred_region
          %s225 = sand.u32 %s29, 1
          %s226 = scalar_lea.sflag [#allocation5], %s225
          %s227 = sand.u32 %s29, 1
          %s228 = smul.addr %s227, 128
          %s229 = scalar_lea.vmem [#allocation4], %s228
          %s231 = ssub.s32 2048, 2048
          %232 = vsyncadd %s226, %s231
          %s233 = smul.addr %s19, 32
          %s234 = smul.addr %s233, 64
          %s235 = scalar_lea.hbm %s0, %s234
          %s236 = sshll.u32 %s229, 4
          %s237 = int_to_ptr.vmem [resolvable:$true] %s236
          %242 = dma.hbm_to_vmem [thread:$0]  %s235, 2048, %s237, %s226, 64, 64, 4
        $region36: #{tpu_custom_call.1} parent=31 // pred_fallthru
          _
      $region32: #{tpu_custom_call.1} parent=5 // pred_fallthru
        _
      %p243 = scmp.le.s32.totalorder 1, %s19
      %p244 = scmp.lt.s32.totalorder %s19, 3
      %p245 = pnand %p243, %p244
      %p246 = pneg %p245
      // Predicated region
      $region37: #{tpu_custom_call.1} parent=5 // pred_check
        _
      $region38: #{tpu_custom_call.1} parent=5 // pred_check_branch
        %248 = sbr.rel (%p245) target = $region40
      $region39: #{tpu_custom_call.1} parent=5 // pred_region
        %s249 = ssub.s32 %s19, 1
        %s250 = sand.u32 %s32, 1
        %s251 = scalar_lea.sflag [#allocation5], %s250
        %s252 = sand.u32 %s32, 1
        %s253 = smul.addr %s252, 128
        %s254 = scalar_lea.vmem [#allocation4], %s253
        // Predicated region
        $region41: #{tpu_custom_call.1} parent=39 // pred_check
          %p255 = pneg %p45
        $region42: #{tpu_custom_call.1} parent=39 // pred_check_branch
          %257 = sbr.rel (%p255) target = $region44
        $region43: #{tpu_custom_call.1} parent=39 // pred_region
          %258 = dma.done %s251, 2048
        $region44: #{tpu_custom_call.1} parent=39 // pred_fallthru
          _
        // Predicated region
        $region45: #{tpu_custom_call.1} parent=39 // pred_check
          %p259 = pneg %p66
        $region46: #{tpu_custom_call.1} parent=39 // pred_check_branch
          %261 = sbr.rel (%p259) target = $region48
        $region47: #{tpu_custom_call.1} parent=39 // pred_region
          %262 = dma.done [#allocation8], 320
        $region48: #{tpu_custom_call.1} parent=39 // pred_fallthru
          _
        // Predicated region
        $region49: #{tpu_custom_call.1} parent=39 // pred_check
          %p263 = pneg %p87
        $region50: #{tpu_custom_call.1} parent=39 // pred_check_branch
          %265 = sbr.rel (%p263) target = $region52
        $region51: #{tpu_custom_call.1} parent=39 // pred_region
          %266 = dma.done [#allocation8], 16
        $region52: #{tpu_custom_call.1} parent=39 // pred_fallthru
          _
        // Predicated region
        $region53: #{tpu_custom_call.1} parent=39 // pred_check
          %p267 = pneg %p108
        $region54: #{tpu_custom_call.1} parent=39 // pred_check_branch
          %269 = sbr.rel (%p267) target = $region56
        $region55: #{tpu_custom_call.1} parent=39 // pred_region
          %270 = dma.done [#allocation11], 576
        $region56: #{tpu_custom_call.1} parent=39 // pred_fallthru
          _
        // Predicated region
        $region57: #{tpu_custom_call.1} parent=39 // pred_check
          %p271 = pneg %p129
        $region58: #{tpu_custom_call.1} parent=39 // pred_check_branch
          %273 = sbr.rel (%p271) target = $region60
        $region59: #{tpu_custom_call.1} parent=39 // pred_region
          %274 = dma.done [#allocation11], 16
        $region60: #{tpu_custom_call.1} parent=39 // pred_fallthru
          _
        %s275 = sand.u32 %s32, 1
        %s276 = scalar_lea.sflag [#allocation5], %s275
        %s277 = sand.u32 %s32, 1
        %s278 = smul.addr %s277, 128
        %s279 = scalar_lea.vmem [#allocation4], %s278
        %p280 = pneg %p45
        %p281 = pneg %p42
        %p282 = pneg %p66
        %p283 = pneg %p63
        %p284 = pneg %p87
        %p285 = pneg %p84
        %p286 = pneg %p108
        %p287 = pneg %p105
        %p288 = pneg %p129
        %p289 = pneg %p126
        %p290 = pneg %p155
        %p291 = pneg %p152
        %s292 = sand.u32 %s142, 1
        %s293 = scalar_lea.sflag [#allocation6], %s292
        %s294 = sand.u32 %s142, 1
        %s295 = smul.addr %s294, 256
        %s296 = scalar_lea.vmem [#allocation13], %s295
        %v298 = vld [vmem:[%s254] sm:$0xf]
        %v299 = vld [vmem:[%s254 + $0x4] sm:$0xf]
        %v300 = vld [vmem:[%s254 + $0x8] sm:$0xf]
        %v301 = vld [vmem:[%s254 + $0xc] sm:$0xf]
        %v302 = vld [vmem:[%s254 + $0x10] sm:$0xf]
        %v303 = vld [vmem:[%s254 + $0x14] sm:$0xf]
        %v304 = vld [vmem:[%s254 + $0x18] sm:$0xf]
        %v305 = vld [vmem:[%s254 + $0x1c] sm:$0xf]
        %v306 = vld [vmem:[%s254 + $0x20] sm:$0xf]
        %v307 = vld [vmem:[%s254 + $0x24] sm:$0xf]
        %v308 = vld [vmem:[%s254 + $0x28] sm:$0xf]
        %v309 = vld [vmem:[%s254 + $0x2c] sm:$0xf]
        %v310 = vld [vmem:[%s254 + $0x30] sm:$0xf]
        %v311 = vld [vmem:[%s254 + $0x34] sm:$0xf]
        %v312 = vld [vmem:[%s254 + $0x38] sm:$0xf]
        %v313 = vld [vmem:[%s254 + $0x3c] sm:$0xf]
        %v314 = vld [vmem:[%s254 + $0x40] sm:$0xf]
        %v315 = vld [vmem:[%s254 + $0x44] sm:$0xf]
        %v316 = vld [vmem:[%s254 + $0x48] sm:$0xf]
        %v317 = vld [vmem:[%s254 + $0x4c] sm:$0xf]
        %v318 = vld [vmem:[%s254 + $0x50] sm:$0xf]
        %v319 = vld [vmem:[%s254 + $0x54] sm:$0xf]
        %v320 = vld [vmem:[%s254 + $0x58] sm:$0xf]
        %v321 = vld [vmem:[%s254 + $0x5c] sm:$0xf]
        %v322 = vld [vmem:[%s254 + $0x60] sm:$0xf]
        %v323 = vld [vmem:[%s254 + $0x64] sm:$0xf]
        %v324 = vld [vmem:[%s254 + $0x68] sm:$0xf]
        %v325 = vld [vmem:[%s254 + $0x6c] sm:$0xf]
        %v326 = vld [vmem:[%s254 + $0x70] sm:$0xf]
        %v327 = vld [vmem:[%s254 + $0x74] sm:$0xf]
        %v328 = vld [vmem:[%s254 + $0x78] sm:$0xf]
        %v329 = vld [vmem:[%s254 + $0x7c] sm:$0xf]
        %v330 = vld [vmem:[#allocation7] sm:$0xf]
        %v331 = vld [vmem:[#allocation7 + $0x4] sm:$0xf]
        %v332 = vld [vmem:[#allocation7 + $0x8] sm:$0xf]
        %v333 = vld [vmem:[#allocation7 + $0xc] sm:$0xf]
        %v334 = vld [vmem:[#allocation7 + $0x10] sm:$0x3]
        %v335 = vld [vmem:[#allocation9] sm:$0x1]
        %vm336 = vcmask 31744
        %337 = vst.msk [vmem:[#allocation2] sm:$0xff] %vm336, 0
        %338 = vst.msk [vmem:[#allocation2 + $0x8] sm:$0xff] %vm336, 0
        %339 = vst.msk [vmem:[#allocation2 + $0x10] sm:$0xff] %vm336, 0
        %340 = vst.msk [vmem:[#allocation2 + $0x18] sm:$0xff] %vm336, 0
        %341 = vst.msk [vmem:[#allocation2 + $0x20] sm:$0xff] %vm336, 0
        %342 = vst.msk [vmem:[#allocation2 + $0x28] sm:$0xff] %vm336, 0
        %343 = vst.msk [vmem:[#allocation2 + $0x30] sm:$0xff] %vm336, 0
        %344 = vst.msk [vmem:[#allocation2 + $0x38] sm:$0xff] %vm336, 0
        %345 = vst.msk [vmem:[#allocation2 + $0x40] sm:$0xff] %vm336, 0
        %346 = vst.msk [vmem:[#allocation2 + $0x48] sm:$0xff] %vm336, 0
        %347 = vst.msk [vmem:[#allocation2 + $0x50] sm:$0xff] %vm336, 0
        %348 = vst.msk [vmem:[#allocation2 + $0x58] sm:$0xff] %vm336, 0
        %349 = vst.msk [vmem:[#allocation2 + $0x60] sm:$0xff] %vm336, 0
        %350 = vst.msk [vmem:[#allocation2 + $0x68] sm:$0xff] %vm336, 0
        %351 = vst.msk [vmem:[#allocation2 + $0x70] sm:$0xff] %vm336, 0
        %352 = vst.msk [vmem:[#allocation2 + $0x78] sm:$0xff] %vm336, 0
        %353 = vst.msk [vmem:[#allocation2 + $0x80] sm:$0xff] %vm336, 0
        %354 = vst.msk [vmem:[#allocation2 + $0x88] sm:$0xff] %vm336, 0
        %355 = vst.msk [vmem:[#allocation2 + $0x90] sm:$0xff] %vm336, 0
        %356 = vst.msk [vmem:[#allocation2 + $0x98] sm:$0xff] %vm336, 0
        %357 = vst.msk [vmem:[#allocation2 + $0xa0] sm:$0xff] %vm336, 0
        %358 = vst.msk [vmem:[#allocation2 + $0xa8] sm:$0xff] %vm336, 0
        %359 = vst.msk [vmem:[#allocation2 + $0xb0] sm:$0xff] %vm336, 0
        %360 = vst.msk [vmem:[#allocation2 + $0xb8] sm:$0xff] %vm336, 0
        %361 = vst.msk [vmem:[#allocation2 + $0xc0] sm:$0xff] %vm336, 0
        %362 = vst.msk [vmem:[#allocation2 + $0xc8] sm:$0xff] %vm336, 0
        %363 = vst.msk [vmem:[#allocation2 + $0xd0] sm:$0xff] %vm336, 0
        %364 = vst.msk [vmem:[#allocation2 + $0xd8] sm:$0xff] %vm336, 0
        %365 = vst.msk [vmem:[#allocation2 + $0xe0] sm:$0xff] %vm336, 0
        %366 = vst.msk [vmem:[#allocation2 + $0xe8] sm:$0xff] %vm336, 0
        %367 = vst.msk [vmem:[#allocation2 + $0xf0] sm:$0xff] %vm336, 0
        %368 = vst.msk [vmem:[#allocation2 + $0xf8] sm:$0xff] %vm336, 0
        %369 = vst.msk [vmem:[#allocation2 + $0x100] sm:$0xff] %vm336, 0
        %370 = vst.msk [vmem:[#allocation2 + $0x108] sm:$0xff] %vm336, 0
        %371 = vst.msk [vmem:[#allocation2 + $0x110] sm:$0xff] %vm336, 0
        %372 = vst.msk [vmem:[#allocation2 + $0x118] sm:$0xff] %vm336, 0
        %373 = vst.msk [vmem:[#allocation2 + $0x120] sm:$0xff] %vm336, 0
        %374 = vst.msk [vmem:[#allocation2 + $0x128] sm:$0xff] %vm336, 0
        %v407 = vunpack.c.l.b16 %v298
        %v408 = vunpack.c.l.b16 %v299
        %v409 = vunpack.c.l.b16 %v300
        %v410 = vunpack.c.l.b16 %v301
        %v411 = vunpack.c.l.b16 %v302
        %v412 = vunpack.c.l.b16 %v303
        %v413 = vunpack.c.l.b16 %v304
        %v414 = vunpack.c.l.b16 %v305
        %v415 = vunpack.c.l.b16 %v306
        %v416 = vunpack.c.l.b16 %v307
        %v417 = vunpack.c.l.b16 %v308
        %v418 = vunpack.c.l.b16 %v309
        %v419 = vunpack.c.l.b16 %v310
        %v420 = vunpack.c.l.b16 %v311
        %v421 = vunpack.c.l.b16 %v312
        %v422 = vunpack.c.l.b16 %v313
        %v423 = vunpack.c.l.b16 %v314
        %v424 = vunpack.c.l.b16 %v315
        %v425 = vunpack.c.l.b16 %v316
        %v426 = vunpack.c.l.b16 %v317
        %v427 = vunpack.c.l.b16 %v318
        %v428 = vunpack.c.l.b16 %v319
        %v429 = vunpack.c.l.b16 %v320
        %v430 = vunpack.c.l.b16 %v321
        %v431 = vunpack.c.l.b16 %v322
        %v432 = vunpack.c.l.b16 %v323
        %v433 = vunpack.c.l.b16 %v324
        %v434 = vunpack.c.l.b16 %v325
        %v435 = vunpack.c.l.b16 %v326
        %v436 = vunpack.c.l.b16 %v327
        %v437 = vunpack.c.l.b16 %v328
        %v438 = vunpack.c.l.b16 %v329
        %v439 = vpack.c.b16 %v408, %v407
        %v440 = vpack.c.b16 %v410, %v409
        %v441 = vpack.c.b16 %v412, %v411
        %v442 = vpack.c.b16 %v414, %v413
        %v443 = vpack.c.b16 %v416, %v415
        %v444 = vpack.c.b16 %v418, %v417
        %v445 = vpack.c.b16 %v420, %v419
        %v446 = vpack.c.b16 %v422, %v421
        %v447 = vpack.c.b16 %v424, %v423
        %v448 = vpack.c.b16 %v426, %v425
        %v449 = vpack.c.b16 %v428, %v427
        %v450 = vpack.c.b16 %v430, %v429
        %v451 = vpack.c.b16 %v432, %v431
        %v452 = vpack.c.b16 %v434, %v433
        %v453 = vpack.c.b16 %v436, %v435
        %v454 = vpack.c.b16 %v438, %v437
        %v456 = vshrl.u32 %v439, 16
        %v458 = vrot.slane %v456, 7
        %v459 = vshll.u32 %v439, 16
        %v461 = vor.u32 %v458, %v459
        %v463 = vshrl.u32 %v440, 16
        %v465 = vrot.slane %v463, 7
        %v466 = vshll.u32 %v440, 16
        %v468 = vor.u32 %v465, %v466
        %v470 = vshrl.u32 %v441, 16
        %v472 = vrot.slane %v470, 7
        %v473 = vshll.u32 %v441, 16
        %v475 = vor.u32 %v472, %v473
        %v477 = vshrl.u32 %v442, 16
        %v479 = vrot.slane %v477, 7
        %v480 = vshll.u32 %v442, 16
        %v482 = vor.u32 %v479, %v480
        %v484 = vshrl.u32 %v443, 16
        %v486 = vrot.slane %v484, 7
        %v487 = vshll.u32 %v443, 16
        %v489 = vor.u32 %v486, %v487
        %v491 = vshrl.u32 %v444, 16
        %v493 = vrot.slane %v491, 7
        %v494 = vshll.u32 %v444, 16
        %v496 = vor.u32 %v493, %v494
        %v498 = vshrl.u32 %v445, 16
        %v500 = vrot.slane %v498, 7
        %v501 = vshll.u32 %v445, 16
        %v503 = vor.u32 %v500, %v501
        %v505 = vshrl.u32 %v446, 16
        %v507 = vrot.slane %v505, 7
        %v508 = vshll.u32 %v446, 16
        %v510 = vor.u32 %v507, %v508
        %v512 = vshrl.u32 %v447, 16
        %v514 = vrot.slane %v512, 7
        %v515 = vshll.u32 %v447, 16
        %v517 = vor.u32 %v514, %v515
        %v519 = vshrl.u32 %v448, 16
        %v521 = vrot.slane %v519, 7
        %v522 = vshll.u32 %v448, 16
        %v524 = vor.u32 %v521, %v522
        %v526 = vshrl.u32 %v449, 16
        %v528 = vrot.slane %v526, 7
        %v529 = vshll.u32 %v449, 16
        %v531 = vor.u32 %v528, %v529
        %v533 = vshrl.u32 %v450, 16
        %v535 = vrot.slane %v533, 7
        %v536 = vshll.u32 %v450, 16
        %v538 = vor.u32 %v535, %v536
        %v540 = vshrl.u32 %v451, 16
        %v542 = vrot.slane %v540, 7
        %v543 = vshll.u32 %v451, 16
        %v545 = vor.u32 %v542, %v543
        %v547 = vshrl.u32 %v452, 16
        %v549 = vrot.slane %v547, 7
        %v550 = vshll.u32 %v452, 16
        %v552 = vor.u32 %v549, %v550
        %v554 = vshrl.u32 %v453, 16
        %v556 = vrot.slane %v554, 7
        %v557 = vshll.u32 %v453, 16
        %v559 = vor.u32 %v556, %v557
        %v561 = vshrl.u32 %v454, 16
        %v563 = vrot.slane %v561, 7
        %v564 = vshll.u32 %v454, 16
        %v566 = vor.u32 %v563, %v564
        %s599 = scalar_lea.vmem [#allocation2], 16
        %vm600 = vcmask 31744
        %vm601 = vsmask.f32 7938
        %vm602 = vmand %vm600, %vm601
        %v603 = vld [vmem:[%s599] sm:$0xff]
        %v604 = vsel %vm602, %v461, %v603
        %605 = vst [vmem:[%s599] sm:$0xff] %v604
        %vm606 = vcmask 24576
        %vm607 = vsmask.f32 256
        %vm608 = vmand %vm606, %vm607
        %v609 = vld [vmem:[%s599 + $0x8] sm:$0x1]
        %v610 = vsel %vm608, %v458, %v609
        %611 = vst [vmem:[%s599 + $0x8] sm:$0x1] %v610
        %v612 = vld [vmem:[%s599 + $0x10] sm:$0xff]
        %v613 = vsel %vm602, %v468, %v612
        %614 = vst [vmem:[%s599 + $0x10] sm:$0xff] %v613
        %v615 = vld [vmem:[%s599 + $0x18] sm:$0x1]
        %v616 = vsel %vm608, %v465, %v615
        %617 = vst [vmem:[%s599 + $0x18] sm:$0x1] %v616
        %v618 = vld [vmem:[%s599 + $0x20] sm:$0xff]
        %v619 = vsel %vm602, %v475, %v618
        %620 = vst [vmem:[%s599 + $0x20] sm:$0xff] %v619
        %v621 = vld [vmem:[%s599 + $0x28] sm:$0x1]
        %v622 = vsel %vm608, %v472, %v621
        %623 = vst [vmem:[%s599 + $0x28] sm:$0x1] %v622
        %v624 = vld [vmem:[%s599 + $0x30] sm:$0xff]
        %v625 = vsel %vm602, %v482, %v624
        %626 = vst [vmem:[%s599 + $0x30] sm:$0xff] %v625
        %v627 = vld [vmem:[%s599 + $0x38] sm:$0x1]
        %v628 = vsel %vm608, %v479, %v627
        %629 = vst [vmem:[%s599 + $0x38] sm:$0x1] %v628
        %v630 = vld [vmem:[%s599 + $0x40] sm:$0xff]
        %v631 = vsel %vm602, %v489, %v630
        %632 = vst [vmem:[%s599 + $0x40] sm:$0xff] %v631
        %v633 = vld [vmem:[%s599 + $0x48] sm:$0x1]
        %v634 = vsel %vm608, %v486, %v633
        %635 = vst [vmem:[%s599 + $0x48] sm:$0x1] %v634
        %v636 = vld [vmem:[%s599 + $0x50] sm:$0xff]
        %v637 = vsel %vm602, %v496, %v636
        %638 = vst [vmem:[%s599 + $0x50] sm:$0xff] %v637
        %v639 = vld [vmem:[%s599 + $0x58] sm:$0x1]
        %v640 = vsel %vm608, %v493, %v639
        %641 = vst [vmem:[%s599 + $0x58] sm:$0x1] %v640
        %v642 = vld [vmem:[%s599 + $0x60] sm:$0xff]
        %v643 = vsel %vm602, %v503, %v642
        %644 = vst [vmem:[%s599 + $0x60] sm:$0xff] %v643
        %v645 = vld [vmem:[%s599 + $0x68] sm:$0x1]
        %v646 = vsel %vm608, %v500, %v645
        %647 = vst [vmem:[%s599 + $0x68] sm:$0x1] %v646
        %v648 = vld [vmem:[%s599 + $0x70] sm:$0xff]
        %v649 = vsel %vm602, %v510, %v648
        %650 = vst [vmem:[%s599 + $0x70] sm:$0xff] %v649
        %v651 = vld [vmem:[%s599 + $0x78] sm:$0x1]
        %v652 = vsel %vm608, %v507, %v651
        %653 = vst [vmem:[%s599 + $0x78] sm:$0x1] %v652
        %v654 = vld [vmem:[%s599 + $0x80] sm:$0xff]
        %v655 = vsel %vm602, %v517, %v654
        %656 = vst [vmem:[%s599 + $0x80] sm:$0xff] %v655
        %v657 = vld [vmem:[%s599 + $0x88] sm:$0x1]
        %v658 = vsel %vm608, %v514, %v657
        %659 = vst [vmem:[%s599 + $0x88] sm:$0x1] %v658
        %v660 = vld [vmem:[%s599 + $0x90] sm:$0xff]
        %v661 = vsel %vm602, %v524, %v660
        %662 = vst [vmem:[%s599 + $0x90] sm:$0xff] %v661
        %v663 = vld [vmem:[%s599 + $0x98] sm:$0x1]
        %v664 = vsel %vm608, %v521, %v663
        %665 = vst [vmem:[%s599 + $0x98] sm:$0x1] %v664
        %v666 = vld [vmem:[%s599 + $0xa0] sm:$0xff]
        %v667 = vsel %vm602, %v531, %v666
        %668 = vst [vmem:[%s599 + $0xa0] sm:$0xff] %v667
        %v669 = vld [vmem:[%s599 + $0xa8] sm:$0x1]
        %v670 = vsel %vm608, %v528, %v669
        %671 = vst [vmem:[%s599 + $0xa8] sm:$0x1] %v670
        %v672 = vld [vmem:[%s599 + $0xb0] sm:$0xff]
        %v673 = vsel %vm602, %v538, %v672
        %674 = vst [vmem:[%s599 + $0xb0] sm:$0xff] %v673
        %v675 = vld [vmem:[%s599 + $0xb8] sm:$0x1]
        %v676 = vsel %vm608, %v535, %v675
        %677 = vst [vmem:[%s599 + $0xb8] sm:$0x1] %v676
        %v678 = vld [vmem:[%s599 + $0xc0] sm:$0xff]
        %v679 = vsel %vm602, %v545, %v678
        %680 = vst [vmem:[%s599 + $0xc0] sm:$0xff] %v679
        %v681 = vld [vmem:[%s599 + $0xc8] sm:$0x1]
        %v682 = vsel %vm608, %v542, %v681
        %683 = vst [vmem:[%s599 + $0xc8] sm:$0x1] %v682
        %v684 = vld [vmem:[%s599 + $0xd0] sm:$0xff]
        %v685 = vsel %vm602, %v552, %v684
        %686 = vst [vmem:[%s599 + $0xd0] sm:$0xff] %v685
        %v687 = vld [vmem:[%s599 + $0xd8] sm:$0x1]
        %v688 = vsel %vm608, %v549, %v687
        %689 = vst [vmem:[%s599 + $0xd8] sm:$0x1] %v688
        %v690 = vld [vmem:[%s599 + $0xe0] sm:$0xff]
        %v691 = vsel %vm602, %v559, %v690
        %692 = vst [vmem:[%s599 + $0xe0] sm:$0xff] %v691
        %v693 = vld [vmem:[%s599 + $0xe8] sm:$0x1]
        %v694 = vsel %vm608, %v556, %v693
        %695 = vst [vmem:[%s599 + $0xe8] sm:$0x1] %v694
        %v696 = vld [vmem:[%s599 + $0xf0] sm:$0xff]
        %v697 = vsel %vm602, %v566, %v696
        %698 = vst [vmem:[%s599 + $0xf0] sm:$0xff] %v697
        %v699 = vld [vmem:[%s599 + $0xf8] sm:$0x1]
        %v700 = vsel %vm608, %v563, %v699
        %701 = vst [vmem:[%s599 + $0xf8] sm:$0x1] %v700
        %v702 = vld [vmem:[#allocation2] sm:$0xff]
        %v703 = vld [vmem:[#allocation2 + $0x8] sm:$0xff]
        %v704 = vld [vmem:[#allocation2 + $0x10] sm:$0xff]
        %v705 = vld [vmem:[#allocation2 + $0x18] sm:$0xff]
        %v706 = vld [vmem:[#allocation2 + $0x20] sm:$0xff]
        %v707 = vld [vmem:[#allocation2 + $0x28] sm:$0xff]
        %v708 = vld [vmem:[#allocation2 + $0x30] sm:$0xff]
        %v709 = vld [vmem:[#allocation2 + $0x38] sm:$0xff]
        %v710 = vld [vmem:[#allocation2 + $0x40] sm:$0xff]
        %v711 = vld [vmem:[#allocation2 + $0x48] sm:$0xff]
        %v712 = vld [vmem:[#allocation2 + $0x50] sm:$0xff]
        %v713 = vld [vmem:[#allocation2 + $0x58] sm:$0xff]
        %v714 = vld [vmem:[#allocation2 + $0x60] sm:$0xff]
        %v715 = vld [vmem:[#allocation2 + $0x68] sm:$0xff]
        %v716 = vld [vmem:[#allocation2 + $0x70] sm:$0xff]
        %v717 = vld [vmem:[#allocation2 + $0x78] sm:$0xff]
        %v718 = vld [vmem:[#allocation2 + $0x80] sm:$0xff]
        %v719 = vld [vmem:[#allocation2 + $0x88] sm:$0xff]
        %v720 = vld [vmem:[#allocation2 + $0x90] sm:$0xff]
        %v721 = vld [vmem:[#allocation2 + $0x98] sm:$0xff]
        %v722 = vld [vmem:[#allocation2 + $0xa0] sm:$0xff]
        %v723 = vld [vmem:[#allocation2 + $0xa8] sm:$0xff]
        %v724 = vld [vmem:[#allocation2 + $0xb0] sm:$0xff]
        %v725 = vld [vmem:[#allocation2 + $0xb8] sm:$0xff]
        %v726 = vld [vmem:[#allocation2 + $0xc0] sm:$0xff]
        %v727 = vld [vmem:[#allocation2 + $0xc8] sm:$0xff]
        %v728 = vld [vmem:[#allocation2 + $0xd0] sm:$0xff]
        %v729 = vld [vmem:[#allocation2 + $0xd8] sm:$0xff]
        %v730 = vld [vmem:[#allocation2 + $0xe0] sm:$0xff]
        %v731 = vld [vmem:[#allocation2 + $0xe8] sm:$0xff]
        %v732 = vld [vmem:[#allocation2 + $0xf0] sm:$0xff]
        %v733 = vld [vmem:[#allocation2 + $0xf8] sm:$0xff]
        %v734 = vld [vmem:[#allocation2 + $0x100] sm:$0xff]
        %v735 = vld [vmem:[#allocation2 + $0x108] sm:$0xff]
        %v736 = vld [vmem:[#allocation2 + $0x110] sm:$0xff]
        %v737 = vld [vmem:[#allocation2 + $0x118] sm:$0xff]
        %v738 = vld [vmem:[#allocation2 + $0x120] sm:$0xff]
        %vm739 = vsmask.f32 7424
        %v741 = vshrl.u32 %v702, 16
        %v743 = vshll.u32 %v702, 16
        %v745 = vrot.slane %v743, 1
        %v746 = vor.u32 %v741, %v745
        %v748 = vshll.u32 %v703, 16
        %v750 = vrot.slane %v748, 1
        %v751 = vsel %vm739, %v746, %v750
        %v752 = vshrl.u32 %v703, 16
        %v754 = vor.u32 %v752, %v750
        %v756 = vshll.u32 %v704, 16
        %v758 = vrot.slane %v756, 1
        %v759 = vsel %vm739, %v754, %v758
        %v760 = vshrl.u32 %v704, 16
        %v762 = vor.u32 %v760, %v758
        %v764 = vshll.u32 %v705, 16
        %v766 = vrot.slane %v764, 1
        %v767 = vsel %vm739, %v762, %v766
        %v768 = vshrl.u32 %v705, 16
        %v770 = vor.u32 %v768, %v766
        %v772 = vshll.u32 %v706, 16
        %v774 = vrot.slane %v772, 1
        %v775 = vsel %vm739, %v770, %v774
        %v776 = vshrl.u32 %v706, 16
        %v778 = vor.u32 %v776, %v774
        %v780 = vshll.u32 %v707, 16
        %v782 = vrot.slane %v780, 1
        %v783 = vsel %vm739, %v778, %v782
        %v784 = vshrl.u32 %v707, 16
        %v786 = vor.u32 %v784, %v782
        %v788 = vshll.u32 %v708, 16
        %v790 = vrot.slane %v788, 1
        %v791 = vsel %vm739, %v786, %v790
        %v792 = vshrl.u32 %v708, 16
        %v794 = vor.u32 %v792, %v790
        %v796 = vshll.u32 %v709, 16
        %v798 = vrot.slane %v796, 1
        %v799 = vsel %vm739, %v794, %v798
        %v800 = vshrl.u32 %v709, 16
        %v802 = vor.u32 %v800, %v798
        %v804 = vshll.u32 %v710, 16
        %v806 = vrot.slane %v804, 1
        %v807 = vsel %vm739, %v802, %v806
        %v808 = vshrl.u32 %v710, 16
        %v810 = vor.u32 %v808, %v806
        %v812 = vshll.u32 %v711, 16
        %v814 = vrot.slane %v812, 1
        %v815 = vsel %vm739, %v810, %v814
        %v816 = vshrl.u32 %v711, 16
        %v818 = vor.u32 %v816, %v814
        %v820 = vshll.u32 %v712, 16
        %v822 = vrot.slane %v820, 1
        %v823 = vsel %vm739, %v818, %v822
        %v824 = vshrl.u32 %v712, 16
        %v826 = vor.u32 %v824, %v822
        %v828 = vshll.u32 %v713, 16
        %v830 = vrot.slane %v828, 1
        %v831 = vsel %vm739, %v826, %v830
        %v832 = vshrl.u32 %v713, 16
        %v834 = vor.u32 %v832, %v830
        %v836 = vshll.u32 %v714, 16
        %v838 = vrot.slane %v836, 1
        %v839 = vsel %vm739, %v834, %v838
        %v840 = vshrl.u32 %v714, 16
        %v842 = vor.u32 %v840, %v838
        %v844 = vshll.u32 %v715, 16
        %v846 = vrot.slane %v844, 1
        %v847 = vsel %vm739, %v842, %v846
        %v848 = vshrl.u32 %v715, 16
        %v850 = vor.u32 %v848, %v846
        %v852 = vshll.u32 %v716, 16
        %v854 = vrot.slane %v852, 1
        %v855 = vsel %vm739, %v850, %v854
        %v856 = vshrl.u32 %v716, 16
        %v858 = vor.u32 %v856, %v854
        %v860 = vshll.u32 %v717, 16
        %v862 = vrot.slane %v860, 1
        %v863 = vsel %vm739, %v858, %v862
        %v864 = vshrl.u32 %v717, 16
        %v866 = vor.u32 %v864, %v862
        %v868 = vshll.u32 %v718, 16
        %v870 = vrot.slane %v868, 1
        %v871 = vsel %vm739, %v866, %v870
        %v872 = vshrl.u32 %v718, 16
        %v874 = vor.u32 %v872, %v870
        %v876 = vshll.u32 %v719, 16
        %v878 = vrot.slane %v876, 1
        %v879 = vsel %vm739, %v874, %v878
        %v880 = vshrl.u32 %v719, 16
        %v882 = vor.u32 %v880, %v878
        %v884 = vshll.u32 %v720, 16
        %v886 = vrot.slane %v884, 1
        %v887 = vsel %vm739, %v882, %v886
        %v888 = vshrl.u32 %v720, 16
        %v890 = vor.u32 %v888, %v886
        %v892 = vshll.u32 %v721, 16
        %v894 = vrot.slane %v892, 1
        %v895 = vsel %vm739, %v890, %v894
        %v896 = vshrl.u32 %v721, 16
        %v898 = vor.u32 %v896, %v894
        %v900 = vshll.u32 %v722, 16
        %v902 = vrot.slane %v900, 1
        %v903 = vsel %vm739, %v898, %v902
        %v904 = vshrl.u32 %v722, 16
        %v906 = vor.u32 %v904, %v902
        %v908 = vshll.u32 %v723, 16
        %v910 = vrot.slane %v908, 1
        %v911 = vsel %vm739, %v906, %v910
        %v912 = vshrl.u32 %v723, 16
        %v914 = vor.u32 %v912, %v910
        %v916 = vshll.u32 %v724, 16
        %v918 = vrot.slane %v916, 1
        %v919 = vsel %vm739, %v914, %v918
        %v920 = vshrl.u32 %v724, 16
        %v922 = vor.u32 %v920, %v918
        %v924 = vshll.u32 %v725, 16
        %v926 = vrot.slane %v924, 1
        %v927 = vsel %vm739, %v922, %v926
        %v928 = vshrl.u32 %v725, 16
        %v930 = vor.u32 %v928, %v926
        %v932 = vshll.u32 %v726, 16
        %v934 = vrot.slane %v932, 1
        %v935 = vsel %vm739, %v930, %v934
        %v936 = vshrl.u32 %v726, 16
        %v938 = vor.u32 %v936, %v934
        %v940 = vshll.u32 %v727, 16
        %v942 = vrot.slane %v940, 1
        %v943 = vsel %vm739, %v938, %v942
        %v944 = vshrl.u32 %v727, 16
        %v946 = vor.u32 %v944, %v942
        %v948 = vshll.u32 %v728, 16
        %v950 = vrot.slane %v948, 1
        %v951 = vsel %vm739, %v946, %v950
        %v952 = vshrl.u32 %v728, 16
        %v954 = vor.u32 %v952, %v950
        %v956 = vshll.u32 %v729, 16
        %v958 = vrot.slane %v956, 1
        %v959 = vsel %vm739, %v954, %v958
        %v960 = vshrl.u32 %v729, 16
        %v962 = vor.u32 %v960, %v958
        %v964 = vshll.u32 %v730, 16
        %v966 = vrot.slane %v964, 1
        %v967 = vsel %vm739, %v962, %v966
        %v968 = vshrl.u32 %v730, 16
        %v970 = vor.u32 %v968, %v966
        %v972 = vshll.u32 %v731, 16
        %v974 = vrot.slane %v972, 1
        %v975 = vsel %vm739, %v970, %v974
        %v976 = vshrl.u32 %v731, 16
        %v978 = vor.u32 %v976, %v974
        %v980 = vshll.u32 %v732, 16
        %v982 = vrot.slane %v980, 1
        %v983 = vsel %vm739, %v978, %v982
        %v984 = vshrl.u32 %v732, 16
        %v986 = vor.u32 %v984, %v982
        %v988 = vshll.u32 %v733, 16
        %v990 = vrot.slane %v988, 1
        %v991 = vsel %vm739, %v986, %v990
        %v992 = vshrl.u32 %v733, 16
        %v994 = vor.u32 %v992, %v990
        %v996 = vshll.u32 %v734, 16
        %v998 = vrot.slane %v996, 1
        %v999 = vsel %vm739, %v994, %v998
        %1000 = vrot.lane.b32.xlu0 %v751, 4
        %v1001 = vpop.permute.xlu0 %1000
        %1002 = vrot.lane.b32.xlu0 %v759, 4
        %v1003 = vpop.permute.xlu0 %1002
        %1004 = vrot.lane.b32.xlu0 %v767, 4
        %v1005 = vpop.permute.xlu0 %1004
        %1006 = vrot.lane.b32.xlu0 %v775, 4
        %v1007 = vpop.permute.xlu0 %1006
        %1008 = vrot.lane.b32.xlu0 %v783, 4
        %v1009 = vpop.permute.xlu0 %1008
        %1010 = vrot.lane.b32.xlu0 %v791, 4
        %v1011 = vpop.permute.xlu0 %1010
        %1012 = vrot.lane.b32.xlu0 %v799, 4
        %v1013 = vpop.permute.xlu0 %1012
        %1014 = vrot.lane.b32.xlu0 %v807, 4
        %v1015 = vpop.permute.xlu0 %1014
        %1016 = vrot.lane.b32.xlu0 %v815, 4
        %v1017 = vpop.permute.xlu0 %1016
        %1018 = vrot.lane.b32.xlu0 %v823, 4
        %v1019 = vpop.permute.xlu0 %1018
        %1020 = vrot.lane.b32.xlu0 %v831, 4
        %v1021 = vpop.permute.xlu0 %1020
        %1022 = vrot.lane.b32.xlu0 %v839, 4
        %v1023 = vpop.permute.xlu0 %1022
        %1024 = vrot.lane.b32.xlu0 %v847, 4
        %v1025 = vpop.permute.xlu0 %1024
        %1026 = vrot.lane.b32.xlu0 %v855, 4
        %v1027 = vpop.permute.xlu0 %1026
        %1028 = vrot.lane.b32.xlu0 %v863, 4
        %v1029 = vpop.permute.xlu0 %1028
        %1030 = vrot.lane.b32.xlu0 %v871, 4
        %v1031 = vpop.permute.xlu0 %1030
        %1032 = vrot.lane.b32.xlu0 %v879, 4
        %v1033 = vpop.permute.xlu0 %1032
        %1034 = vrot.lane.b32.xlu0 %v887, 4
        %v1035 = vpop.permute.xlu0 %1034
        %1036 = vrot.lane.b32.xlu0 %v895, 4
        %v1037 = vpop.permute.xlu0 %1036
        %1038 = vrot.lane.b32.xlu0 %v903, 4
        %v1039 = vpop.permute.xlu0 %1038
        %1040 = vrot.lane.b32.xlu0 %v911, 4
        %v1041 = vpop.permute.xlu0 %1040
        %1042 = vrot.lane.b32.xlu0 %v919, 4
        %v1043 = vpop.permute.xlu0 %1042
        %1044 = vrot.lane.b32.xlu0 %v927, 4
        %v1045 = vpop.permute.xlu0 %1044
        %1046 = vrot.lane.b32.xlu0 %v935, 4
        %v1047 = vpop.permute.xlu0 %1046
        %1048 = vrot.lane.b32.xlu0 %v943, 4
        %v1049 = vpop.permute.xlu0 %1048
        %1050 = vrot.lane.b32.xlu0 %v951, 4
        %v1051 = vpop.permute.xlu0 %1050
        %1052 = vrot.lane.b32.xlu0 %v959, 4
        %v1053 = vpop.permute.xlu0 %1052
        %1054 = vrot.lane.b32.xlu0 %v967, 4
        %v1055 = vpop.permute.xlu0 %1054
        %1056 = vrot.lane.b32.xlu0 %v975, 4
        %v1057 = vpop.permute.xlu0 %1056
        %1058 = vrot.lane.b32.xlu0 %v983, 4
        %v1059 = vpop.permute.xlu0 %1058
        %1060 = vrot.lane.b32.xlu0 %v991, 4
        %v1061 = vpop.permute.xlu0 %1060
        %1062 = vrot.lane.b32.xlu0 %v999, 4
        %v1063 = vpop.permute.xlu0 %1062
        %vm1097 = vcmask 1046528
        %v1098 = vrot.slane %v702, 1
        %v1099 = vrot.slane %v703, 1
        %v1100 = vsel %vm1097, %v1098, %v1099
        %v1101 = vrot.slane %v704, 1
        %v1102 = vsel %vm1097, %v1099, %v1101
        %v1103 = vrot.slane %v705, 1
        %v1104 = vsel %vm1097, %v1101, %v1103
        %v1105 = vrot.slane %v706, 1
        %v1106 = vsel %vm1097, %v1103, %v1105
        %v1107 = vrot.slane %v707, 1
        %v1108 = vsel %vm1097, %v1105, %v1107
        %v1109 = vrot.slane %v708, 1
        %v1110 = vsel %vm1097, %v1107, %v1109
        %v1111 = vrot.slane %v709, 1
        %v1112 = vsel %vm1097, %v1109, %v1111
        %v1113 = vrot.slane %v710, 1
        %v1114 = vsel %vm1097, %v1111, %v1113
        %v1115 = vrot.slane %v711, 1
        %v1116 = vsel %vm1097, %v1113, %v1115
        %v1117 = vrot.slane %v712, 1
        %v1118 = vsel %vm1097, %v1115, %v1117
        %v1119 = vrot.slane %v713, 1
        %v1120 = vsel %vm1097, %v1117, %v1119
        %v1121 = vrot.slane %v714, 1
        %v1122 = vsel %vm1097, %v1119, %v1121
        %v1123 = vrot.slane %v715, 1
        %v1124 = vsel %vm1097, %v1121, %v1123
        %v1125 = vrot.slane %v716, 1
        %v1126 = vsel %vm1097, %v1123, %v1125
        %v1127 = vrot.slane %v717, 1
        %v1128 = vsel %vm1097, %v1125, %v1127
        %v1129 = vrot.slane %v718, 1
        %v1130 = vsel %vm1097, %v1127, %v1129
        %v1131 = vrot.slane %v719, 1
        %v1132 = vsel %vm1097, %v1129, %v1131
        %v1133 = vrot.slane %v720, 1
        %v1134 = vsel %vm1097, %v1131, %v1133
        %v1135 = vrot.slane %v721, 1
        %v1136 = vsel %vm1097, %v1133, %v1135
        %v1137 = vrot.slane %v722, 1
        %v1138 = vsel %vm1097, %v1135, %v1137
        %v1139 = vrot.slane %v723, 1
        %v1140 = vsel %vm1097, %v1137, %v1139
        %v1141 = vrot.slane %v724, 1
        %v1142 = vsel %vm1097, %v1139, %v1141
        %v1143 = vrot.slane %v725, 1
        %v1144 = vsel %vm1097, %v1141, %v1143
        %v1145 = vrot.slane %v726, 1
        %v1146 = vsel %vm1097, %v1143, %v1145
        %v1147 = vrot.slane %v727, 1
        %v1148 = vsel %vm1097, %v1145, %v1147
        %v1149 = vrot.slane %v728, 1
        %v1150 = vsel %vm1097, %v1147, %v1149
        %v1151 = vrot.slane %v729, 1
        %v1152 = vsel %vm1097, %v1149, %v1151
        %v1153 = vrot.slane %v730, 1
        %v1154 = vsel %vm1097, %v1151, %v1153
        %v1155 = vrot.slane %v731, 1
        %v1156 = vsel %vm1097, %v1153, %v1155
        %v1157 = vrot.slane %v732, 1
        %v1158 = vsel %vm1097, %v1155, %v1157
        %v1159 = vrot.slane %v733, 1
        %v1160 = vsel %vm1097, %v1157, %v1159
        %v1161 = vrot.slane %v734, 1
        %v1162 = vsel %vm1097, %v1159, %v1161
        %1163 = vrot.lane.b32.xlu0 %v1100, 8
        %v1164 = vpop.permute.xlu0 %1163
        %1165 = vrot.lane.b32.xlu0 %v1102, 8
        %v1166 = vpop.permute.xlu0 %1165
        %1167 = vrot.lane.b32.xlu0 %v1104, 8
        %v1168 = vpop.permute.xlu0 %1167
        %1169 = vrot.lane.b32.xlu0 %v1106, 8
        %v1170 = vpop.permute.xlu0 %1169
        %1171 = vrot.lane.b32.xlu0 %v1108, 8
        %v1172 = vpop.permute.xlu0 %1171
        %1173 = vrot.lane.b32.xlu0 %v1110, 8
        %v1174 = vpop.permute.xlu0 %1173
        %1175 = vrot.lane.b32.xlu0 %v1112, 8
        %v1176 = vpop.permute.xlu0 %1175
        %1177 = vrot.lane.b32.xlu0 %v1114, 8
        %v1178 = vpop.permute.xlu0 %1177
        %1179 = vrot.lane.b32.xlu0 %v1116, 8
        %v1180 = vpop.permute.xlu0 %1179
        %1181 = vrot.lane.b32.xlu0 %v1118, 8
        %v1182 = vpop.permute.xlu0 %1181
        %1183 = vrot.lane.b32.xlu0 %v1120, 8
        %v1184 = vpop.permute.xlu0 %1183
        %1185 = vrot.lane.b32.xlu0 %v1122, 8
        %v1186 = vpop.permute.xlu0 %1185
        %1187 = vrot.lane.b32.xlu0 %v1124, 8
        %v1188 = vpop.permute.xlu0 %1187
        %1189 = vrot.lane.b32.xlu0 %v1126, 8
        %v1190 = vpop.permute.xlu0 %1189
        %1191 = vrot.lane.b32.xlu0 %v1128, 8
        %v1192 = vpop.permute.xlu0 %1191
        %1193 = vrot.lane.b32.xlu0 %v1130, 8
        %v1194 = vpop.permute.xlu0 %1193
        %1195 = vrot.lane.b32.xlu0 %v1132, 8
        %v1196 = vpop.permute.xlu0 %1195
        %1197 = vrot.lane.b32.xlu0 %v1134, 8
        %v1198 = vpop.permute.xlu0 %1197
        %1199 = vrot.lane.b32.xlu0 %v1136, 8
        %v1200 = vpop.permute.xlu0 %1199
        %1201 = vrot.lane.b32.xlu0 %v1138, 8
        %v1202 = vpop.permute.xlu0 %1201
        %1203 = vrot.lane.b32.xlu0 %v1140, 8
        %v1204 = vpop.permute.xlu0 %1203
        %1205 = vrot.lane.b32.xlu0 %v1142, 8
        %v1206 = vpop.permute.xlu0 %1205
        %1207 = vrot.lane.b32.xlu0 %v1144, 8
        %v1208 = vpop.permute.xlu0 %1207
        %1209 = vrot.lane.b32.xlu0 %v1146, 8
        %v1210 = vpop.permute.xlu0 %1209
        %1211 = vrot.lane.b32.xlu0 %v1148, 8
        %v1212 = vpop.permute.xlu0 %1211
        %1213 = vrot.lane.b32.xlu0 %v1150, 8
        %v1214 = vpop.permute.xlu0 %1213
        %1215 = vrot.lane.b32.xlu0 %v1152, 8
        %v1216 = vpop.permute.xlu0 %1215
        %1217 = vrot.lane.b32.xlu0 %v1154, 8
        %v1218 = vpop.permute.xlu0 %1217
        %1219 = vrot.lane.b32.xlu0 %v1156, 8
        %v1220 = vpop.permute.xlu0 %1219
        %1221 = vrot.lane.b32.xlu0 %v1158, 8
        %v1222 = vpop.permute.xlu0 %1221
        %1223 = vrot.lane.b32.xlu0 %v1160, 8
        %v1224 = vpop.permute.xlu0 %1223
        %1225 = vrot.lane.b32.xlu0 %v1162, 8
        %v1226 = vpop.permute.xlu0 %1225
        %1228 = vrot.lane.b32.xlu0 %v704, 12
        %v1229 = vpop.permute.xlu0 %1228
        %1230 = vrot.lane.b32.xlu0 %v705, 12
        %v1231 = vpop.permute.xlu0 %1230
        %1232 = vrot.lane.b32.xlu0 %v706, 12
        %v1233 = vpop.permute.xlu0 %1232
        %1234 = vrot.lane.b32.xlu0 %v707, 12
        %v1235 = vpop.permute.xlu0 %1234
        %1236 = vrot.lane.b32.xlu0 %v708, 12
        %v1237 = vpop.permute.xlu0 %1236
        %1238 = vrot.lane.b32.xlu0 %v709, 12
        %v1239 = vpop.permute.xlu0 %1238
        %1240 = vrot.lane.b32.xlu0 %v710, 12
        %v1241 = vpop.permute.xlu0 %1240
        %1242 = vrot.lane.b32.xlu0 %v711, 12
        %v1243 = vpop.permute.xlu0 %1242
        %1244 = vrot.lane.b32.xlu0 %v712, 12
        %v1245 = vpop.permute.xlu0 %1244
        %1246 = vrot.lane.b32.xlu0 %v713, 12
        %v1247 = vpop.permute.xlu0 %1246
        %1248 = vrot.lane.b32.xlu0 %v714, 12
        %v1249 = vpop.permute.xlu0 %1248
        %1250 = vrot.lane.b32.xlu0 %v715, 12
        %v1251 = vpop.permute.xlu0 %1250
        %1252 = vrot.lane.b32.xlu0 %v716, 12
        %v1253 = vpop.permute.xlu0 %1252
        %1254 = vrot.lane.b32.xlu0 %v717, 12
        %v1255 = vpop.permute.xlu0 %1254
        %1256 = vrot.lane.b32.xlu0 %v718, 12
        %v1257 = vpop.permute.xlu0 %1256
        %1258 = vrot.lane.b32.xlu0 %v719, 12
        %v1259 = vpop.permute.xlu0 %1258
        %1260 = vrot.lane.b32.xlu0 %v720, 12
        %v1261 = vpop.permute.xlu0 %1260
        %1262 = vrot.lane.b32.xlu0 %v721, 12
        %v1263 = vpop.permute.xlu0 %1262
        %1264 = vrot.lane.b32.xlu0 %v722, 12
        %v1265 = vpop.permute.xlu0 %1264
        %1266 = vrot.lane.b32.xlu0 %v723, 12
        %v1267 = vpop.permute.xlu0 %1266
        %1268 = vrot.lane.b32.xlu0 %v724, 12
        %v1269 = vpop.permute.xlu0 %1268
        %1270 = vrot.lane.b32.xlu0 %v725, 12
        %v1271 = vpop.permute.xlu0 %1270
        %1272 = vrot.lane.b32.xlu0 %v726, 12
        %v1273 = vpop.permute.xlu0 %1272
        %1274 = vrot.lane.b32.xlu0 %v727, 12
        %v1275 = vpop.permute.xlu0 %1274
        %1276 = vrot.lane.b32.xlu0 %v728, 12
        %v1277 = vpop.permute.xlu0 %1276
        %1278 = vrot.lane.b32.xlu0 %v729, 12
        %v1279 = vpop.permute.xlu0 %1278
        %1280 = vrot.lane.b32.xlu0 %v730, 12
        %v1281 = vpop.permute.xlu0 %1280
        %1282 = vrot.lane.b32.xlu0 %v731, 12
        %v1283 = vpop.permute.xlu0 %1282
        %1284 = vrot.lane.b32.xlu0 %v732, 12
        %v1285 = vpop.permute.xlu0 %1284
        %1286 = vrot.lane.b32.xlu0 %v733, 12
        %v1287 = vpop.permute.xlu0 %1286
        %1288 = vrot.lane.b32.xlu0 %v734, 12
        %v1289 = vpop.permute.xlu0 %1288
        %1290 = vrot.lane.b32.xlu0 %v735, 12
        %v1291 = vpop.permute.xlu0 %1290
        %v1292 = vshrl.u32 %v734, 16
        %v1294 = vor.u32 %v1292, %v998
        %v1296 = vshll.u32 %v735, 16
        %v1298 = vrot.slane %v1296, 1
        %v1299 = vsel %vm739, %v1294, %v1298
        %v1300 = vshrl.u32 %v735, 16
        %v1302 = vor.u32 %v1300, %v1298
        %v1304 = vshll.u32 %v736, 16
        %v1306 = vrot.slane %v1304, 1
        %v1307 = vsel %vm739, %v1302, %v1306
        %1308 = vrot.lane.b32.xlu0 %v767, 16
        %v1309 = vpop.permute.xlu0 %1308
        %1310 = vrot.lane.b32.xlu0 %v775, 16
        %v1311 = vpop.permute.xlu0 %1310
        %1312 = vrot.lane.b32.xlu0 %v783, 16
        %v1313 = vpop.permute.xlu0 %1312
        %1314 = vrot.lane.b32.xlu0 %v791, 16
        %v1315 = vpop.permute.xlu0 %1314
        %1316 = vrot.lane.b32.xlu0 %v799, 16
        %v1317 = vpop.permute.xlu0 %1316
        %1318 = vrot.lane.b32.xlu0 %v807, 16
        %v1319 = vpop.permute.xlu0 %1318
        %1320 = vrot.lane.b32.xlu0 %v815, 16
        %v1321 = vpop.permute.xlu0 %1320
        %1322 = vrot.lane.b32.xlu0 %v823, 16
        %v1323 = vpop.permute.xlu0 %1322
        %1324 = vrot.lane.b32.xlu0 %v831, 16
        %v1325 = vpop.permute.xlu0 %1324
        %1326 = vrot.lane.b32.xlu0 %v839, 16
        %v1327 = vpop.permute.xlu0 %1326
        %1328 = vrot.lane.b32.xlu0 %v847, 16
        %v1329 = vpop.permute.xlu0 %1328
        %1330 = vrot.lane.b32.xlu0 %v855, 16
        %v1331 = vpop.permute.xlu0 %1330
        %1332 = vrot.lane.b32.xlu0 %v863, 16
        %v1333 = vpop.permute.xlu0 %1332
        %1334 = vrot.lane.b32.xlu0 %v871, 16
        %v1335 = vpop.permute.xlu0 %1334
        %1336 = vrot.lane.b32.xlu0 %v879, 16
        %v1337 = vpop.permute.xlu0 %1336
        %1338 = vrot.lane.b32.xlu0 %v887, 16
        %v1339 = vpop.permute.xlu0 %1338
        %1340 = vrot.lane.b32.xlu0 %v895, 16
        %v1341 = vpop.permute.xlu0 %1340
        %1342 = vrot.lane.b32.xlu0 %v903, 16
        %v1343 = vpop.permute.xlu0 %1342
        %1344 = vrot.lane.b32.xlu0 %v911, 16
        %v1345 = vpop.permute.xlu0 %1344
        %1346 = vrot.lane.b32.xlu0 %v919, 16
        %v1347 = vpop.permute.xlu0 %1346
        %1348 = vrot.lane.b32.xlu0 %v927, 16
        %v1349 = vpop.permute.xlu0 %1348
        %1350 = vrot.lane.b32.xlu0 %v935, 16
        %v1351 = vpop.permute.xlu0 %1350
        %1352 = vrot.lane.b32.xlu0 %v943, 16
        %v1353 = vpop.permute.xlu0 %1352
        %1354 = vrot.lane.b32.xlu0 %v951, 16
        %v1355 = vpop.permute.xlu0 %1354
        %1356 = vrot.lane.b32.xlu0 %v959, 16
        %v1357 = vpop.permute.xlu0 %1356
        %1358 = vrot.lane.b32.xlu0 %v967, 16
        %v1359 = vpop.permute.xlu0 %1358
        %1360 = vrot.lane.b32.xlu0 %v975, 16
        %v1361 = vpop.permute.xlu0 %1360
        %1362 = vrot.lane.b32.xlu0 %v983, 16
        %v1363 = vpop.permute.xlu0 %1362
        %1364 = vrot.lane.b32.xlu0 %v991, 16
        %v1365 = vpop.permute.xlu0 %1364
        %1366 = vrot.lane.b32.xlu0 %v999, 16
        %v1367 = vpop.permute.xlu0 %1366
        %1368 = vrot.lane.b32.xlu0 %v1299, 16
        %v1369 = vpop.permute.xlu0 %1368
        %1370 = vrot.lane.b32.xlu0 %v1307, 16
        %v1371 = vpop.permute.xlu0 %1370
        %v1373 = vrot.slane %v735, 1
        %v1374 = vsel %vm1097, %v1161, %v1373
        %v1375 = vrot.slane %v736, 1
        %v1376 = vsel %vm1097, %v1373, %v1375
        %1377 = vrot.lane.b32.xlu0 %v1104, 20
        %v1378 = vpop.permute.xlu0 %1377
        %1379 = vrot.lane.b32.xlu0 %v1106, 20
        %v1380 = vpop.permute.xlu0 %1379
        %1381 = vrot.lane.b32.xlu0 %v1108, 20
        %v1382 = vpop.permute.xlu0 %1381
        %1383 = vrot.lane.b32.xlu0 %v1110, 20
        %v1384 = vpop.permute.xlu0 %1383
        %1385 = vrot.lane.b32.xlu0 %v1112, 20
        %v1386 = vpop.permute.xlu0 %1385
        %1387 = vrot.lane.b32.xlu0 %v1114, 20
        %v1388 = vpop.permute.xlu0 %1387
        %1389 = vrot.lane.b32.xlu0 %v1116, 20
        %v1390 = vpop.permute.xlu0 %1389
        %1391 = vrot.lane.b32.xlu0 %v1118, 20
        %v1392 = vpop.permute.xlu0 %1391
        %1393 = vrot.lane.b32.xlu0 %v1120, 20
        %v1394 = vpop.permute.xlu0 %1393
        %1395 = vrot.lane.b32.xlu0 %v1122, 20
        %v1396 = vpop.permute.xlu0 %1395
        %1397 = vrot.lane.b32.xlu0 %v1124, 20
        %v1398 = vpop.permute.xlu0 %1397
        %1399 = vrot.lane.b32.xlu0 %v1126, 20
        %v1400 = vpop.permute.xlu0 %1399
        %1401 = vrot.lane.b32.xlu0 %v1128, 20
        %v1402 = vpop.permute.xlu0 %1401
        %1403 = vrot.lane.b32.xlu0 %v1130, 20
        %v1404 = vpop.permute.xlu0 %1403
        %1405 = vrot.lane.b32.xlu0 %v1132, 20
        %v1406 = vpop.permute.xlu0 %1405
        %1407 = vrot.lane.b32.xlu0 %v1134, 20
        %v1408 = vpop.permute.xlu0 %1407
        %1409 = vrot.lane.b32.xlu0 %v1136, 20
        %v1410 = vpop.permute.xlu0 %1409
        %1411 = vrot.lane.b32.xlu0 %v1138, 20
        %v1412 = vpop.permute.xlu0 %1411
        %1413 = vrot.lane.b32.xlu0 %v1140, 20
        %v1414 = vpop.permute.xlu0 %1413
        %1415 = vrot.lane.b32.xlu0 %v1142, 20
        %v1416 = vpop.permute.xlu0 %1415
        %1417 = vrot.lane.b32.xlu0 %v1144, 20
        %v1418 = vpop.permute.xlu0 %1417
        %1419 = vrot.lane.b32.xlu0 %v1146, 20
        %v1420 = vpop.permute.xlu0 %1419
        %1421 = vrot.lane.b32.xlu0 %v1148, 20
        %v1422 = vpop.permute.xlu0 %1421
        %1423 = vrot.lane.b32.xlu0 %v1150, 20
        %v1424 = vpop.permute.xlu0 %1423
        %1425 = vrot.lane.b32.xlu0 %v1152, 20
        %v1426 = vpop.permute.xlu0 %1425
        %1427 = vrot.lane.b32.xlu0 %v1154, 20
        %v1428 = vpop.permute.xlu0 %1427
        %1429 = vrot.lane.b32.xlu0 %v1156, 20
        %v1430 = vpop.permute.xlu0 %1429
        %1431 = vrot.lane.b32.xlu0 %v1158, 20
        %v1432 = vpop.permute.xlu0 %1431
        %1433 = vrot.lane.b32.xlu0 %v1160, 20
        %v1434 = vpop.permute.xlu0 %1433
        %1435 = vrot.lane.b32.xlu0 %v1162, 20
        %v1436 = vpop.permute.xlu0 %1435
        %1437 = vrot.lane.b32.xlu0 %v1374, 20
        %v1438 = vpop.permute.xlu0 %1437
        %1439 = vrot.lane.b32.xlu0 %v1376, 20
        %v1440 = vpop.permute.xlu0 %1439
        %1442 = vrot.lane.b32.xlu0 %v706, 24
        %v1443 = vpop.permute.xlu0 %1442
        %1444 = vrot.lane.b32.xlu0 %v707, 24
        %v1445 = vpop.permute.xlu0 %1444
        %1446 = vrot.lane.b32.xlu0 %v708, 24
        %v1447 = vpop.permute.xlu0 %1446
        %1448 = vrot.lane.b32.xlu0 %v709, 24
        %v1449 = vpop.permute.xlu0 %1448
        %1450 = vrot.lane.b32.xlu0 %v710, 24
        %v1451 = vpop.permute.xlu0 %1450
        %1452 = vrot.lane.b32.xlu0 %v711, 24
        %v1453 = vpop.permute.xlu0 %1452
        %1454 = vrot.lane.b32.xlu0 %v712, 24
        %v1455 = vpop.permute.xlu0 %1454
        %1456 = vrot.lane.b32.xlu0 %v713, 24
        %v1457 = vpop.permute.xlu0 %1456
        %1458 = vrot.lane.b32.xlu0 %v714, 24
        %v1459 = vpop.permute.xlu0 %1458
        %1460 = vrot.lane.b32.xlu0 %v715, 24
        %v1461 = vpop.permute.xlu0 %1460
        %1462 = vrot.lane.b32.xlu0 %v716, 24
        %v1463 = vpop.permute.xlu0 %1462
        %1464 = vrot.lane.b32.xlu0 %v717, 24
        %v1465 = vpop.permute.xlu0 %1464
        %1466 = vrot.lane.b32.xlu0 %v718, 24
        %v1467 = vpop.permute.xlu0 %1466
        %1468 = vrot.lane.b32.xlu0 %v719, 24
        %v1469 = vpop.permute.xlu0 %1468
        %1470 = vrot.lane.b32.xlu0 %v720, 24
        %v1471 = vpop.permute.xlu0 %1470
        %1472 = vrot.lane.b32.xlu0 %v721, 24
        %v1473 = vpop.permute.xlu0 %1472
        %1474 = vrot.lane.b32.xlu0 %v722, 24
        %v1475 = vpop.permute.xlu0 %1474
        %1476 = vrot.lane.b32.xlu0 %v723, 24
        %v1477 = vpop.permute.xlu0 %1476
        %1478 = vrot.lane.b32.xlu0 %v724, 24
        %v1479 = vpop.permute.xlu0 %1478
        %1480 = vrot.lane.b32.xlu0 %v725, 24
        %v1481 = vpop.permute.xlu0 %1480
        %1482 = vrot.lane.b32.xlu0 %v726, 24
        %v1483 = vpop.permute.xlu0 %1482
        %1484 = vrot.lane.b32.xlu0 %v727, 24
        %v1485 = vpop.permute.xlu0 %1484
        %1486 = vrot.lane.b32.xlu0 %v728, 24
        %v1487 = vpop.permute.xlu0 %1486
        %1488 = vrot.lane.b32.xlu0 %v729, 24
        %v1489 = vpop.permute.xlu0 %1488
        %1490 = vrot.lane.b32.xlu0 %v730, 24
        %v1491 = vpop.permute.xlu0 %1490
        %1492 = vrot.lane.b32.xlu0 %v731, 24
        %v1493 = vpop.permute.xlu0 %1492
        %1494 = vrot.lane.b32.xlu0 %v732, 24
        %v1495 = vpop.permute.xlu0 %1494
        %1496 = vrot.lane.b32.xlu0 %v733, 24
        %v1497 = vpop.permute.xlu0 %1496
        %1498 = vrot.lane.b32.xlu0 %v734, 24
        %v1499 = vpop.permute.xlu0 %1498
        %1500 = vrot.lane.b32.xlu0 %v735, 24
        %v1501 = vpop.permute.xlu0 %1500
        %1502 = vrot.lane.b32.xlu0 %v736, 24
        %v1503 = vpop.permute.xlu0 %1502
        %1504 = vrot.lane.b32.xlu0 %v737, 24
        %v1505 = vpop.permute.xlu0 %1504
        %v1506 = vshrl.u32 %v736, 16
        %v1508 = vor.u32 %v1506, %v1306
        %v1510 = vshll.u32 %v737, 16
        %v1512 = vrot.slane %v1510, 1
        %v1513 = vsel %vm739, %v1508, %v1512
        %v1514 = vshrl.u32 %v737, 16
        %v1516 = vor.u32 %v1514, %v1512
        %v1518 = vshll.u32 %v738, 16
        %v1520 = vrot.slane %v1518, 1
        %v1521 = vsel %vm739, %v1516, %v1520
        %1522 = vrot.lane.b32.xlu0 %v783, 28
        %v1523 = vpop.permute.xlu0 %1522
        %1524 = vrot.lane.b32.xlu0 %v791, 28
        %v1525 = vpop.permute.xlu0 %1524
        %1526 = vrot.lane.b32.xlu0 %v799, 28
        %v1527 = vpop.permute.xlu0 %1526
        %1528 = vrot.lane.b32.xlu0 %v807, 28
        %v1529 = vpop.permute.xlu0 %1528
        %1530 = vrot.lane.b32.xlu0 %v815, 28
        %v1531 = vpop.permute.xlu0 %1530
        %1532 = vrot.lane.b32.xlu0 %v823, 28
        %v1533 = vpop.permute.xlu0 %1532
        %1534 = vrot.lane.b32.xlu0 %v831, 28
        %v1535 = vpop.permute.xlu0 %1534
        %1536 = vrot.lane.b32.xlu0 %v839, 28
        %v1537 = vpop.permute.xlu0 %1536
        %1538 = vrot.lane.b32.xlu0 %v847, 28
        %v1539 = vpop.permute.xlu0 %1538
        %1540 = vrot.lane.b32.xlu0 %v855, 28
        %v1541 = vpop.permute.xlu0 %1540
        %1542 = vrot.lane.b32.xlu0 %v863, 28
        %v1543 = vpop.permute.xlu0 %1542
        %1544 = vrot.lane.b32.xlu0 %v871, 28
        %v1545 = vpop.permute.xlu0 %1544
        %1546 = vrot.lane.b32.xlu0 %v879, 28
        %v1547 = vpop.permute.xlu0 %1546
        %1548 = vrot.lane.b32.xlu0 %v887, 28
        %v1549 = vpop.permute.xlu0 %1548
        %1550 = vrot.lane.b32.xlu0 %v895, 28
        %v1551 = vpop.permute.xlu0 %1550
        %1552 = vrot.lane.b32.xlu0 %v903, 28
        %v1553 = vpop.permute.xlu0 %1552
        %1554 = vrot.lane.b32.xlu0 %v911, 28
        %v1555 = vpop.permute.xlu0 %1554
        %1556 = vrot.lane.b32.xlu0 %v919, 28
        %v1557 = vpop.permute.xlu0 %1556
        %1558 = vrot.lane.b32.xlu0 %v927, 28
        %v1559 = vpop.permute.xlu0 %1558
        %1560 = vrot.lane.b32.xlu0 %v935, 28
        %v1561 = vpop.permute.xlu0 %1560
        %1562 = vrot.lane.b32.xlu0 %v943, 28
        %v1563 = vpop.permute.xlu0 %1562
        %1564 = vrot.lane.b32.xlu0 %v951, 28
        %v1565 = vpop.permute.xlu0 %1564
        %1566 = vrot.lane.b32.xlu0 %v959, 28
        %v1567 = vpop.permute.xlu0 %1566
        %1568 = vrot.lane.b32.xlu0 %v967, 28
        %v1569 = vpop.permute.xlu0 %1568
        %1570 = vrot.lane.b32.xlu0 %v975, 28
        %v1571 = vpop.permute.xlu0 %1570
        %1572 = vrot.lane.b32.xlu0 %v983, 28
        %v1573 = vpop.permute.xlu0 %1572
        %1574 = vrot.lane.b32.xlu0 %v991, 28
        %v1575 = vpop.permute.xlu0 %1574
        %1576 = vrot.lane.b32.xlu0 %v999, 28
        %v1577 = vpop.permute.xlu0 %1576
        %1578 = vrot.lane.b32.xlu0 %v1299, 28
        %v1579 = vpop.permute.xlu0 %1578
        %1580 = vrot.lane.b32.xlu0 %v1307, 28
        %v1581 = vpop.permute.xlu0 %1580
        %1582 = vrot.lane.b32.xlu0 %v1513, 28
        %v1583 = vpop.permute.xlu0 %1582
        %1584 = vrot.lane.b32.xlu0 %v1521, 28
        %v1585 = vpop.permute.xlu0 %1584
        %v1587 = vrot.slane %v737, 1
        %v1588 = vsel %vm1097, %v1375, %v1587
        %v1589 = vrot.slane %v738, 1
        %v1590 = vsel %vm1097, %v1587, %v1589
        %1591 = vrot.lane.b32.xlu0 %v1108, 32
        %v1592 = vpop.permute.xlu0 %1591
        %1593 = vrot.lane.b32.xlu0 %v1110, 32
        %v1594 = vpop.permute.xlu0 %1593
        %1595 = vrot.lane.b32.xlu0 %v1112, 32
        %v1596 = vpop.permute.xlu0 %1595
        %1597 = vrot.lane.b32.xlu0 %v1114, 32
        %v1598 = vpop.permute.xlu0 %1597
        %1599 = vrot.lane.b32.xlu0 %v1116, 32
        %v1600 = vpop.permute.xlu0 %1599
        %1601 = vrot.lane.b32.xlu0 %v1118, 32
        %v1602 = vpop.permute.xlu0 %1601
        %1603 = vrot.lane.b32.xlu0 %v1120, 32
        %v1604 = vpop.permute.xlu0 %1603
        %1605 = vrot.lane.b32.xlu0 %v1122, 32
        %v1606 = vpop.permute.xlu0 %1605
        %1607 = vrot.lane.b32.xlu0 %v1124, 32
        %v1608 = vpop.permute.xlu0 %1607
        %1609 = vrot.lane.b32.xlu0 %v1126, 32
        %v1610 = vpop.permute.xlu0 %1609
        %1611 = vrot.lane.b32.xlu0 %v1128, 32
        %v1612 = vpop.permute.xlu0 %1611
        %1613 = vrot.lane.b32.xlu0 %v1130, 32
        %v1614 = vpop.permute.xlu0 %1613
        %1615 = vrot.lane.b32.xlu0 %v1132, 32
        %v1616 = vpop.permute.xlu0 %1615
        %1617 = vrot.lane.b32.xlu0 %v1134, 32
        %v1618 = vpop.permute.xlu0 %1617
        %1619 = vrot.lane.b32.xlu0 %v1136, 32
        %v1620 = vpop.permute.xlu0 %1619
        %1621 = vrot.lane.b32.xlu0 %v1138, 32
        %v1622 = vpop.permute.xlu0 %1621
        %1623 = vrot.lane.b32.xlu0 %v1140, 32
        %v1624 = vpop.permute.xlu0 %1623
        %1625 = vrot.lane.b32.xlu0 %v1142, 32
        %v1626 = vpop.permute.xlu0 %1625
        %1627 = vrot.lane.b32.xlu0 %v1144, 32
        %v1628 = vpop.permute.xlu0 %1627
        %1629 = vrot.lane.b32.xlu0 %v1146, 32
        %v1630 = vpop.permute.xlu0 %1629
        %1631 = vrot.lane.b32.xlu0 %v1148, 32
        %v1632 = vpop.permute.xlu0 %1631
        %1633 = vrot.lane.b32.xlu0 %v1150, 32
        %v1634 = vpop.permute.xlu0 %1633
        %1635 = vrot.lane.b32.xlu0 %v1152, 32
        %v1636 = vpop.permute.xlu0 %1635
        %1637 = vrot.lane.b32.xlu0 %v1154, 32
        %v1638 = vpop.permute.xlu0 %1637
        %1639 = vrot.lane.b32.xlu0 %v1156, 32
        %v1640 = vpop.permute.xlu0 %1639
        %1641 = vrot.lane.b32.xlu0 %v1158, 32
        %v1642 = vpop.permute.xlu0 %1641
        %1643 = vrot.lane.b32.xlu0 %v1160, 32
        %v1644 = vpop.permute.xlu0 %1643
        %1645 = vrot.lane.b32.xlu0 %v1162, 32
        %v1646 = vpop.permute.xlu0 %1645
        %1647 = vrot.lane.b32.xlu0 %v1374, 32
        %v1648 = vpop.permute.xlu0 %1647
        %1649 = vrot.lane.b32.xlu0 %v1376, 32
        %v1650 = vpop.permute.xlu0 %1649
        %1651 = vrot.lane.b32.xlu0 %v1588, 32
        %v1652 = vpop.permute.xlu0 %1651
        %1653 = vrot.lane.b32.xlu0 %v1590, 32
        %v1654 = vpop.permute.xlu0 %1653
        %v1656 = vsel %vm336, %v702, %v1001
        %v1658 = vsel %vm336, %v703, %v1003
        %v1660 = vsel %vm336, %v704, %v1005
        %v1662 = vsel %vm336, %v705, %v1007
        %v1664 = vsel %vm336, %v706, %v1009
        %v1666 = vsel %vm336, %v707, %v1011
        %v1668 = vsel %vm336, %v708, %v1013
        %v1670 = vsel %vm336, %v709, %v1015
        %v1672 = vsel %vm336, %v710, %v1017
        %v1674 = vsel %vm336, %v711, %v1019
        %v1676 = vsel %vm336, %v712, %v1021
        %v1678 = vsel %vm336, %v713, %v1023
        %v1680 = vsel %vm336, %v714, %v1025
        %v1682 = vsel %vm336, %v715, %v1027
        %v1684 = vsel %vm336, %v716, %v1029
        %v1686 = vsel %vm336, %v717, %v1031
        %v1688 = vsel %vm336, %v718, %v1033
        %v1690 = vsel %vm336, %v719, %v1035
        %v1692 = vsel %vm336, %v720, %v1037
        %v1694 = vsel %vm336, %v721, %v1039
        %v1696 = vsel %vm336, %v722, %v1041
        %v1698 = vsel %vm336, %v723, %v1043
        %v1700 = vsel %vm336, %v724, %v1045
        %v1702 = vsel %vm336, %v725, %v1047
        %v1704 = vsel %vm336, %v726, %v1049
        %v1706 = vsel %vm336, %v727, %v1051
        %v1708 = vsel %vm336, %v728, %v1053
        %v1710 = vsel %vm336, %v729, %v1055
        %v1712 = vsel %vm336, %v730, %v1057
        %v1714 = vsel %vm336, %v731, %v1059
        %v1716 = vsel %vm336, %v732, %v1061
        %v1718 = vsel %vm336, %v733, %v1063
        %vm1719 = vcmask 64512
        %v1721 = vsel %vm1719, %v1656, %v1164
        %v1723 = vsel %vm1719, %v1658, %v1166
        %v1725 = vsel %vm1719, %v1660, %v1168
        %v1727 = vsel %vm1719, %v1662, %v1170
        %v1729 = vsel %vm1719, %v1664, %v1172
        %v1731 = vsel %vm1719, %v1666, %v1174
        %v1733 = vsel %vm1719, %v1668, %v1176
        %v1735 = vsel %vm1719, %v1670, %v1178
        %v1737 = vsel %vm1719, %v1672, %v1180
        %v1739 = vsel %vm1719, %v1674, %v1182
        %v1741 = vsel %vm1719, %v1676, %v1184
        %v1743 = vsel %vm1719, %v1678, %v1186
        %v1745 = vsel %vm1719, %v1680, %v1188
        %v1747 = vsel %vm1719, %v1682, %v1190
        %v1749 = vsel %vm1719, %v1684, %v1192
        %v1751 = vsel %vm1719, %v1686, %v1194
        %v1753 = vsel %vm1719, %v1688, %v1196
        %v1755 = vsel %vm1719, %v1690, %v1198
        %v1757 = vsel %vm1719, %v1692, %v1200
        %v1759 = vsel %vm1719, %v1694, %v1202
        %v1761 = vsel %vm1719, %v1696, %v1204
        %v1763 = vsel %vm1719, %v1698, %v1206
        %v1765 = vsel %vm1719, %v1700, %v1208
        %v1767 = vsel %vm1719, %v1702, %v1210
        %v1769 = vsel %vm1719, %v1704, %v1212
        %v1771 = vsel %vm1719, %v1706, %v1214
        %v1773 = vsel %vm1719, %v1708, %v1216
        %v1775 = vsel %vm1719, %v1710, %v1218
        %v1777 = vsel %vm1719, %v1712, %v1220
        %v1779 = vsel %vm1719, %v1714, %v1222
        %v1781 = vsel %vm1719, %v1716, %v1224
        %v1783 = vsel %vm1719, %v1718, %v1226
        %vm1784 = vcmask 97280
        %v1786 = vsel %vm1784, %v1721, %v1229
        %v1788 = vsel %vm1784, %v1723, %v1231
        %v1790 = vsel %vm1784, %v1725, %v1233
        %v1792 = vsel %vm1784, %v1727, %v1235
        %v1794 = vsel %vm1784, %v1729, %v1237
        %v1796 = vsel %vm1784, %v1731, %v1239
        %v1798 = vsel %vm1784, %v1733, %v1241
        %v1800 = vsel %vm1784, %v1735, %v1243
        %v1802 = vsel %vm1784, %v1737, %v1245
        %v1804 = vsel %vm1784, %v1739, %v1247
        %v1806 = vsel %vm1784, %v1741, %v1249
        %v1808 = vsel %vm1784, %v1743, %v1251
        %v1810 = vsel %vm1784, %v1745, %v1253
        %v1812 = vsel %vm1784, %v1747, %v1255
        %v1814 = vsel %vm1784, %v1749, %v1257
        %v1816 = vsel %vm1784, %v1751, %v1259
        %v1818 = vsel %vm1784, %v1753, %v1261
        %v1820 = vsel %vm1784, %v1755, %v1263
        %v1822 = vsel %vm1784, %v1757, %v1265
        %v1824 = vsel %vm1784, %v1759, %v1267
        %v1826 = vsel %vm1784, %v1761, %v1269
        %v1828 = vsel %vm1784, %v1763, %v1271
        %v1830 = vsel %vm1784, %v1765, %v1273
        %v1832 = vsel %vm1784, %v1767, %v1275
        %v1834 = vsel %vm1784, %v1769, %v1277
        %v1836 = vsel %vm1784, %v1771, %v1279
        %v1838 = vsel %vm1784, %v1773, %v1281
        %v1840 = vsel %vm1784, %v1775, %v1283
        %v1842 = vsel %vm1784, %v1777, %v1285
        %v1844 = vsel %vm1784, %v1779, %v1287
        %v1846 = vsel %vm1784, %v1781, %v1289
        %v1848 = vsel %vm1784, %v1783, %v1291
        %vm1849 = vcmask 130048
        %v1851 = vsel %vm1849, %v1786, %v1309
        %v1853 = vsel %vm1849, %v1788, %v1311
        %v1855 = vsel %vm1849, %v1790, %v1313
        %v1857 = vsel %vm1849, %v1792, %v1315
        %v1859 = vsel %vm1849, %v1794, %v1317
        %v1861 = vsel %vm1849, %v1796, %v1319
        %v1863 = vsel %vm1849, %v1798, %v1321
        %v1865 = vsel %vm1849, %v1800, %v1323
        %v1867 = vsel %vm1849, %v1802, %v1325
        %v1869 = vsel %vm1849, %v1804, %v1327
        %v1871 = vsel %vm1849, %v1806, %v1329
        %v1873 = vsel %vm1849, %v1808, %v1331
        %v1875 = vsel %vm1849, %v1810, %v1333
        %v1877 = vsel %vm1849, %v1812, %v1335
        %v1879 = vsel %vm1849, %v1814, %v1337
        %v1881 = vsel %vm1849, %v1816, %v1339
        %v1883 = vsel %vm1849, %v1818, %v1341
        %v1885 = vsel %vm1849, %v1820, %v1343
        %v1887 = vsel %vm1849, %v1822, %v1345
        %v1889 = vsel %vm1849, %v1824, %v1347
        %v1891 = vsel %vm1849, %v1826, %v1349
        %v1893 = vsel %vm1849, %v1828, %v1351
        %v1895 = vsel %vm1849, %v1830, %v1353
        %v1897 = vsel %vm1849, %v1832, %v1355
        %v1899 = vsel %vm1849, %v1834, %v1357
        %v1901 = vsel %vm1849, %v1836, %v1359
        %v1903 = vsel %vm1849, %v1838, %v1361
        %v1905 = vsel %vm1849, %v1840, %v1363
        %v1907 = vsel %vm1849, %v1842, %v1365
        %v1909 = vsel %vm1849, %v1844, %v1367
        %v1911 = vsel %vm1849, %v1846, %v1369
        %v1913 = vsel %vm1849, %v1848, %v1371
        %vm1914 = vcmask 162816
        %v1916 = vsel %vm1914, %v1851, %v1378
        %v1918 = vsel %vm1914, %v1853, %v1380
        %v1920 = vsel %vm1914, %v1855, %v1382
        %v1922 = vsel %vm1914, %v1857, %v1384
        %v1924 = vsel %vm1914, %v1859, %v1386
        %v1926 = vsel %vm1914, %v1861, %v1388
        %v1928 = vsel %vm1914, %v1863, %v1390
        %v1930 = vsel %vm1914, %v1865, %v1392
        %v1932 = vsel %vm1914, %v1867, %v1394
        %v1934 = vsel %vm1914, %v1869, %v1396
        %v1936 = vsel %vm1914, %v1871, %v1398
        %v1938 = vsel %vm1914, %v1873, %v1400
        %v1940 = vsel %vm1914, %v1875, %v1402
        %v1942 = vsel %vm1914, %v1877, %v1404
        %v1944 = vsel %vm1914, %v1879, %v1406
        %v1946 = vsel %vm1914, %v1881, %v1408
        %v1948 = vsel %vm1914, %v1883, %v1410
        %v1950 = vsel %vm1914, %v1885, %v1412
        %v1952 = vsel %vm1914, %v1887, %v1414
        %v1954 = vsel %vm1914, %v1889, %v1416
        %v1956 = vsel %vm1914, %v1891, %v1418
        %v1958 = vsel %vm1914, %v1893, %v1420
        %v1960 = vsel %vm1914, %v1895, %v1422
        %v1962 = vsel %vm1914, %v1897, %v1424
        %v1964 = vsel %vm1914, %v1899, %v1426
        %v1966 = vsel %vm1914, %v1901, %v1428
        %v1968 = vsel %vm1914, %v1903, %v1430
        %v1970 = vsel %vm1914, %v1905, %v1432
        %v1972 = vsel %vm1914, %v1907, %v1434
        %v1974 = vsel %vm1914, %v1909, %v1436
        %v1976 = vsel %vm1914, %v1911, %v1438
        %v1978 = vsel %vm1914, %v1913, %v1440
        %vm1979 = vcmask 195584
        %v1981 = vsel %vm1979, %v1916, %v1443
        %v1983 = vsel %vm1979, %v1918, %v1445
        %v1985 = vsel %vm1979, %v1920, %v1447
        %v1987 = vsel %vm1979, %v1922, %v1449
        %v1989 = vsel %vm1979, %v1924, %v1451
        %v1991 = vsel %vm1979, %v1926, %v1453
        %v1993 = vsel %vm1979, %v1928, %v1455
        %v1995 = vsel %vm1979, %v1930, %v1457
        %v1997 = vsel %vm1979, %v1932, %v1459
        %v1999 = vsel %vm1979, %v1934, %v1461
        %v2001 = vsel %vm1979, %v1936, %v1463
        %v2003 = vsel %vm1979, %v1938, %v1465
        %v2005 = vsel %vm1979, %v1940, %v1467
        %v2007 = vsel %vm1979, %v1942, %v1469
        %v2009 = vsel %vm1979, %v1944, %v1471
        %v2011 = vsel %vm1979, %v1946, %v1473
        %v2013 = vsel %vm1979, %v1948, %v1475
        %v2015 = vsel %vm1979, %v1950, %v1477
        %v2017 = vsel %vm1979, %v1952, %v1479
        %v2019 = vsel %vm1979, %v1954, %v1481
        %v2021 = vsel %vm1979, %v1956, %v1483
        %v2023 = vsel %vm1979, %v1958, %v1485
        %v2025 = vsel %vm1979, %v1960, %v1487
        %v2027 = vsel %vm1979, %v1962, %v1489
        %v2029 = vsel %vm1979, %v1964, %v1491
        %v2031 = vsel %vm1979, %v1966, %v1493
        %v2033 = vsel %vm1979, %v1968, %v1495
        %v2035 = vsel %vm1979, %v1970, %v1497
        %v2037 = vsel %vm1979, %v1972, %v1499
        %v2039 = vsel %vm1979, %v1974, %v1501
        %v2041 = vsel %vm1979, %v1976, %v1503
        %v2043 = vsel %vm1979, %v1978, %v1505
        %vm2044 = vcmask 228352
        %v2046 = vsel %vm2044, %v1981, %v1523
        %v2048 = vsel %vm2044, %v1983, %v1525
        %v2050 = vsel %vm2044, %v1985, %v1527
        %v2052 = vsel %vm2044, %v1987, %v1529
        %v2054 = vsel %vm2044, %v1989, %v1531
        %v2056 = vsel %vm2044, %v1991, %v1533
        %v2058 = vsel %vm2044, %v1993, %v1535
        %v2060 = vsel %vm2044, %v1995, %v1537
        %v2062 = vsel %vm2044, %v1997, %v1539
        %v2064 = vsel %vm2044, %v1999, %v1541
        %v2066 = vsel %vm2044, %v2001, %v1543
        %v2068 = vsel %vm2044, %v2003, %v1545
        %v2070 = vsel %vm2044, %v2005, %v1547
        %v2072 = vsel %vm2044, %v2007, %v1549
        %v2074 = vsel %vm2044, %v2009, %v1551
        %v2076 = vsel %vm2044, %v2011, %v1553
        %v2078 = vsel %vm2044, %v2013, %v1555
        %v2080 = vsel %vm2044, %v2015, %v1557
        %v2082 = vsel %vm2044, %v2017, %v1559
        %v2084 = vsel %vm2044, %v2019, %v1561
        %v2086 = vsel %vm2044, %v2021, %v1563
        %v2088 = vsel %vm2044, %v2023, %v1565
        %v2090 = vsel %vm2044, %v2025, %v1567
        %v2092 = vsel %vm2044, %v2027, %v1569
        %v2094 = vsel %vm2044, %v2029, %v1571
        %v2096 = vsel %vm2044, %v2031, %v1573
        %v2098 = vsel %vm2044, %v2033, %v1575
        %v2100 = vsel %vm2044, %v2035, %v1577
        %v2102 = vsel %vm2044, %v2037, %v1579
        %v2104 = vsel %vm2044, %v2039, %v1581
        %v2106 = vsel %vm2044, %v2041, %v1583
        %v2108 = vsel %vm2044, %v2043, %v1585
        %vm2109 = vcmask 261120
        %v2111 = vsel %vm2109, %v2046, %v1592
        %v2113 = vsel %vm2109, %v2048, %v1594
        %v2115 = vsel %vm2109, %v2050, %v1596
        %v2117 = vsel %vm2109, %v2052, %v1598
        %v2119 = vsel %vm2109, %v2054, %v1600
        %v2121 = vsel %vm2109, %v2056, %v1602
        %v2123 = vsel %vm2109, %v2058, %v1604
        %v2125 = vsel %vm2109, %v2060, %v1606
        %v2127 = vsel %vm2109, %v2062, %v1608
        %v2129 = vsel %vm2109, %v2064, %v1610
        %v2131 = vsel %vm2109, %v2066, %v1612
        %v2133 = vsel %vm2109, %v2068, %v1614
        %v2135 = vsel %vm2109, %v2070, %v1616
        %v2137 = vsel %vm2109, %v2072, %v1618
        %v2139 = vsel %vm2109, %v2074, %v1620
        %v2141 = vsel %vm2109, %v2076, %v1622
        %v2143 = vsel %vm2109, %v2078, %v1624
        %v2145 = vsel %vm2109, %v2080, %v1626
        %v2147 = vsel %vm2109, %v2082, %v1628
        %v2149 = vsel %vm2109, %v2084, %v1630
        %v2151 = vsel %vm2109, %v2086, %v1632
        %v2153 = vsel %vm2109, %v2088, %v1634
        %v2155 = vsel %vm2109, %v2090, %v1636
        %v2157 = vsel %vm2109, %v2092, %v1638
        %v2159 = vsel %vm2109, %v2094, %v1640
        %v2161 = vsel %vm2109, %v2096, %v1642
        %v2163 = vsel %vm2109, %v2098, %v1644
        %v2165 = vsel %vm2109, %v2100, %v1646
        %v2167 = vsel %vm2109, %v2102, %v1648
        %v2169 = vsel %vm2109, %v2104, %v1650
        %v2171 = vsel %vm2109, %v2106, %v1652
        %v2173 = vsel %vm2109, %v2108, %v1654
        %v2175 = vlaneseq
        %v2176 = vshrl.u32 %v2175, 7
        %v2177 = vsub.s32 0, %v2176
        %v2178 = vrot.slane %v335, %v2177
        %v2185 = vunpack.c.l.b16 %v330
        %v2186 = vunpack.c.l.b16 %v331
        %v2187 = vunpack.c.l.b16 %v332
        %v2188 = vunpack.c.l.b16 %v333
        %v2189 = vunpack.c.l.b16 %v334
        %v2190 = vpack.c.b16 %v2186, %v2185
        %v2191 = vpack.c.b16 %v2188, %v2187
        %v2192 = vpack.c.b16 %v2189, %v2189
        %vm2195 = vcmask 293888
        %v2196 = vsel %vm2195, %v2111, 0
        %v2198 = vsel %vm2195, %v2113, 0
        %v2200 = vsel %vm2195, %v2115, 0
        %v2202 = vsel %vm2195, %v2117, 0
        %v2204 = vsel %vm2195, %v2119, 0
        %v2206 = vsel %vm2195, %v2121, 0
        %v2208 = vsel %vm2195, %v2123, 0
        %v2210 = vsel %vm2195, %v2125, 0
        %v2212 = vsel %vm2195, %v2127, 0
        %v2214 = vsel %vm2195, %v2129, 0
        %v2216 = vsel %vm2195, %v2131, 0
        %v2218 = vsel %vm2195, %v2133, 0
        %v2220 = vsel %vm2195, %v2135, 0
        %v2222 = vsel %vm2195, %v2137, 0
        %v2224 = vsel %vm2195, %v2139, 0
        %v2226 = vsel %vm2195, %v2141, 0
        %v2228 = vsel %vm2195, %v2143, 0
        %v2230 = vsel %vm2195, %v2145, 0
        %v2232 = vsel %vm2195, %v2147, 0
        %v2234 = vsel %vm2195, %v2149, 0
        %v2236 = vsel %vm2195, %v2151, 0
        %v2238 = vsel %vm2195, %v2153, 0
        %v2240 = vsel %vm2195, %v2155, 0
        %v2242 = vsel %vm2195, %v2157, 0
        %v2244 = vsel %vm2195, %v2159, 0
        %v2246 = vsel %vm2195, %v2161, 0
        %v2248 = vsel %vm2195, %v2163, 0
        %v2250 = vsel %vm2195, %v2165, 0
        %v2252 = vsel %vm2195, %v2167, 0
        %v2254 = vsel %vm2195, %v2169, 0
        %v2256 = vsel %vm2195, %v2171, 0
        %v2258 = vsel %vm2195, %v2173, 0
        %vm2260 = vcmask 1041408
        %v2262 = vsel %vm2260, %v2192, 0
        %2264 = vmatprep.subr.bf16.mxu0 0
        %2265 = vmatpush1.bf16.msra.mxu0 %v2190
        %2266 = vmatprep.subr.bf16.mxu0 0
        %2267 = vmatpush1.bf16.msra.mxu0 %v2191
        %2268 = vmatprep.subr.bf16.mxu0 0
        %2269 = vmatpush1.bf16.msra.mxu0 %v2262
        %2270 = vmatprep.subr.bf16.mxu0 0
        %2271 = vmatpush1.bf16.msra.mxu0 0
        %2272 = vmatprep.subr.bf16.mxu0 0
        %2273 = vmatpush1.bf16.msra.mxu0 0
        %2274 = vmatprep.subr.bf16.mxu0 0
        %2275 = vmatpush1.bf16.msra.mxu0 0
        %2276 = vmatprep.subr.bf16.mxu0 0
        %2277 = vmatpush1.bf16.msra.mxu0 0
        %2278 = vmatprep.subr.bf16.mxu0 0
        %2279 = vmatpush1.bf16.msra.mxu0 0
        %2280 = vmatprep.subr.bf16.mxu0 0
        %2281 = vmatpush1.bf16.msra.mxu0 0
        %2282 = vmatprep.subr.bf16.mxu0 0
        %2283 = vmatpush1.bf16.msra.mxu0 0
        %2284 = vmatprep.subr.bf16.mxu0 0
        %2285 = vmatpush1.bf16.msra.mxu0 0
        %2286 = vmatprep.subr.bf16.mxu0 0
        %2287 = vmatpush1.bf16.msra.mxu0 0
        %2288 = vmatprep.subr.bf16.mxu0 0
        %2289 = vmatpush1.bf16.msra.mxu0 0
        %2290 = vmatprep.subr.bf16.mxu0 0
        %2291 = vmatpush1.bf16.msra.mxu0 0
        %2292 = vmatprep.subr.bf16.mxu0 0
        %2293 = vmatpush1.bf16.msra.mxu0 0
        %2294 = vmatprep.subr.bf16.mxu0 0
        %2295 = vmatpush1.bf16.msra.mxu0 0
        %2296 = vmatprep.mubr.bf16.mxu0 0
        %2297 = vmatmul.mubr.bf16.gmra.mrb[0].mxu0 %v2196
        %v2298 = vpop.f32.mrb[0].mxu0
        %v2299 = vadd.f32 %v2178, %v2298
        %v2300 = vpop.f32.mrb[0].mxu0
        %v2301 = vpop.f32.mrb[0].mxu0
        %v2302 = vadd.f32 %v2178, %v2301
        %v2303 = vpop.f32.mrb[0].mxu0
        %2304 = vmatprep.mubr.bf16.mxu0 0
        %2305 = vmatmul.mubr.bf16.gmra.mrb[0].mxu0 %v2198
        %v2306 = vpop.f32.mrb[0].mxu0
        %v2307 = vpop.f32.mrb[0].mxu0
        %v2308 = vpop.f32.mrb[0].mxu0
        %v2309 = vpop.f32.mrb[0].mxu0
        %2310 = vmatprep.mubr.bf16.mxu0 0
        %2311 = vmatmul.mubr.bf16.gmra.mrb[0].mxu0 %v2200
        %v2312 = vpop.f32.mrb[0].mxu0
        %v2313 = vadd.f32 %v2178, %v2312
        %v2314 = vpop.f32.mrb[0].mxu0
        %v2315 = vpop.f32.mrb[0].mxu0
        %v2316 = vadd.f32 %v2178, %v2315
        %v2317 = vpop.f32.mrb[0].mxu0
        %2318 = vmatprep.mubr.bf16.mxu0 0
        %2319 = vmatmul.mubr.bf16.gmra.mrb[0].mxu0 %v2202
        %v2320 = vpop.f32.mrb[0].mxu0
        %v2321 = vpop.f32.mrb[0].mxu0
        %v2322 = vpop.f32.mrb[0].mxu0
        %v2323 = vpop.f32.mrb[0].mxu0
        %2324 = vmatprep.mubr.bf16.mxu0 0
        %2325 = vmatmul.mubr.bf16.gmra.mrb[0].mxu0 %v2204
        %v2326 = vpop.f32.mrb[0].mxu0
        %v2327 = vadd.f32 %v2178, %v2326
        %v2328 = vpop.f32.mrb[0].mxu0
        %v2329 = vpop.f32.mrb[0].mxu0
        %v2330 = vadd.f32 %v2178, %v2329
        %v2331 = vpop.f32.mrb[0].mxu0
        %2332 = vmatprep.mubr.bf16.mxu0 0
        %2333 = vmatmul.mubr.bf16.gmra.mrb[0].mxu0 %v2206
        %v2334 = vpop.f32.mrb[0].mxu0
        %v2335 = vpop.f32.mrb[0].mxu0
        %v2336 = vpop.f32.mrb[0].mxu0
        %v2337 = vpop.f32.mrb[0].mxu0
        %2338 = vmatprep.mubr.bf16.mxu0 0
        %2339 = vmatmul.mubr.bf16.gmra.mrb[0].mxu0 %v2208
        %v2340 = vpop.f32.mrb[0].mxu0
        %v2341 = vadd.f32 %v2178, %v2340
        %v2342 = vpop.f32.mrb[0].mxu0
        %v2343 = vpop.f32.mrb[0].mxu0
        %v2344 = vadd.f32 %v2178, %v2343
        %v2345 = vpop.f32.mrb[0].mxu0
        %2346 = vmatprep.mubr.bf16.mxu0 0
        %2347 = vmatmul.mubr.bf16.gmra.mrb[0].mxu0 %v2210
        %v2348 = vpop.f32.mrb[0].mxu0
        %v2349 = vpop.f32.mrb[0].mxu0
        %v2350 = vpop.f32.mrb[0].mxu0
        %v2351 = vpop.f32.mrb[0].mxu0
        %2352 = vmatprep.mubr.bf16.mxu0 0
        %2353 = vmatmul.mubr.bf16.gmra.mrb[0].mxu0 %v2212
        %v2354 = vpop.f32.mrb[0].mxu0
        %v2355 = vadd.f32 %v2178, %v2354
        %v2356 = vpop.f32.mrb[0].mxu0
        %v2357 = vpop.f32.mrb[0].mxu0
        %v2358 = vadd.f32 %v2178, %v2357
        %v2359 = vpop.f32.mrb[0].mxu0
        %2360 = vmatprep.mubr.bf16.mxu0 0
        %2361 = vmatmul.mubr.bf16.gmra.mrb[0].mxu0 %v2214
        %v2362 = vpop.f32.mrb[0].mxu0
        %v2363 = vpop.f32.mrb[0].mxu0
        %v2364 = vpop.f32.mrb[0].mxu0
        %v2365 = vpop.f32.mrb[0].mxu0
        %2366 = vmatprep.mubr.bf16.mxu0 0
        %2367 = vmatmul.mubr.bf16.gmra.mrb[0].mxu0 %v2216
        %v2368 = vpop.f32.mrb[0].mxu0
        %v2369 = vadd.f32 %v2178, %v2368
        %v2370 = vpop.f32.mrb[0].mxu0
        %v2371 = vpop.f32.mrb[0].mxu0
        %v2372 = vadd.f32 %v2178, %v2371
        %v2373 = vpop.f32.mrb[0].mxu0
        %2374 = vmatprep.mubr.bf16.mxu0 0
        %2375 = vmatmul.mubr.bf16.gmra.mrb[0].mxu0 %v2218
        %v2376 = vpop.f32.mrb[0].mxu0
        %v2377 = vpop.f32.mrb[0].mxu0
        %v2378 = vpop.f32.mrb[0].mxu0
        %v2379 = vpop.f32.mrb[0].mxu0
        %2380 = vmatprep.mubr.bf16.mxu0 0
        %2381 = vmatmul.mubr.bf16.gmra.mrb[0].mxu0 %v2220
        %v2382 = vpop.f32.mrb[0].mxu0
        %v2383 = vadd.f32 %v2178, %v2382
        %v2384 = vpop.f32.mrb[0].mxu0
        %v2385 = vpop.f32.mrb[0].mxu0
        %v2386 = vadd.f32 %v2178, %v2385
        %v2387 = vpop.f32.mrb[0].mxu0
        %2388 = vmatprep.mubr.bf16.mxu0 0
        %2389 = vmatmul.mubr.bf16.gmra.mrb[0].mxu0 %v2222
        %v2390 = vpop.f32.mrb[0].mxu0
        %v2391 = vpop.f32.mrb[0].mxu0
        %v2392 = vpop.f32.mrb[0].mxu0
        %v2393 = vpop.f32.mrb[0].mxu0
        %2394 = vmatprep.mubr.bf16.mxu0 0
        %2395 = vmatmul.mubr.bf16.gmra.mrb[0].mxu0 %v2224
        %v2396 = vpop.f32.mrb[0].mxu0
        %v2397 = vadd.f32 %v2178, %v2396
        %v2398 = vpop.f32.mrb[0].mxu0
        %v2399 = vpop.f32.mrb[0].mxu0
        %v2400 = vadd.f32 %v2178, %v2399
        %v2401 = vpop.f32.mrb[0].mxu0
        %2402 = vmatprep.mubr.bf16.mxu0 0
        %2403 = vmatmul.mubr.bf16.gmra.mrb[0].mxu0 %v2226
        %v2404 = vpop.f32.mrb[0].mxu0
        %v2405 = vpop.f32.mrb[0].mxu0
        %v2406 = vpop.f32.mrb[0].mxu0
        %v2407 = vpop.f32.mrb[0].mxu0
        %2408 = vmatprep.mubr.bf16.mxu0 0
        %2409 = vmatmul.mubr.bf16.gmra.mrb[0].mxu0 %v2228
        %v2410 = vpop.f32.mrb[0].mxu0
        %v2411 = vadd.f32 %v2178, %v2410
        %v2412 = vpop.f32.mrb[0].mxu0
        %v2413 = vpop.f32.mrb[0].mxu0
        %v2414 = vadd.f32 %v2178, %v2413
        %v2415 = vpop.f32.mrb[0].mxu0
        %2416 = vmatprep.mubr.bf16.mxu0 0
        %2417 = vmatmul.mubr.bf16.gmra.mrb[0].mxu0 %v2230
        %v2418 = vpop.f32.mrb[0].mxu0
        %v2419 = vpop.f32.mrb[0].mxu0
        %v2420 = vpop.f32.mrb[0].mxu0
        %v2421 = vpop.f32.mrb[0].mxu0
        %2422 = vmatprep.mubr.bf16.mxu0 0
        %2423 = vmatmul.mubr.bf16.gmra.mrb[0].mxu0 %v2232
        %v2424 = vpop.f32.mrb[0].mxu0
        %v2425 = vadd.f32 %v2178, %v2424
        %v2426 = vpop.f32.mrb[0].mxu0
        %v2427 = vpop.f32.mrb[0].mxu0
        %v2428 = vadd.f32 %v2178, %v2427
        %v2429 = vpop.f32.mrb[0].mxu0
        %2430 = vmatprep.mubr.bf16.mxu0 0
        %2431 = vmatmul.mubr.bf16.gmra.mrb[0].mxu0 %v2234
        %v2432 = vpop.f32.mrb[0].mxu0
        %v2433 = vpop.f32.mrb[0].mxu0
        %v2434 = vpop.f32.mrb[0].mxu0
        %v2435 = vpop.f32.mrb[0].mxu0
        %2436 = vmatprep.mubr.bf16.mxu0 0
        %2437 = vmatmul.mubr.bf16.gmra.mrb[0].mxu0 %v2236
        %v2438 = vpop.f32.mrb[0].mxu0
        %v2439 = vadd.f32 %v2178, %v2438
        %v2440 = vpop.f32.mrb[0].mxu0
        %v2441 = vpop.f32.mrb[0].mxu0
        %v2442 = vadd.f32 %v2178, %v2441
        %v2443 = vpop.f32.mrb[0].mxu0
        %2444 = vmatprep.mubr.bf16.mxu0 0
        %2445 = vmatmul.mubr.bf16.gmra.mrb[0].mxu0 %v2238
        %v2446 = vpop.f32.mrb[0].mxu0
        %v2447 = vpop.f32.mrb[0].mxu0
        %v2448 = vpop.f32.mrb[0].mxu0
        %v2449 = vpop.f32.mrb[0].mxu0
        %2450 = vmatprep.mubr.bf16.mxu0 0
        %2451 = vmatmul.mubr.bf16.gmra.mrb[0].mxu0 %v2240
        %v2452 = vpop.f32.mrb[0].mxu0
        %v2453 = vadd.f32 %v2178, %v2452
        %v2454 = vpop.f32.mrb[0].mxu0
        %v2455 = vpop.f32.mrb[0].mxu0
        %v2456 = vadd.f32 %v2178, %v2455
        %v2457 = vpop.f32.mrb[0].mxu0
        %2458 = vmatprep.mubr.bf16.mxu0 0
        %2459 = vmatmul.mubr.bf16.gmra.mrb[0].mxu0 %v2242
        %v2460 = vpop.f32.mrb[0].mxu0
        %v2461 = vpop.f32.mrb[0].mxu0
        %v2462 = vpop.f32.mrb[0].mxu0
        %v2463 = vpop.f32.mrb[0].mxu0
        %2464 = vmatprep.mubr.bf16.mxu0 0
        %2465 = vmatmul.mubr.bf16.gmra.mrb[0].mxu0 %v2244
        %v2466 = vpop.f32.mrb[0].mxu0
        %v2467 = vadd.f32 %v2178, %v2466
        %v2468 = vpop.f32.mrb[0].mxu0
        %v2469 = vpop.f32.mrb[0].mxu0
        %v2470 = vadd.f32 %v2178, %v2469
        %v2471 = vpop.f32.mrb[0].mxu0
        %2472 = vmatprep.mubr.bf16.mxu0 0
        %2473 = vmatmul.mubr.bf16.gmra.mrb[0].mxu0 %v2246
        %v2474 = vpop.f32.mrb[0].mxu0
        %v2475 = vpop.f32.mrb[0].mxu0
        %v2476 = vpop.f32.mrb[0].mxu0
        %v2477 = vpop.f32.mrb[0].mxu0
        %2478 = vmatprep.mubr.bf16.mxu0 0
        %2479 = vmatmul.mubr.bf16.gmra.mrb[0].mxu0 %v2248
        %v2480 = vpop.f32.mrb[0].mxu0
        %v2481 = vadd.f32 %v2178, %v2480
        %v2482 = vpop.f32.mrb[0].mxu0
        %v2483 = vpop.f32.mrb[0].mxu0
        %v2484 = vadd.f32 %v2178, %v2483
        %v2485 = vpop.f32.mrb[0].mxu0
        %2486 = vmatprep.mubr.bf16.mxu0 0
        %2487 = vmatmul.mubr.bf16.gmra.mrb[0].mxu0 %v2250
        %v2488 = vpop.f32.mrb[0].mxu0
        %v2489 = vpop.f32.mrb[0].mxu0
        %v2490 = vpop.f32.mrb[0].mxu0
        %v2491 = vpop.f32.mrb[0].mxu0
        %2492 = vmatprep.mubr.bf16.mxu0 0
        %2493 = vmatmul.mubr.bf16.gmra.mrb[0].mxu0 %v2252
        %v2494 = vpop.f32.mrb[0].mxu0
        %v2495 = vadd.f32 %v2178, %v2494
        %v2496 = vpop.f32.mrb[0].mxu0
        %v2497 = vpop.f32.mrb[0].mxu0
        %v2498 = vadd.f32 %v2178, %v2497
        %v2499 = vpop.f32.mrb[0].mxu0
        %2500 = vmatprep.mubr.bf16.mxu0 0
        %2501 = vmatmul.mubr.bf16.gmra.mrb[0].mxu0 %v2254
        %v2502 = vpop.f32.mrb[0].mxu0
        %v2503 = vpop.f32.mrb[0].mxu0
        %v2504 = vpop.f32.mrb[0].mxu0
        %v2505 = vpop.f32.mrb[0].mxu0
        %2506 = vmatprep.mubr.bf16.mxu0 0
        %2507 = vmatmul.mubr.bf16.gmra.mrb[0].mxu0 %v2256
        %v2508 = vpop.f32.mrb[0].mxu0
        %v2509 = vadd.f32 %v2178, %v2508
        %v2510 = vpop.f32.mrb[0].mxu0
        %v2511 = vpop.f32.mrb[0].mxu0
        %v2512 = vadd.f32 %v2178, %v2511
        %v2513 = vpop.f32.mrb[0].mxu0
        %2514 = vmatprep.mubr.bf16.mxu0 0
        %2515 = vmatmul.mubr.bf16.gmra.mrb[0].mxu0 %v2258
        %v2516 = vpop.f32.mrb[0].mxu0
        %v2517 = vpop.f32.mrb[0].mxu0
        %v2518 = vpop.f32.mrb[0].mxu0
        %v2519 = vpop.f32.mrb[0].mxu0
        %2520 = vdwg.mxu0
        %v2521 = vmax.f32 %v2299, 0.0
        %v2522 = vmax.f32 %v2302, 0.0
        %v2523 = vmax.f32 %v2313, 0.0
        %v2524 = vmax.f32 %v2316, 0.0
        %v2525 = vmax.f32 %v2327, 0.0
        %v2526 = vmax.f32 %v2330, 0.0
        %v2527 = vmax.f32 %v2341, 0.0
        %v2528 = vmax.f32 %v2344, 0.0
        %v2529 = vmax.f32 %v2355, 0.0
        %v2530 = vmax.f32 %v2358, 0.0
        %v2531 = vmax.f32 %v2369, 0.0
        %v2532 = vmax.f32 %v2372, 0.0
        %v2533 = vmax.f32 %v2383, 0.0
        %v2534 = vmax.f32 %v2386, 0.0
        %v2535 = vmax.f32 %v2397, 0.0
        %v2536 = vmax.f32 %v2400, 0.0
        %v2537 = vmax.f32 %v2411, 0.0
        %v2538 = vmax.f32 %v2414, 0.0
        %v2539 = vmax.f32 %v2425, 0.0
        %v2540 = vmax.f32 %v2428, 0.0
        %v2541 = vmax.f32 %v2439, 0.0
        %v2542 = vmax.f32 %v2442, 0.0
        %v2543 = vmax.f32 %v2453, 0.0
        %v2544 = vmax.f32 %v2456, 0.0
        %v2545 = vmax.f32 %v2467, 0.0
        %v2546 = vmax.f32 %v2470, 0.0
        %v2547 = vmax.f32 %v2481, 0.0
        %v2548 = vmax.f32 %v2484, 0.0
        %v2549 = vmax.f32 %v2495, 0.0
        %v2550 = vmax.f32 %v2498, 0.0
        %v2551 = vmax.f32 %v2509, 0.0
        %v2552 = vmax.f32 %v2512, 0.0
        %v2553 = vpack.c.bf16 %v2522, %v2521
        %v2554 = vpack.c.bf16 %v2524, %v2523
        %v2555 = vpack.c.bf16 %v2526, %v2525
        %v2556 = vpack.c.bf16 %v2528, %v2527
        %v2557 = vpack.c.bf16 %v2530, %v2529
        %v2558 = vpack.c.bf16 %v2532, %v2531
        %v2559 = vpack.c.bf16 %v2534, %v2533
        %v2560 = vpack.c.bf16 %v2536, %v2535
        %v2561 = vpack.c.bf16 %v2538, %v2537
        %v2562 = vpack.c.bf16 %v2540, %v2539
        %v2563 = vpack.c.bf16 %v2542, %v2541
        %v2564 = vpack.c.bf16 %v2544, %v2543
        %v2565 = vpack.c.bf16 %v2546, %v2545
        %v2566 = vpack.c.bf16 %v2548, %v2547
        %v2567 = vpack.c.bf16 %v2550, %v2549
        %v2568 = vpack.c.bf16 %v2552, %v2551
        %v2569 = vld [vmem:[#allocation10] sm:$0xf]
        %v2570 = vld [vmem:[#allocation10 + $0x4] sm:$0xf]
        %v2571 = vld [vmem:[#allocation10 + $0x8] sm:$0xf]
        %v2572 = vld [vmem:[#allocation10 + $0xc] sm:$0xf]
        %v2573 = vld [vmem:[#allocation10 + $0x10] sm:$0xf]
        %v2574 = vld [vmem:[#allocation10 + $0x14] sm:$0xf]
        %v2575 = vld [vmem:[#allocation10 + $0x18] sm:$0xf]
        %v2576 = vld [vmem:[#allocation10 + $0x1c] sm:$0xf]
        %v2577 = vld [vmem:[#allocation10 + $0x20] sm:$0xf]
        %v2578 = vld [vmem:[#allocation12] sm:$0x1]
        %2579 = vst.msk [vmem:[#allocation3] sm:$0xff] %vm1719, 0
        %2580 = vst.msk [vmem:[#allocation3 + $0x8] sm:$0xff] %vm1719, 0
        %2581 = vst.msk [vmem:[#allocation3 + $0x10] sm:$0xff] %vm1719, 0
        %2582 = vst.msk [vmem:[#allocation3 + $0x18] sm:$0xff] %vm1719, 0
        %2583 = vst.msk [vmem:[#allocation3 + $0x20] sm:$0xff] %vm1719, 0
        %2584 = vst.msk [vmem:[#allocation3 + $0x28] sm:$0xff] %vm1719, 0
        %2585 = vst.msk [vmem:[#allocation3 + $0x30] sm:$0xff] %vm1719, 0
        %2586 = vst.msk [vmem:[#allocation3 + $0x38] sm:$0xff] %vm1719, 0
        %2587 = vst.msk [vmem:[#allocation3 + $0x40] sm:$0xff] %vm1719, 0
        %2588 = vst.msk [vmem:[#allocation3 + $0x48] sm:$0xff] %vm1719, 0
        %2589 = vst.msk [vmem:[#allocation3 + $0x50] sm:$0xff] %vm1719, 0
        %2590 = vst.msk [vmem:[#allocation3 + $0x58] sm:$0xff] %vm1719, 0
        %2591 = vst.msk [vmem:[#allocation3 + $0x60] sm:$0xff] %vm1719, 0
        %2592 = vst.msk [vmem:[#allocation3 + $0x68] sm:$0xff] %vm1719, 0
        %2593 = vst.msk [vmem:[#allocation3 + $0x70] sm:$0xff] %vm1719, 0
        %2594 = vst.msk [vmem:[#allocation3 + $0x78] sm:$0xff] %vm1719, 0
        %2595 = vst.msk [vmem:[#allocation3 + $0x80] sm:$0xff] %vm1719, 0
        %2596 = vst.msk [vmem:[#allocation3 + $0x88] sm:$0xff] %vm1719, 0
        %2597 = vst.msk [vmem:[#allocation3 + $0x90] sm:$0xff] %vm1719, 0
        %2598 = vst.msk [vmem:[#allocation3 + $0x98] sm:$0xff] %vm1719, 0
        %2599 = vst.msk [vmem:[#allocation3 + $0xa0] sm:$0xff] %vm1719, 0
        %2600 = vst.msk [vmem:[#allocation3 + $0xa8] sm:$0xff] %vm1719, 0
        %2601 = vst.msk [vmem:[#allocation3 + $0xb0] sm:$0xff] %vm1719, 0
        %2602 = vst.msk [vmem:[#allocation3 + $0xb8] sm:$0xff] %vm1719, 0
        %2603 = vst.msk [vmem:[#allocation3 + $0xc0] sm:$0xff] %vm1719, 0
        %2604 = vst.msk [vmem:[#allocation3 + $0xc8] sm:$0xff] %vm1719, 0
        %2605 = vst.msk [vmem:[#allocation3 + $0xd0] sm:$0xff] %vm1719, 0
        %2606 = vst.msk [vmem:[#allocation3 + $0xd8] sm:$0xff] %vm1719, 0
        %2607 = vst.msk [vmem:[#allocation3 + $0xe0] sm:$0xff] %vm1719, 0
        %2608 = vst.msk [vmem:[#allocation3 + $0xe8] sm:$0xff] %vm1719, 0
        %2609 = vst.msk [vmem:[#allocation3 + $0xf0] sm:$0xff] %vm1719, 0
        %2610 = vst.msk [vmem:[#allocation3 + $0xf8] sm:$0xff] %vm1719, 0
        %2611 = vst.msk [vmem:[#allocation3 + $0x100] sm:$0xff] %vm1719, 0
        %2612 = vst.msk [vmem:[#allocation3 + $0x108] sm:$0xff] %vm1719, 0
        %2613 = vst.msk [vmem:[#allocation3 + $0x110] sm:$0xff] %vm1719, 0
        %2614 = vst.msk [vmem:[#allocation3 + $0x118] sm:$0xff] %vm1719, 0
        %2615 = vst.msk [vmem:[#allocation3 + $0x120] sm:$0xff] %vm1719, 0
        %2616 = vst.msk [vmem:[#allocation3 + $0x128] sm:$0xff] %vm1719, 0
        %v2618 = vshrl.u32 %v2553, 16
        %v2620 = vrot.slane %v2618, 7
        %v2621 = vshll.u32 %v2553, 16
        %v2623 = vor.u32 %v2620, %v2621
        %v2625 = vshrl.u32 %v2554, 16
        %v2627 = vrot.slane %v2625, 7
        %v2628 = vshll.u32 %v2554, 16
        %v2630 = vor.u32 %v2627, %v2628
        %v2632 = vshrl.u32 %v2555, 16
        %v2634 = vrot.slane %v2632, 7
        %v2635 = vshll.u32 %v2555, 16
        %v2637 = vor.u32 %v2634, %v2635
        %v2639 = vshrl.u32 %v2556, 16
        %v2641 = vrot.slane %v2639, 7
        %v2642 = vshll.u32 %v2556, 16
        %v2644 = vor.u32 %v2641, %v2642
        %v2646 = vshrl.u32 %v2557, 16
        %v2648 = vrot.slane %v2646, 7
        %v2649 = vshll.u32 %v2557, 16
        %v2651 = vor.u32 %v2648, %v2649
        %v2653 = vshrl.u32 %v2558, 16
        %v2655 = vrot.slane %v2653, 7
        %v2656 = vshll.u32 %v2558, 16
        %v2658 = vor.u32 %v2655, %v2656
        %v2660 = vshrl.u32 %v2559, 16
        %v2662 = vrot.slane %v2660, 7
        %v2663 = vshll.u32 %v2559, 16
        %v2665 = vor.u32 %v2662, %v2663
        %v2667 = vshrl.u32 %v2560, 16
        %v2669 = vrot.slane %v2667, 7
        %v2670 = vshll.u32 %v2560, 16
        %v2672 = vor.u32 %v2669, %v2670
        %v2674 = vshrl.u32 %v2561, 16
        %v2676 = vrot.slane %v2674, 7
        %v2677 = vshll.u32 %v2561, 16
        %v2679 = vor.u32 %v2676, %v2677
        %v2681 = vshrl.u32 %v2562, 16
        %v2683 = vrot.slane %v2681, 7
        %v2684 = vshll.u32 %v2562, 16
        %v2686 = vor.u32 %v2683, %v2684
        %v2688 = vshrl.u32 %v2563, 16
        %v2690 = vrot.slane %v2688, 7
        %v2691 = vshll.u32 %v2563, 16
        %v2693 = vor.u32 %v2690, %v2691
        %v2695 = vshrl.u32 %v2564, 16
        %v2697 = vrot.slane %v2695, 7
        %v2698 = vshll.u32 %v2564, 16
        %v2700 = vor.u32 %v2697, %v2698
        %v2702 = vshrl.u32 %v2565, 16
        %v2704 = vrot.slane %v2702, 7
        %v2705 = vshll.u32 %v2565, 16
        %v2707 = vor.u32 %v2704, %v2705
        %v2709 = vshrl.u32 %v2566, 16
        %v2711 = vrot.slane %v2709, 7
        %v2712 = vshll.u32 %v2566, 16
        %v2714 = vor.u32 %v2711, %v2712
        %v2716 = vshrl.u32 %v2567, 16
        %v2718 = vrot.slane %v2716, 7
        %v2719 = vshll.u32 %v2567, 16
        %v2721 = vor.u32 %v2718, %v2719
        %v2723 = vshrl.u32 %v2568, 16
        %v2725 = vrot.slane %v2723, 7
        %v2726 = vshll.u32 %v2568, 16
        %v2728 = vor.u32 %v2725, %v2726
        %s2761 = scalar_lea.vmem [#allocation3], 16
        %vm2762 = vcmask 64512
        %vm2763 = vmand %vm2762, %vm601
        %v2764 = vld [vmem:[%s2761] sm:$0xff]
        %v2765 = vsel %vm2763, %v2623, %v2764
        %2766 = vst [vmem:[%s2761] sm:$0xff] %v2765
        %vm2767 = vcmask 57344
        %vm2768 = vmand %vm2767, %vm607
        %v2769 = vld [vmem:[%s2761 + $0x8] sm:$0x1]
        %v2770 = vsel %vm2768, %v2620, %v2769
        %2771 = vst [vmem:[%s2761 + $0x8] sm:$0x1] %v2770
        %v2772 = vld [vmem:[%s2761 + $0x10] sm:$0xff]
        %v2773 = vsel %vm2763, %v2630, %v2772
        %2774 = vst [vmem:[%s2761 + $0x10] sm:$0xff] %v2773
        %v2775 = vld [vmem:[%s2761 + $0x18] sm:$0x1]
        %v2776 = vsel %vm2768, %v2627, %v2775
        %2777 = vst [vmem:[%s2761 + $0x18] sm:$0x1] %v2776
        %v2778 = vld [vmem:[%s2761 + $0x20] sm:$0xff]
        %v2779 = vsel %vm2763, %v2637, %v2778
        %2780 = vst [vmem:[%s2761 + $0x20] sm:$0xff] %v2779
        %v2781 = vld [vmem:[%s2761 + $0x28] sm:$0x1]
        %v2782 = vsel %vm2768, %v2634, %v2781
        %2783 = vst [vmem:[%s2761 + $0x28] sm:$0x1] %v2782
        %v2784 = vld [vmem:[%s2761 + $0x30] sm:$0xff]
        %v2785 = vsel %vm2763, %v2644, %v2784
        %2786 = vst [vmem:[%s2761 + $0x30] sm:$0xff] %v2785
        %v2787 = vld [vmem:[%s2761 + $0x38] sm:$0x1]
        %v2788 = vsel %vm2768, %v2641, %v2787
        %2789 = vst [vmem:[%s2761 + $0x38] sm:$0x1] %v2788
        %v2790 = vld [vmem:[%s2761 + $0x40] sm:$0xff]
        %v2791 = vsel %vm2763, %v2651, %v2790
        %2792 = vst [vmem:[%s2761 + $0x40] sm:$0xff] %v2791
        %v2793 = vld [vmem:[%s2761 + $0x48] sm:$0x1]
        %v2794 = vsel %vm2768, %v2648, %v2793
        %2795 = vst [vmem:[%s2761 + $0x48] sm:$0x1] %v2794
        %v2796 = vld [vmem:[%s2761 + $0x50] sm:$0xff]
        %v2797 = vsel %vm2763, %v2658, %v2796
        %2798 = vst [vmem:[%s2761 + $0x50] sm:$0xff] %v2797
        %v2799 = vld [vmem:[%s2761 + $0x58] sm:$0x1]
        %v2800 = vsel %vm2768, %v2655, %v2799
        %2801 = vst [vmem:[%s2761 + $0x58] sm:$0x1] %v2800
        %v2802 = vld [vmem:[%s2761 + $0x60] sm:$0xff]
        %v2803 = vsel %vm2763, %v2665, %v2802
        %2804 = vst [vmem:[%s2761 + $0x60] sm:$0xff] %v2803
        %v2805 = vld [vmem:[%s2761 + $0x68] sm:$0x1]
        %v2806 = vsel %vm2768, %v2662, %v2805
        %2807 = vst [vmem:[%s2761 + $0x68] sm:$0x1] %v2806
        %v2808 = vld [vmem:[%s2761 + $0x70] sm:$0xff]
        %v2809 = vsel %vm2763, %v2672, %v2808
        %2810 = vst [vmem:[%s2761 + $0x70] sm:$0xff] %v2809
        %v2811 = vld [vmem:[%s2761 + $0x78] sm:$0x1]
        %v2812 = vsel %vm2768, %v2669, %v2811
        %2813 = vst [vmem:[%s2761 + $0x78] sm:$0x1] %v2812
        %v2814 = vld [vmem:[%s2761 + $0x80] sm:$0xff]
        %v2815 = vsel %vm2763, %v2679, %v2814
        %2816 = vst [vmem:[%s2761 + $0x80] sm:$0xff] %v2815
        %v2817 = vld [vmem:[%s2761 + $0x88] sm:$0x1]
        %v2818 = vsel %vm2768, %v2676, %v2817
        %2819 = vst [vmem:[%s2761 + $0x88] sm:$0x1] %v2818
        %v2820 = vld [vmem:[%s2761 + $0x90] sm:$0xff]
        %v2821 = vsel %vm2763, %v2686, %v2820
        %2822 = vst [vmem:[%s2761 + $0x90] sm:$0xff] %v2821
        %v2823 = vld [vmem:[%s2761 + $0x98] sm:$0x1]
        %v2824 = vsel %vm2768, %v2683, %v2823
        %2825 = vst [vmem:[%s2761 + $0x98] sm:$0x1] %v2824
        %v2826 = vld [vmem:[%s2761 + $0xa0] sm:$0xff]
        %v2827 = vsel %vm2763, %v2693, %v2826
        %2828 = vst [vmem:[%s2761 + $0xa0] sm:$0xff] %v2827
        %v2829 = vld [vmem:[%s2761 + $0xa8] sm:$0x1]
        %v2830 = vsel %vm2768, %v2690, %v2829
        %2831 = vst [vmem:[%s2761 + $0xa8] sm:$0x1] %v2830
        %v2832 = vld [vmem:[%s2761 + $0xb0] sm:$0xff]
        %v2833 = vsel %vm2763, %v2700, %v2832
        %2834 = vst [vmem:[%s2761 + $0xb0] sm:$0xff] %v2833
        %v2835 = vld [vmem:[%s2761 + $0xb8] sm:$0x1]
        %v2836 = vsel %vm2768, %v2697, %v2835
        %2837 = vst [vmem:[%s2761 + $0xb8] sm:$0x1] %v2836
        %v2838 = vld [vmem:[%s2761 + $0xc0] sm:$0xff]
        %v2839 = vsel %vm2763, %v2707, %v2838
        %2840 = vst [vmem:[%s2761 + $0xc0] sm:$0xff] %v2839
        %v2841 = vld [vmem:[%s2761 + $0xc8] sm:$0x1]
        %v2842 = vsel %vm2768, %v2704, %v2841
        %2843 = vst [vmem:[%s2761 + $0xc8] sm:$0x1] %v2842
        %v2844 = vld [vmem:[%s2761 + $0xd0] sm:$0xff]
        %v2845 = vsel %vm2763, %v2714, %v2844
        %2846 = vst [vmem:[%s2761 + $0xd0] sm:$0xff] %v2845
        %v2847 = vld [vmem:[%s2761 + $0xd8] sm:$0x1]
        %v2848 = vsel %vm2768, %v2711, %v2847
        %2849 = vst [vmem:[%s2761 + $0xd8] sm:$0x1] %v2848
        %v2850 = vld [vmem:[%s2761 + $0xe0] sm:$0xff]
        %v2851 = vsel %vm2763, %v2721, %v2850
        %2852 = vst [vmem:[%s2761 + $0xe0] sm:$0xff] %v2851
        %v2853 = vld [vmem:[%s2761 + $0xe8] sm:$0x1]
        %v2854 = vsel %vm2768, %v2718, %v2853
        %2855 = vst [vmem:[%s2761 + $0xe8] sm:$0x1] %v2854
        %v2856 = vld [vmem:[%s2761 + $0xf0] sm:$0xff]
        %v2857 = vsel %vm2763, %v2728, %v2856
        %2858 = vst [vmem:[%s2761 + $0xf0] sm:$0xff] %v2857
        %v2859 = vld [vmem:[%s2761 + $0xf8] sm:$0x1]
        %v2860 = vsel %vm2768, %v2725, %v2859
        %2861 = vst [vmem:[%s2761 + $0xf8] sm:$0x1] %v2860
        %v2862 = vld [vmem:[#allocation3] sm:$0xff]
        %v2863 = vld [vmem:[#allocation3 + $0x8] sm:$0xff]
        %v2864 = vld [vmem:[#allocation3 + $0x10] sm:$0xff]
        %v2865 = vld [vmem:[#allocation3 + $0x18] sm:$0xff]
        %v2866 = vld [vmem:[#allocation3 + $0x20] sm:$0xff]
        %v2867 = vld [vmem:[#allocation3 + $0x28] sm:$0xff]
        %v2868 = vld [vmem:[#allocation3 + $0x30] sm:$0xff]
        %v2869 = vld [vmem:[#allocation3 + $0x38] sm:$0xff]
        %v2870 = vld [vmem:[#allocation3 + $0x40] sm:$0xff]
        %v2871 = vld [vmem:[#allocation3 + $0x48] sm:$0xff]
        %v2872 = vld [vmem:[#allocation3 + $0x50] sm:$0xff]
        %v2873 = vld [vmem:[#allocation3 + $0x58] sm:$0xff]
        %v2874 = vld [vmem:[#allocation3 + $0x60] sm:$0xff]
        %v2875 = vld [vmem:[#allocation3 + $0x68] sm:$0xff]
        %v2876 = vld [vmem:[#allocation3 + $0x70] sm:$0xff]
        %v2877 = vld [vmem:[#allocation3 + $0x78] sm:$0xff]
        %v2878 = vld [vmem:[#allocation3 + $0x80] sm:$0xff]
        %v2879 = vld [vmem:[#allocation3 + $0x88] sm:$0xff]
        %v2880 = vld [vmem:[#allocation3 + $0x90] sm:$0xff]
        %v2881 = vld [vmem:[#allocation3 + $0x98] sm:$0xff]
        %v2882 = vld [vmem:[#allocation3 + $0xa0] sm:$0xff]
        %v2883 = vld [vmem:[#allocation3 + $0xa8] sm:$0xff]
        %v2884 = vld [vmem:[#allocation3 + $0xb0] sm:$0xff]
        %v2885 = vld [vmem:[#allocation3 + $0xb8] sm:$0xff]
        %v2886 = vld [vmem:[#allocation3 + $0xc0] sm:$0xff]
        %v2887 = vld [vmem:[#allocation3 + $0xc8] sm:$0xff]
        %v2888 = vld [vmem:[#allocation3 + $0xd0] sm:$0xff]
        %v2889 = vld [vmem:[#allocation3 + $0xd8] sm:$0xff]
        %v2890 = vld [vmem:[#allocation3 + $0xe0] sm:$0xff]
        %v2891 = vld [vmem:[#allocation3 + $0xe8] sm:$0xff]
        %v2892 = vld [vmem:[#allocation3 + $0xf0] sm:$0xff]
        %v2893 = vld [vmem:[#allocation3 + $0xf8] sm:$0xff]
        %v2894 = vld [vmem:[#allocation3 + $0x100] sm:$0xff]
        %v2895 = vld [vmem:[#allocation3 + $0x108] sm:$0xff]
        %v2896 = vld [vmem:[#allocation3 + $0x110] sm:$0xff]
        %v2897 = vld [vmem:[#allocation3 + $0x118] sm:$0xff]
        %v2898 = vld [vmem:[#allocation3 + $0x120] sm:$0xff]
        %v2900 = vshrl.u32 %v2862, 16
        %v2902 = vshll.u32 %v2862, 16
        %v2904 = vrot.slane %v2902, 1
        %v2905 = vor.u32 %v2900, %v2904
        %v2907 = vshll.u32 %v2863, 16
        %v2909 = vrot.slane %v2907, 1
        %v2910 = vsel %vm739, %v2905, %v2909
        %v2911 = vshrl.u32 %v2863, 16
        %v2913 = vor.u32 %v2911, %v2909
        %v2915 = vshll.u32 %v2864, 16
        %v2917 = vrot.slane %v2915, 1
        %v2918 = vsel %vm739, %v2913, %v2917
        %v2919 = vshrl.u32 %v2864, 16
        %v2921 = vor.u32 %v2919, %v2917
        %v2923 = vshll.u32 %v2865, 16
        %v2925 = vrot.slane %v2923, 1
        %v2926 = vsel %vm739, %v2921, %v2925
        %v2927 = vshrl.u32 %v2865, 16
        %v2929 = vor.u32 %v2927, %v2925
        %v2931 = vshll.u32 %v2866, 16
        %v2933 = vrot.slane %v2931, 1
        %v2934 = vsel %vm739, %v2929, %v2933
        %v2935 = vshrl.u32 %v2866, 16
        %v2937 = vor.u32 %v2935, %v2933
        %v2939 = vshll.u32 %v2867, 16
        %v2941 = vrot.slane %v2939, 1
        %v2942 = vsel %vm739, %v2937, %v2941
        %v2943 = vshrl.u32 %v2867, 16
        %v2945 = vor.u32 %v2943, %v2941
        %v2947 = vshll.u32 %v2868, 16
        %v2949 = vrot.slane %v2947, 1
        %v2950 = vsel %vm739, %v2945, %v2949
        %v2951 = vshrl.u32 %v2868, 16
        %v2953 = vor.u32 %v2951, %v2949
        %v2955 = vshll.u32 %v2869, 16
        %v2957 = vrot.slane %v2955, 1
        %v2958 = vsel %vm739, %v2953, %v2957
        %v2959 = vshrl.u32 %v2869, 16
        %v2961 = vor.u32 %v2959, %v2957
        %v2963 = vshll.u32 %v2870, 16
        %v2965 = vrot.slane %v2963, 1
        %v2966 = vsel %vm739, %v2961, %v2965
        %v2967 = vshrl.u32 %v2870, 16
        %v2969 = vor.u32 %v2967, %v2965
        %v2971 = vshll.u32 %v2871, 16
        %v2973 = vrot.slane %v2971, 1
        %v2974 = vsel %vm739, %v2969, %v2973
        %v2975 = vshrl.u32 %v2871, 16
        %v2977 = vor.u32 %v2975, %v2973
        %v2979 = vshll.u32 %v2872, 16
        %v2981 = vrot.slane %v2979, 1
        %v2982 = vsel %vm739, %v2977, %v2981
        %v2983 = vshrl.u32 %v2872, 16
        %v2985 = vor.u32 %v2983, %v2981
        %v2987 = vshll.u32 %v2873, 16
        %v2989 = vrot.slane %v2987, 1
        %v2990 = vsel %vm739, %v2985, %v2989
        %v2991 = vshrl.u32 %v2873, 16
        %v2993 = vor.u32 %v2991, %v2989
        %v2995 = vshll.u32 %v2874, 16
        %v2997 = vrot.slane %v2995, 1
        %v2998 = vsel %vm739, %v2993, %v2997
        %v2999 = vshrl.u32 %v2874, 16
        %v3001 = vor.u32 %v2999, %v2997
        %v3003 = vshll.u32 %v2875, 16
        %v3005 = vrot.slane %v3003, 1
        %v3006 = vsel %vm739, %v3001, %v3005
        %v3007 = vshrl.u32 %v2875, 16
        %v3009 = vor.u32 %v3007, %v3005
        %v3011 = vshll.u32 %v2876, 16
        %v3013 = vrot.slane %v3011, 1
        %v3014 = vsel %vm739, %v3009, %v3013
        %v3015 = vshrl.u32 %v2876, 16
        %v3017 = vor.u32 %v3015, %v3013
        %v3019 = vshll.u32 %v2877, 16
        %v3021 = vrot.slane %v3019, 1
        %v3022 = vsel %vm739, %v3017, %v3021
        %v3023 = vshrl.u32 %v2877, 16
        %v3025 = vor.u32 %v3023, %v3021
        %v3027 = vshll.u32 %v2878, 16
        %v3029 = vrot.slane %v3027, 1
        %v3030 = vsel %vm739, %v3025, %v3029
        %v3031 = vshrl.u32 %v2878, 16
        %v3033 = vor.u32 %v3031, %v3029
        %v3035 = vshll.u32 %v2879, 16
        %v3037 = vrot.slane %v3035, 1
        %v3038 = vsel %vm739, %v3033, %v3037
        %v3039 = vshrl.u32 %v2879, 16
        %v3041 = vor.u32 %v3039, %v3037
        %v3043 = vshll.u32 %v2880, 16
        %v3045 = vrot.slane %v3043, 1
        %v3046 = vsel %vm739, %v3041, %v3045
        %v3047 = vshrl.u32 %v2880, 16
        %v3049 = vor.u32 %v3047, %v3045
        %v3051 = vshll.u32 %v2881, 16
        %v3053 = vrot.slane %v3051, 1
        %v3054 = vsel %vm739, %v3049, %v3053
        %v3055 = vshrl.u32 %v2881, 16
        %v3057 = vor.u32 %v3055, %v3053
        %v3059 = vshll.u32 %v2882, 16
        %v3061 = vrot.slane %v3059, 1
        %v3062 = vsel %vm739, %v3057, %v3061
        %v3063 = vshrl.u32 %v2882, 16
        %v3065 = vor.u32 %v3063, %v3061
        %v3067 = vshll.u32 %v2883, 16
        %v3069 = vrot.slane %v3067, 1
        %v3070 = vsel %vm739, %v3065, %v3069
        %v3071 = vshrl.u32 %v2883, 16
        %v3073 = vor.u32 %v3071, %v3069
        %v3075 = vshll.u32 %v2884, 16
        %v3077 = vrot.slane %v3075, 1
        %v3078 = vsel %vm739, %v3073, %v3077
        %v3079 = vshrl.u32 %v2884, 16
        %v3081 = vor.u32 %v3079, %v3077
        %v3083 = vshll.u32 %v2885, 16
        %v3085 = vrot.slane %v3083, 1
        %v3086 = vsel %vm739, %v3081, %v3085
        %v3087 = vshrl.u32 %v2885, 16
        %v3089 = vor.u32 %v3087, %v3085
        %v3091 = vshll.u32 %v2886, 16
        %v3093 = vrot.slane %v3091, 1
        %v3094 = vsel %vm739, %v3089, %v3093
        %v3095 = vshrl.u32 %v2886, 16
        %v3097 = vor.u32 %v3095, %v3093
        %v3099 = vshll.u32 %v2887, 16
        %v3101 = vrot.slane %v3099, 1
        %v3102 = vsel %vm739, %v3097, %v3101
        %v3103 = vshrl.u32 %v2887, 16
        %v3105 = vor.u32 %v3103, %v3101
        %v3107 = vshll.u32 %v2888, 16
        %v3109 = vrot.slane %v3107, 1
        %v3110 = vsel %vm739, %v3105, %v3109
        %v3111 = vshrl.u32 %v2888, 16
        %v3113 = vor.u32 %v3111, %v3109
        %v3115 = vshll.u32 %v2889, 16
        %v3117 = vrot.slane %v3115, 1
        %v3118 = vsel %vm739, %v3113, %v3117
        %v3119 = vshrl.u32 %v2889, 16
        %v3121 = vor.u32 %v3119, %v3117
        %v3123 = vshll.u32 %v2890, 16
        %v3125 = vrot.slane %v3123, 1
        %v3126 = vsel %vm739, %v3121, %v3125
        %v3127 = vshrl.u32 %v2890, 16
        %v3129 = vor.u32 %v3127, %v3125
        %v3131 = vshll.u32 %v2891, 16
        %v3133 = vrot.slane %v3131, 1
        %v3134 = vsel %vm739, %v3129, %v3133
        %v3135 = vshrl.u32 %v2891, 16
        %v3137 = vor.u32 %v3135, %v3133
        %v3139 = vshll.u32 %v2892, 16
        %v3141 = vrot.slane %v3139, 1
        %v3142 = vsel %vm739, %v3137, %v3141
        %v3143 = vshrl.u32 %v2892, 16
        %v3145 = vor.u32 %v3143, %v3141
        %v3147 = vshll.u32 %v2893, 16
        %v3149 = vrot.slane %v3147, 1
        %v3150 = vsel %vm739, %v3145, %v3149
        %v3151 = vshrl.u32 %v2893, 16
        %v3153 = vor.u32 %v3151, %v3149
        %v3155 = vshll.u32 %v2894, 16
        %v3157 = vrot.slane %v3155, 1
        %v3158 = vsel %vm739, %v3153, %v3157
        %3159 = vrot.lane.b32.xlu0 %v2910, 8
        %v3160 = vpop.permute.xlu0 %3159
        %3161 = vrot.lane.b32.xlu0 %v2918, 8
        %v3162 = vpop.permute.xlu0 %3161
        %3163 = vrot.lane.b32.xlu0 %v2926, 8
        %v3164 = vpop.permute.xlu0 %3163
        %3165 = vrot.lane.b32.xlu0 %v2934, 8
        %v3166 = vpop.permute.xlu0 %3165
        %3167 = vrot.lane.b32.xlu0 %v2942, 8
        %v3168 = vpop.permute.xlu0 %3167
        %3169 = vrot.lane.b32.xlu0 %v2950, 8
        %v3170 = vpop.permute.xlu0 %3169
        %3171 = vrot.lane.b32.xlu0 %v2958, 8
        %v3172 = vpop.permute.xlu0 %3171
        %3173 = vrot.lane.b32.xlu0 %v2966, 8
        %v3174 = vpop.permute.xlu0 %3173
        %3175 = vrot.lane.b32.xlu0 %v2974, 8
        %v3176 = vpop.permute.xlu0 %3175
        %3177 = vrot.lane.b32.xlu0 %v2982, 8
        %v3178 = vpop.permute.xlu0 %3177
        %3179 = vrot.lane.b32.xlu0 %v2990, 8
        %v3180 = vpop.permute.xlu0 %3179
        %3181 = vrot.lane.b32.xlu0 %v2998, 8
        %v3182 = vpop.permute.xlu0 %3181
        %3183 = vrot.lane.b32.xlu0 %v3006, 8
        %v3184 = vpop.permute.xlu0 %3183
        %3185 = vrot.lane.b32.xlu0 %v3014, 8
        %v3186 = vpop.permute.xlu0 %3185
        %3187 = vrot.lane.b32.xlu0 %v3022, 8
        %v3188 = vpop.permute.xlu0 %3187
        %3189 = vrot.lane.b32.xlu0 %v3030, 8
        %v3190 = vpop.permute.xlu0 %3189
        %3191 = vrot.lane.b32.xlu0 %v3038, 8
        %v3192 = vpop.permute.xlu0 %3191
        %3193 = vrot.lane.b32.xlu0 %v3046, 8
        %v3194 = vpop.permute.xlu0 %3193
        %3195 = vrot.lane.b32.xlu0 %v3054, 8
        %v3196 = vpop.permute.xlu0 %3195
        %3197 = vrot.lane.b32.xlu0 %v3062, 8
        %v3198 = vpop.permute.xlu0 %3197
        %3199 = vrot.lane.b32.xlu0 %v3070, 8
        %v3200 = vpop.permute.xlu0 %3199
        %3201 = vrot.lane.b32.xlu0 %v3078, 8
        %v3202 = vpop.permute.xlu0 %3201
        %3203 = vrot.lane.b32.xlu0 %v3086, 8
        %v3204 = vpop.permute.xlu0 %3203
        %3205 = vrot.lane.b32.xlu0 %v3094, 8
        %v3206 = vpop.permute.xlu0 %3205
        %3207 = vrot.lane.b32.xlu0 %v3102, 8
        %v3208 = vpop.permute.xlu0 %3207
        %3209 = vrot.lane.b32.xlu0 %v3110, 8
        %v3210 = vpop.permute.xlu0 %3209
        %3211 = vrot.lane.b32.xlu0 %v3118, 8
        %v3212 = vpop.permute.xlu0 %3211
        %3213 = vrot.lane.b32.xlu0 %v3126, 8
        %v3214 = vpop.permute.xlu0 %3213
        %3215 = vrot.lane.b32.xlu0 %v3134, 8
        %v3216 = vpop.permute.xlu0 %3215
        %3217 = vrot.lane.b32.xlu0 %v3142, 8
        %v3218 = vpop.permute.xlu0 %3217
        %3219 = vrot.lane.b32.xlu0 %v3150, 8
        %v3220 = vpop.permute.xlu0 %3219
        %3221 = vrot.lane.b32.xlu0 %v3158, 8
        %v3222 = vpop.permute.xlu0 %3221
        %v3256 = vrot.slane %v2862, 1
        %v3257 = vrot.slane %v2863, 1
        %v3258 = vsel %vm1097, %v3256, %v3257
        %v3259 = vrot.slane %v2864, 1
        %v3260 = vsel %vm1097, %v3257, %v3259
        %v3261 = vrot.slane %v2865, 1
        %v3262 = vsel %vm1097, %v3259, %v3261
        %v3263 = vrot.slane %v2866, 1
        %v3264 = vsel %vm1097, %v3261, %v3263
        %v3265 = vrot.slane %v2867, 1
        %v3266 = vsel %vm1097, %v3263, %v3265
        %v3267 = vrot.slane %v2868, 1
        %v3268 = vsel %vm1097, %v3265, %v3267
        %v3269 = vrot.slane %v2869, 1
        %v3270 = vsel %vm1097, %v3267, %v3269
        %v3271 = vrot.slane %v2870, 1
        %v3272 = vsel %vm1097, %v3269, %v3271
        %v3273 = vrot.slane %v2871, 1
        %v3274 = vsel %vm1097, %v3271, %v3273
        %v3275 = vrot.slane %v2872, 1
        %v3276 = vsel %vm1097, %v3273, %v3275
        %v3277 = vrot.slane %v2873, 1
        %v3278 = vsel %vm1097, %v3275, %v3277
        %v3279 = vrot.slane %v2874, 1
        %v3280 = vsel %vm1097, %v3277, %v3279
        %v3281 = vrot.slane %v2875, 1
        %v3282 = vsel %vm1097, %v3279, %v3281
        %v3283 = vrot.slane %v2876, 1
        %v3284 = vsel %vm1097, %v3281, %v3283
        %v3285 = vrot.slane %v2877, 1
        %v3286 = vsel %vm1097, %v3283, %v3285
        %v3287 = vrot.slane %v2878, 1
        %v3288 = vsel %vm1097, %v3285, %v3287
        %v3289 = vrot.slane %v2879, 1
        %v3290 = vsel %vm1097, %v3287, %v3289
        %v3291 = vrot.slane %v2880, 1
        %v3292 = vsel %vm1097, %v3289, %v3291
        %v3293 = vrot.slane %v2881, 1
        %v3294 = vsel %vm1097, %v3291, %v3293
        %v3295 = vrot.slane %v2882, 1
        %v3296 = vsel %vm1097, %v3293, %v3295
        %v3297 = vrot.slane %v2883, 1
        %v3298 = vsel %vm1097, %v3295, %v3297
        %v3299 = vrot.slane %v2884, 1
        %v3300 = vsel %vm1097, %v3297, %v3299
        %v3301 = vrot.slane %v2885, 1
        %v3302 = vsel %vm1097, %v3299, %v3301
        %v3303 = vrot.slane %v2886, 1
        %v3304 = vsel %vm1097, %v3301, %v3303
        %v3305 = vrot.slane %v2887, 1
        %v3306 = vsel %vm1097, %v3303, %v3305
        %v3307 = vrot.slane %v2888, 1
        %v3308 = vsel %vm1097, %v3305, %v3307
        %v3309 = vrot.slane %v2889, 1
        %v3310 = vsel %vm1097, %v3307, %v3309
        %v3311 = vrot.slane %v2890, 1
        %v3312 = vsel %vm1097, %v3309, %v3311
        %v3313 = vrot.slane %v2891, 1
        %v3314 = vsel %vm1097, %v3311, %v3313
        %v3315 = vrot.slane %v2892, 1
        %v3316 = vsel %vm1097, %v3313, %v3315
        %v3317 = vrot.slane %v2893, 1
        %v3318 = vsel %vm1097, %v3315, %v3317
        %v3319 = vrot.slane %v2894, 1
        %v3320 = vsel %vm1097, %v3317, %v3319
        %3321 = vrot.lane.b32.xlu0 %v3258, 16
        %v3322 = vpop.permute.xlu0 %3321
        %3323 = vrot.lane.b32.xlu0 %v3260, 16
        %v3324 = vpop.permute.xlu0 %3323
        %3325 = vrot.lane.b32.xlu0 %v3262, 16
        %v3326 = vpop.permute.xlu0 %3325
        %3327 = vrot.lane.b32.xlu0 %v3264, 16
        %v3328 = vpop.permute.xlu0 %3327
        %3329 = vrot.lane.b32.xlu0 %v3266, 16
        %v3330 = vpop.permute.xlu0 %3329
        %3331 = vrot.lane.b32.xlu0 %v3268, 16
        %v3332 = vpop.permute.xlu0 %3331
        %3333 = vrot.lane.b32.xlu0 %v3270, 16
        %v3334 = vpop.permute.xlu0 %3333
        %3335 = vrot.lane.b32.xlu0 %v3272, 16
        %v3336 = vpop.permute.xlu0 %3335
        %3337 = vrot.lane.b32.xlu0 %v3274, 16
        %v3338 = vpop.permute.xlu0 %3337
        %3339 = vrot.lane.b32.xlu0 %v3276, 16
        %v3340 = vpop.permute.xlu0 %3339
        %3341 = vrot.lane.b32.xlu0 %v3278, 16
        %v3342 = vpop.permute.xlu0 %3341
        %3343 = vrot.lane.b32.xlu0 %v3280, 16
        %v3344 = vpop.permute.xlu0 %3343
        %3345 = vrot.lane.b32.xlu0 %v3282, 16
        %v3346 = vpop.permute.xlu0 %3345
        %3347 = vrot.lane.b32.xlu0 %v3284, 16
        %v3348 = vpop.permute.xlu0 %3347
        %3349 = vrot.lane.b32.xlu0 %v3286, 16
        %v3350 = vpop.permute.xlu0 %3349
        %3351 = vrot.lane.b32.xlu0 %v3288, 16
        %v3352 = vpop.permute.xlu0 %3351
        %3353 = vrot.lane.b32.xlu0 %v3290, 16
        %v3354 = vpop.permute.xlu0 %3353
        %3355 = vrot.lane.b32.xlu0 %v3292, 16
        %v3356 = vpop.permute.xlu0 %3355
        %3357 = vrot.lane.b32.xlu0 %v3294, 16
        %v3358 = vpop.permute.xlu0 %3357
        %3359 = vrot.lane.b32.xlu0 %v3296, 16
        %v3360 = vpop.permute.xlu0 %3359
        %3361 = vrot.lane.b32.xlu0 %v3298, 16
        %v3362 = vpop.permute.xlu0 %3361
        %3363 = vrot.lane.b32.xlu0 %v3300, 16
        %v3364 = vpop.permute.xlu0 %3363
        %3365 = vrot.lane.b32.xlu0 %v3302, 16
        %v3366 = vpop.permute.xlu0 %3365
        %3367 = vrot.lane.b32.xlu0 %v3304, 16
        %v3368 = vpop.permute.xlu0 %3367
        %3369 = vrot.lane.b32.xlu0 %v3306, 16
        %v3370 = vpop.permute.xlu0 %3369
        %3371 = vrot.lane.b32.xlu0 %v3308, 16
        %v3372 = vpop.permute.xlu0 %3371
        %3373 = vrot.lane.b32.xlu0 %v3310, 16
        %v3374 = vpop.permute.xlu0 %3373
        %3375 = vrot.lane.b32.xlu0 %v3312, 16
        %v3376 = vpop.permute.xlu0 %3375
        %3377 = vrot.lane.b32.xlu0 %v3314, 16
        %v3378 = vpop.permute.xlu0 %3377
        %3379 = vrot.lane.b32.xlu0 %v3316, 16
        %v3380 = vpop.permute.xlu0 %3379
        %3381 = vrot.lane.b32.xlu0 %v3318, 16
        %v3382 = vpop.permute.xlu0 %3381
        %3383 = vrot.lane.b32.xlu0 %v3320, 16
        %v3384 = vpop.permute.xlu0 %3383
        %3386 = vrot.lane.b32.xlu0 %v2864, 24
        %v3387 = vpop.permute.xlu0 %3386
        %3388 = vrot.lane.b32.xlu0 %v2865, 24
        %v3389 = vpop.permute.xlu0 %3388
        %3390 = vrot.lane.b32.xlu0 %v2866, 24
        %v3391 = vpop.permute.xlu0 %3390
        %3392 = vrot.lane.b32.xlu0 %v2867, 24
        %v3393 = vpop.permute.xlu0 %3392
        %3394 = vrot.lane.b32.xlu0 %v2868, 24
        %v3395 = vpop.permute.xlu0 %3394
        %3396 = vrot.lane.b32.xlu0 %v2869, 24
        %v3397 = vpop.permute.xlu0 %3396
        %3398 = vrot.lane.b32.xlu0 %v2870, 24
        %v3399 = vpop.permute.xlu0 %3398
        %3400 = vrot.lane.b32.xlu0 %v2871, 24
        %v3401 = vpop.permute.xlu0 %3400
        %3402 = vrot.lane.b32.xlu0 %v2872, 24
        %v3403 = vpop.permute.xlu0 %3402
        %3404 = vrot.lane.b32.xlu0 %v2873, 24
        %v3405 = vpop.permute.xlu0 %3404
        %3406 = vrot.lane.b32.xlu0 %v2874, 24
        %v3407 = vpop.permute.xlu0 %3406
        %3408 = vrot.lane.b32.xlu0 %v2875, 24
        %v3409 = vpop.permute.xlu0 %3408
        %3410 = vrot.lane.b32.xlu0 %v2876, 24
        %v3411 = vpop.permute.xlu0 %3410
        %3412 = vrot.lane.b32.xlu0 %v2877, 24
        %v3413 = vpop.permute.xlu0 %3412
        %3414 = vrot.lane.b32.xlu0 %v2878, 24
        %v3415 = vpop.permute.xlu0 %3414
        %3416 = vrot.lane.b32.xlu0 %v2879, 24
        %v3417 = vpop.permute.xlu0 %3416
        %3418 = vrot.lane.b32.xlu0 %v2880, 24
        %v3419 = vpop.permute.xlu0 %3418
        %3420 = vrot.lane.b32.xlu0 %v2881, 24
        %v3421 = vpop.permute.xlu0 %3420
        %3422 = vrot.lane.b32.xlu0 %v2882, 24
        %v3423 = vpop.permute.xlu0 %3422
        %3424 = vrot.lane.b32.xlu0 %v2883, 24
        %v3425 = vpop.permute.xlu0 %3424
        %3426 = vrot.lane.b32.xlu0 %v2884, 24
        %v3427 = vpop.permute.xlu0 %3426
        %3428 = vrot.lane.b32.xlu0 %v2885, 24
        %v3429 = vpop.permute.xlu0 %3428
        %3430 = vrot.lane.b32.xlu0 %v2886, 24
        %v3431 = vpop.permute.xlu0 %3430
        %3432 = vrot.lane.b32.xlu0 %v2887, 24
        %v3433 = vpop.permute.xlu0 %3432
        %3434 = vrot.lane.b32.xlu0 %v2888, 24
        %v3435 = vpop.permute.xlu0 %3434
        %3436 = vrot.lane.b32.xlu0 %v2889, 24
        %v3437 = vpop.permute.xlu0 %3436
        %3438 = vrot.lane.b32.xlu0 %v2890, 24
        %v3439 = vpop.permute.xlu0 %3438
        %3440 = vrot.lane.b32.xlu0 %v2891, 24
        %v3441 = vpop.permute.xlu0 %3440
        %3442 = vrot.lane.b32.xlu0 %v2892, 24
        %v3443 = vpop.permute.xlu0 %3442
        %3444 = vrot.lane.b32.xlu0 %v2893, 24
        %v3445 = vpop.permute.xlu0 %3444
        %3446 = vrot.lane.b32.xlu0 %v2894, 24
        %v3447 = vpop.permute.xlu0 %3446
        %3448 = vrot.lane.b32.xlu0 %v2895, 24
        %v3449 = vpop.permute.xlu0 %3448
        %v3450 = vshrl.u32 %v2894, 16
        %v3452 = vor.u32 %v3450, %v3157
        %v3454 = vshll.u32 %v2895, 16
        %v3456 = vrot.slane %v3454, 1
        %v3457 = vsel %vm739, %v3452, %v3456
        %v3458 = vshrl.u32 %v2895, 16
        %v3460 = vor.u32 %v3458, %v3456
        %v3462 = vshll.u32 %v2896, 16
        %v3464 = vrot.slane %v3462, 1
        %v3465 = vsel %vm739, %v3460, %v3464
        %3466 = vrot.lane.b32.xlu0 %v2926, 32
        %v3467 = vpop.permute.xlu0 %3466
        %3468 = vrot.lane.b32.xlu0 %v2934, 32
        %v3469 = vpop.permute.xlu0 %3468
        %3470 = vrot.lane.b32.xlu0 %v2942, 32
        %v3471 = vpop.permute.xlu0 %3470
        %3472 = vrot.lane.b32.xlu0 %v2950, 32
        %v3473 = vpop.permute.xlu0 %3472
        %3474 = vrot.lane.b32.xlu0 %v2958, 32
        %v3475 = vpop.permute.xlu0 %3474
        %3476 = vrot.lane.b32.xlu0 %v2966, 32
        %v3477 = vpop.permute.xlu0 %3476
        %3478 = vrot.lane.b32.xlu0 %v2974, 32
        %v3479 = vpop.permute.xlu0 %3478
        %3480 = vrot.lane.b32.xlu0 %v2982, 32
        %v3481 = vpop.permute.xlu0 %3480
        %3482 = vrot.lane.b32.xlu0 %v2990, 32
        %v3483 = vpop.permute.xlu0 %3482
        %3484 = vrot.lane.b32.xlu0 %v2998, 32
        %v3485 = vpop.permute.xlu0 %3484
        %3486 = vrot.lane.b32.xlu0 %v3006, 32
        %v3487 = vpop.permute.xlu0 %3486
        %3488 = vrot.lane.b32.xlu0 %v3014, 32
        %v3489 = vpop.permute.xlu0 %3488
        %3490 = vrot.lane.b32.xlu0 %v3022, 32
        %v3491 = vpop.permute.xlu0 %3490
        %3492 = vrot.lane.b32.xlu0 %v3030, 32
        %v3493 = vpop.permute.xlu0 %3492
        %3494 = vrot.lane.b32.xlu0 %v3038, 32
        %v3495 = vpop.permute.xlu0 %3494
        %3496 = vrot.lane.b32.xlu0 %v3046, 32
        %v3497 = vpop.permute.xlu0 %3496
        %3498 = vrot.lane.b32.xlu0 %v3054, 32
        %v3499 = vpop.permute.xlu0 %3498
        %3500 = vrot.lane.b32.xlu0 %v3062, 32
        %v3501 = vpop.permute.xlu0 %3500
        %3502 = vrot.lane.b32.xlu0 %v3070, 32
        %v3503 = vpop.permute.xlu0 %3502
        %3504 = vrot.lane.b32.xlu0 %v3078, 32
        %v3505 = vpop.permute.xlu0 %3504
        %3506 = vrot.lane.b32.xlu0 %v3086, 32
        %v3507 = vpop.permute.xlu0 %3506
        %3508 = vrot.lane.b32.xlu0 %v3094, 32
        %v3509 = vpop.permute.xlu0 %3508
        %3510 = vrot.lane.b32.xlu0 %v3102, 32
        %v3511 = vpop.permute.xlu0 %3510
        %3512 = vrot.lane.b32.xlu0 %v3110, 32
        %v3513 = vpop.permute.xlu0 %3512
        %3514 = vrot.lane.b32.xlu0 %v3118, 32
        %v3515 = vpop.permute.xlu0 %3514
        %3516 = vrot.lane.b32.xlu0 %v3126, 32
        %v3517 = vpop.permute.xlu0 %3516
        %3518 = vrot.lane.b32.xlu0 %v3134, 32
        %v3519 = vpop.permute.xlu0 %3518
        %3520 = vrot.lane.b32.xlu0 %v3142, 32
        %v3521 = vpop.permute.xlu0 %3520
        %3522 = vrot.lane.b32.xlu0 %v3150, 32
        %v3523 = vpop.permute.xlu0 %3522
        %3524 = vrot.lane.b32.xlu0 %v3158, 32
        %v3525 = vpop.permute.xlu0 %3524
        %3526 = vrot.lane.b32.xlu0 %v3457, 32
        %v3527 = vpop.permute.xlu0 %3526
        %3528 = vrot.lane.b32.xlu0 %v3465, 32
        %v3529 = vpop.permute.xlu0 %3528
        %v3531 = vrot.slane %v2895, 1
        %v3532 = vsel %vm1097, %v3319, %v3531
        %v3533 = vrot.slane %v2896, 1
        %v3534 = vsel %vm1097, %v3531, %v3533
        %3535 = vrot.lane.b32.xlu0 %v3262, 40
        %v3536 = vpop.permute.xlu0 %3535
        %3537 = vrot.lane.b32.xlu0 %v3264, 40
        %v3538 = vpop.permute.xlu0 %3537
        %3539 = vrot.lane.b32.xlu0 %v3266, 40
        %v3540 = vpop.permute.xlu0 %3539
        %3541 = vrot.lane.b32.xlu0 %v3268, 40
        %v3542 = vpop.permute.xlu0 %3541
        %3543 = vrot.lane.b32.xlu0 %v3270, 40
        %v3544 = vpop.permute.xlu0 %3543
        %3545 = vrot.lane.b32.xlu0 %v3272, 40
        %v3546 = vpop.permute.xlu0 %3545
        %3547 = vrot.lane.b32.xlu0 %v3274, 40
        %v3548 = vpop.permute.xlu0 %3547
        %3549 = vrot.lane.b32.xlu0 %v3276, 40
        %v3550 = vpop.permute.xlu0 %3549
        %3551 = vrot.lane.b32.xlu0 %v3278, 40
        %v3552 = vpop.permute.xlu0 %3551
        %3553 = vrot.lane.b32.xlu0 %v3280, 40
        %v3554 = vpop.permute.xlu0 %3553
        %3555 = vrot.lane.b32.xlu0 %v3282, 40
        %v3556 = vpop.permute.xlu0 %3555
        %3557 = vrot.lane.b32.xlu0 %v3284, 40
        %v3558 = vpop.permute.xlu0 %3557
        %3559 = vrot.lane.b32.xlu0 %v3286, 40
        %v3560 = vpop.permute.xlu0 %3559
        %3561 = vrot.lane.b32.xlu0 %v3288, 40
        %v3562 = vpop.permute.xlu0 %3561
        %3563 = vrot.lane.b32.xlu0 %v3290, 40
        %v3564 = vpop.permute.xlu0 %3563
        %3565 = vrot.lane.b32.xlu0 %v3292, 40
        %v3566 = vpop.permute.xlu0 %3565
        %3567 = vrot.lane.b32.xlu0 %v3294, 40
        %v3568 = vpop.permute.xlu0 %3567
        %3569 = vrot.lane.b32.xlu0 %v3296, 40
        %v3570 = vpop.permute.xlu0 %3569
        %3571 = vrot.lane.b32.xlu0 %v3298, 40
        %v3572 = vpop.permute.xlu0 %3571
        %3573 = vrot.lane.b32.xlu0 %v3300, 40
        %v3574 = vpop.permute.xlu0 %3573
        %3575 = vrot.lane.b32.xlu0 %v3302, 40
        %v3576 = vpop.permute.xlu0 %3575
        %3577 = vrot.lane.b32.xlu0 %v3304, 40
        %v3578 = vpop.permute.xlu0 %3577
        %3579 = vrot.lane.b32.xlu0 %v3306, 40
        %v3580 = vpop.permute.xlu0 %3579
        %3581 = vrot.lane.b32.xlu0 %v3308, 40
        %v3582 = vpop.permute.xlu0 %3581
        %3583 = vrot.lane.b32.xlu0 %v3310, 40
        %v3584 = vpop.permute.xlu0 %3583
        %3585 = vrot.lane.b32.xlu0 %v3312, 40
        %v3586 = vpop.permute.xlu0 %3585
        %3587 = vrot.lane.b32.xlu0 %v3314, 40
        %v3588 = vpop.permute.xlu0 %3587
        %3589 = vrot.lane.b32.xlu0 %v3316, 40
        %v3590 = vpop.permute.xlu0 %3589
        %3591 = vrot.lane.b32.xlu0 %v3318, 40
        %v3592 = vpop.permute.xlu0 %3591
        %3593 = vrot.lane.b32.xlu0 %v3320, 40
        %v3594 = vpop.permute.xlu0 %3593
        %3595 = vrot.lane.b32.xlu0 %v3532, 40
        %v3596 = vpop.permute.xlu0 %3595
        %3597 = vrot.lane.b32.xlu0 %v3534, 40
        %v3598 = vpop.permute.xlu0 %3597
        %3600 = vrot.lane.b32.xlu0 %v2866, 48
        %v3601 = vpop.permute.xlu0 %3600
        %3602 = vrot.lane.b32.xlu0 %v2867, 48
        %v3603 = vpop.permute.xlu0 %3602
        %3604 = vrot.lane.b32.xlu0 %v2868, 48
        %v3605 = vpop.permute.xlu0 %3604
        %3606 = vrot.lane.b32.xlu0 %v2869, 48
        %v3607 = vpop.permute.xlu0 %3606
        %3608 = vrot.lane.b32.xlu0 %v2870, 48
        %v3609 = vpop.permute.xlu0 %3608
        %3610 = vrot.lane.b32.xlu0 %v2871, 48
        %v3611 = vpop.permute.xlu0 %3610
        %3612 = vrot.lane.b32.xlu0 %v2872, 48
        %v3613 = vpop.permute.xlu0 %3612
        %3614 = vrot.lane.b32.xlu0 %v2873, 48
        %v3615 = vpop.permute.xlu0 %3614
        %3616 = vrot.lane.b32.xlu0 %v2874, 48
        %v3617 = vpop.permute.xlu0 %3616
        %3618 = vrot.lane.b32.xlu0 %v2875, 48
        %v3619 = vpop.permute.xlu0 %3618
        %3620 = vrot.lane.b32.xlu0 %v2876, 48
        %v3621 = vpop.permute.xlu0 %3620
        %3622 = vrot.lane.b32.xlu0 %v2877, 48
        %v3623 = vpop.permute.xlu0 %3622
        %3624 = vrot.lane.b32.xlu0 %v2878, 48
        %v3625 = vpop.permute.xlu0 %3624
        %3626 = vrot.lane.b32.xlu0 %v2879, 48
        %v3627 = vpop.permute.xlu0 %3626
        %3628 = vrot.lane.b32.xlu0 %v2880, 48
        %v3629 = vpop.permute.xlu0 %3628
        %3630 = vrot.lane.b32.xlu0 %v2881, 48
        %v3631 = vpop.permute.xlu0 %3630
        %3632 = vrot.lane.b32.xlu0 %v2882, 48
        %v3633 = vpop.permute.xlu0 %3632
        %3634 = vrot.lane.b32.xlu0 %v2883, 48
        %v3635 = vpop.permute.xlu0 %3634
        %3636 = vrot.lane.b32.xlu0 %v2884, 48
        %v3637 = vpop.permute.xlu0 %3636
        %3638 = vrot.lane.b32.xlu0 %v2885, 48
        %v3639 = vpop.permute.xlu0 %3638
        %3640 = vrot.lane.b32.xlu0 %v2886, 48
        %v3641 = vpop.permute.xlu0 %3640
        %3642 = vrot.lane.b32.xlu0 %v2887, 48
        %v3643 = vpop.permute.xlu0 %3642
        %3644 = vrot.lane.b32.xlu0 %v2888, 48
        %v3645 = vpop.permute.xlu0 %3644
        %3646 = vrot.lane.b32.xlu0 %v2889, 48
        %v3647 = vpop.permute.xlu0 %3646
        %3648 = vrot.lane.b32.xlu0 %v2890, 48
        %v3649 = vpop.permute.xlu0 %3648
        %3650 = vrot.lane.b32.xlu0 %v2891, 48
        %v3651 = vpop.permute.xlu0 %3650
        %3652 = vrot.lane.b32.xlu0 %v2892, 48
        %v3653 = vpop.permute.xlu0 %3652
        %3654 = vrot.lane.b32.xlu0 %v2893, 48
        %v3655 = vpop.permute.xlu0 %3654
        %3656 = vrot.lane.b32.xlu0 %v2894, 48
        %v3657 = vpop.permute.xlu0 %3656
        %3658 = vrot.lane.b32.xlu0 %v2895, 48
        %v3659 = vpop.permute.xlu0 %3658
        %3660 = vrot.lane.b32.xlu0 %v2896, 48
        %v3661 = vpop.permute.xlu0 %3660
        %3662 = vrot.lane.b32.xlu0 %v2897, 48
        %v3663 = vpop.permute.xlu0 %3662
        %v3664 = vshrl.u32 %v2896, 16
        %v3666 = vor.u32 %v3664, %v3464
        %v3668 = vshll.u32 %v2897, 16
        %v3670 = vrot.slane %v3668, 1
        %v3671 = vsel %vm739, %v3666, %v3670
        %v3672 = vshrl.u32 %v2897, 16
        %v3674 = vor.u32 %v3672, %v3670
        %v3676 = vshll.u32 %v2898, 16
        %v3678 = vrot.slane %v3676, 1
        %v3679 = vsel %vm739, %v3674, %v3678
        %3680 = vrot.lane.b32.xlu0 %v2942, 56
        %v3681 = vpop.permute.xlu0 %3680
        %3682 = vrot.lane.b32.xlu0 %v2950, 56
        %v3683 = vpop.permute.xlu0 %3682
        %3684 = vrot.lane.b32.xlu0 %v2958, 56
        %v3685 = vpop.permute.xlu0 %3684
        %3686 = vrot.lane.b32.xlu0 %v2966, 56
        %v3687 = vpop.permute.xlu0 %3686
        %3688 = vrot.lane.b32.xlu0 %v2974, 56
        %v3689 = vpop.permute.xlu0 %3688
        %3690 = vrot.lane.b32.xlu0 %v2982, 56
        %v3691 = vpop.permute.xlu0 %3690
        %3692 = vrot.lane.b32.xlu0 %v2990, 56
        %v3693 = vpop.permute.xlu0 %3692
        %3694 = vrot.lane.b32.xlu0 %v2998, 56
        %v3695 = vpop.permute.xlu0 %3694
        %3696 = vrot.lane.b32.xlu0 %v3006, 56
        %v3697 = vpop.permute.xlu0 %3696
        %3698 = vrot.lane.b32.xlu0 %v3014, 56
        %v3699 = vpop.permute.xlu0 %3698
        %3700 = vrot.lane.b32.xlu0 %v3022, 56
        %v3701 = vpop.permute.xlu0 %3700
        %3702 = vrot.lane.b32.xlu0 %v3030, 56
        %v3703 = vpop.permute.xlu0 %3702
        %3704 = vrot.lane.b32.xlu0 %v3038, 56
        %v3705 = vpop.permute.xlu0 %3704
        %3706 = vrot.lane.b32.xlu0 %v3046, 56
        %v3707 = vpop.permute.xlu0 %3706
        %3708 = vrot.lane.b32.xlu0 %v3054, 56
        %v3709 = vpop.permute.xlu0 %3708
        %3710 = vrot.lane.b32.xlu0 %v3062, 56
        %v3711 = vpop.permute.xlu0 %3710
        %3712 = vrot.lane.b32.xlu0 %v3070, 56
        %v3713 = vpop.permute.xlu0 %3712
        %3714 = vrot.lane.b32.xlu0 %v3078, 56
        %v3715 = vpop.permute.xlu0 %3714
        %3716 = vrot.lane.b32.xlu0 %v3086, 56
        %v3717 = vpop.permute.xlu0 %3716
        %3718 = vrot.lane.b32.xlu0 %v3094, 56
        %v3719 = vpop.permute.xlu0 %3718
        %3720 = vrot.lane.b32.xlu0 %v3102, 56
        %v3721 = vpop.permute.xlu0 %3720
        %3722 = vrot.lane.b32.xlu0 %v3110, 56
        %v3723 = vpop.permute.xlu0 %3722
        %3724 = vrot.lane.b32.xlu0 %v3118, 56
        %v3725 = vpop.permute.xlu0 %3724
        %3726 = vrot.lane.b32.xlu0 %v3126, 56
        %v3727 = vpop.permute.xlu0 %3726
        %3728 = vrot.lane.b32.xlu0 %v3134, 56
        %v3729 = vpop.permute.xlu0 %3728
        %3730 = vrot.lane.b32.xlu0 %v3142, 56
        %v3731 = vpop.permute.xlu0 %3730
        %3732 = vrot.lane.b32.xlu0 %v3150, 56
        %v3733 = vpop.permute.xlu0 %3732
        %3734 = vrot.lane.b32.xlu0 %v3158, 56
        %v3735 = vpop.permute.xlu0 %3734
        %3736 = vrot.lane.b32.xlu0 %v3457, 56
        %v3737 = vpop.permute.xlu0 %3736
        %3738 = vrot.lane.b32.xlu0 %v3465, 56
        %v3739 = vpop.permute.xlu0 %3738
        %3740 = vrot.lane.b32.xlu0 %v3671, 56
        %v3741 = vpop.permute.xlu0 %3740
        %3742 = vrot.lane.b32.xlu0 %v3679, 56
        %v3743 = vpop.permute.xlu0 %3742
        %v3745 = vrot.slane %v2897, 1
        %v3746 = vsel %vm1097, %v3533, %v3745
        %v3747 = vrot.slane %v2898, 1
        %v3748 = vsel %vm1097, %v3745, %v3747
        %3749 = vrot.lane.b32.xlu0 %v3266, 64
        %v3750 = vpop.permute.xlu0 %3749
        %3751 = vrot.lane.b32.xlu0 %v3268, 64
        %v3752 = vpop.permute.xlu0 %3751
        %3753 = vrot.lane.b32.xlu0 %v3270, 64
        %v3754 = vpop.permute.xlu0 %3753
        %3755 = vrot.lane.b32.xlu0 %v3272, 64
        %v3756 = vpop.permute.xlu0 %3755
        %3757 = vrot.lane.b32.xlu0 %v3274, 64
        %v3758 = vpop.permute.xlu0 %3757
        %3759 = vrot.lane.b32.xlu0 %v3276, 64
        %v3760 = vpop.permute.xlu0 %3759
        %3761 = vrot.lane.b32.xlu0 %v3278, 64
        %v3762 = vpop.permute.xlu0 %3761
        %3763 = vrot.lane.b32.xlu0 %v3280, 64
        %v3764 = vpop.permute.xlu0 %3763
        %3765 = vrot.lane.b32.xlu0 %v3282, 64
        %v3766 = vpop.permute.xlu0 %3765
        %3767 = vrot.lane.b32.xlu0 %v3284, 64
        %v3768 = vpop.permute.xlu0 %3767
        %3769 = vrot.lane.b32.xlu0 %v3286, 64
        %v3770 = vpop.permute.xlu0 %3769
        %3771 = vrot.lane.b32.xlu0 %v3288, 64
        %v3772 = vpop.permute.xlu0 %3771
        %3773 = vrot.lane.b32.xlu0 %v3290, 64
        %v3774 = vpop.permute.xlu0 %3773
        %3775 = vrot.lane.b32.xlu0 %v3292, 64
        %v3776 = vpop.permute.xlu0 %3775
        %3777 = vrot.lane.b32.xlu0 %v3294, 64
        %v3778 = vpop.permute.xlu0 %3777
        %3779 = vrot.lane.b32.xlu0 %v3296, 64
        %v3780 = vpop.permute.xlu0 %3779
        %3781 = vrot.lane.b32.xlu0 %v3298, 64
        %v3782 = vpop.permute.xlu0 %3781
        %3783 = vrot.lane.b32.xlu0 %v3300, 64
        %v3784 = vpop.permute.xlu0 %3783
        %3785 = vrot.lane.b32.xlu0 %v3302, 64
        %v3786 = vpop.permute.xlu0 %3785
        %3787 = vrot.lane.b32.xlu0 %v3304, 64
        %v3788 = vpop.permute.xlu0 %3787
        %3789 = vrot.lane.b32.xlu0 %v3306, 64
        %v3790 = vpop.permute.xlu0 %3789
        %3791 = vrot.lane.b32.xlu0 %v3308, 64
        %v3792 = vpop.permute.xlu0 %3791
        %3793 = vrot.lane.b32.xlu0 %v3310, 64
        %v3794 = vpop.permute.xlu0 %3793
        %3795 = vrot.lane.b32.xlu0 %v3312, 64
        %v3796 = vpop.permute.xlu0 %3795
        %3797 = vrot.lane.b32.xlu0 %v3314, 64
        %v3798 = vpop.permute.xlu0 %3797
        %3799 = vrot.lane.b32.xlu0 %v3316, 64
        %v3800 = vpop.permute.xlu0 %3799
        %3801 = vrot.lane.b32.xlu0 %v3318, 64
        %v3802 = vpop.permute.xlu0 %3801
        %3803 = vrot.lane.b32.xlu0 %v3320, 64
        %v3804 = vpop.permute.xlu0 %3803
        %3805 = vrot.lane.b32.xlu0 %v3532, 64
        %v3806 = vpop.permute.xlu0 %3805
        %3807 = vrot.lane.b32.xlu0 %v3534, 64
        %v3808 = vpop.permute.xlu0 %3807
        %3809 = vrot.lane.b32.xlu0 %v3746, 64
        %v3810 = vpop.permute.xlu0 %3809
        %3811 = vrot.lane.b32.xlu0 %v3748, 64
        %v3812 = vpop.permute.xlu0 %3811
        %v3814 = vsel %vm1719, %v2862, %v3160
        %v3816 = vsel %vm1719, %v2863, %v3162
        %v3818 = vsel %vm1719, %v2864, %v3164
        %v3820 = vsel %vm1719, %v2865, %v3166
        %v3822 = vsel %vm1719, %v2866, %v3168
        %v3824 = vsel %vm1719, %v2867, %v3170
        %v3826 = vsel %vm1719, %v2868, %v3172
        %v3828 = vsel %vm1719, %v2869, %v3174
        %v3830 = vsel %vm1719, %v2870, %v3176
        %v3832 = vsel %vm1719, %v2871, %v3178
        %v3834 = vsel %vm1719, %v2872, %v3180
        %v3836 = vsel %vm1719, %v2873, %v3182
        %v3838 = vsel %vm1719, %v2874, %v3184
        %v3840 = vsel %vm1719, %v2875, %v3186
        %v3842 = vsel %vm1719, %v2876, %v3188
        %v3844 = vsel %vm1719, %v2877, %v3190
        %v3846 = vsel %vm1719, %v2878, %v3192
        %v3848 = vsel %vm1719, %v2879, %v3194
        %v3850 = vsel %vm1719, %v2880, %v3196
        %v3852 = vsel %vm1719, %v2881, %v3198
        %v3854 = vsel %vm1719, %v2882, %v3200
        %v3856 = vsel %vm1719, %v2883, %v3202
        %v3858 = vsel %vm1719, %v2884, %v3204
        %v3860 = vsel %vm1719, %v2885, %v3206
        %v3862 = vsel %vm1719, %v2886, %v3208
        %v3864 = vsel %vm1719, %v2887, %v3210
        %v3866 = vsel %vm1719, %v2888, %v3212
        %v3868 = vsel %vm1719, %v2889, %v3214
        %v3870 = vsel %vm1719, %v2890, %v3216
        %v3872 = vsel %vm1719, %v2891, %v3218
        %v3874 = vsel %vm1719, %v2892, %v3220
        %v3876 = vsel %vm1719, %v2893, %v3222
        %v3878 = vsel %vm1849, %v3814, %v3322
        %v3880 = vsel %vm1849, %v3816, %v3324
        %v3882 = vsel %vm1849, %v3818, %v3326
        %v3884 = vsel %vm1849, %v3820, %v3328
        %v3886 = vsel %vm1849, %v3822, %v3330
        %v3888 = vsel %vm1849, %v3824, %v3332
        %v3890 = vsel %vm1849, %v3826, %v3334
        %v3892 = vsel %vm1849, %v3828, %v3336
        %v3894 = vsel %vm1849, %v3830, %v3338
        %v3896 = vsel %vm1849, %v3832, %v3340
        %v3898 = vsel %vm1849, %v3834, %v3342
        %v3900 = vsel %vm1849, %v3836, %v3344
        %v3902 = vsel %vm1849, %v3838, %v3346
        %v3904 = vsel %vm1849, %v3840, %v3348
        %v3906 = vsel %vm1849, %v3842, %v3350
        %v3908 = vsel %vm1849, %v3844, %v3352
        %v3910 = vsel %vm1849, %v3846, %v3354
        %v3912 = vsel %vm1849, %v3848, %v3356
        %v3914 = vsel %vm1849, %v3850, %v3358
        %v3916 = vsel %vm1849, %v3852, %v3360
        %v3918 = vsel %vm1849, %v3854, %v3362
        %v3920 = vsel %vm1849, %v3856, %v3364
        %v3922 = vsel %vm1849, %v3858, %v3366
        %v3924 = vsel %vm1849, %v3860, %v3368
        %v3926 = vsel %vm1849, %v3862, %v3370
        %v3928 = vsel %vm1849, %v3864, %v3372
        %v3930 = vsel %vm1849, %v3866, %v3374
        %v3932 = vsel %vm1849, %v3868, %v3376
        %v3934 = vsel %vm1849, %v3870, %v3378
        %v3936 = vsel %vm1849, %v3872, %v3380
        %v3938 = vsel %vm1849, %v3874, %v3382
        %v3940 = vsel %vm1849, %v3876, %v3384
        %v3942 = vsel %vm1979, %v3878, %v3387
        %v3944 = vsel %vm1979, %v3880, %v3389
        %v3946 = vsel %vm1979, %v3882, %v3391
        %v3948 = vsel %vm1979, %v3884, %v3393
        %v3950 = vsel %vm1979, %v3886, %v3395
        %v3952 = vsel %vm1979, %v3888, %v3397
        %v3954 = vsel %vm1979, %v3890, %v3399
        %v3956 = vsel %vm1979, %v3892, %v3401
        %v3958 = vsel %vm1979, %v3894, %v3403
        %v3960 = vsel %vm1979, %v3896, %v3405
        %v3962 = vsel %vm1979, %v3898, %v3407
        %v3964 = vsel %vm1979, %v3900, %v3409
        %v3966 = vsel %vm1979, %v3902, %v3411
        %v3968 = vsel %vm1979, %v3904, %v3413
        %v3970 = vsel %vm1979, %v3906, %v3415
        %v3972 = vsel %vm1979, %v3908, %v3417
        %v3974 = vsel %vm1979, %v3910, %v3419
        %v3976 = vsel %vm1979, %v3912, %v3421
        %v3978 = vsel %vm1979, %v3914, %v3423
        %v3980 = vsel %vm1979, %v3916, %v3425
        %v3982 = vsel %vm1979, %v3918, %v3427
        %v3984 = vsel %vm1979, %v3920, %v3429
        %v3986 = vsel %vm1979, %v3922, %v3431
        %v3988 = vsel %vm1979, %v3924, %v3433
        %v3990 = vsel %vm1979, %v3926, %v3435
        %v3992 = vsel %vm1979, %v3928, %v3437
        %v3994 = vsel %vm1979, %v3930, %v3439
        %v3996 = vsel %vm1979, %v3932, %v3441
        %v3998 = vsel %vm1979, %v3934, %v3443
        %v4000 = vsel %vm1979, %v3936, %v3445
        %v4002 = vsel %vm1979, %v3938, %v3447
        %v4004 = vsel %vm1979, %v3940, %v3449
        %v4006 = vsel %vm2109, %v3942, %v3467
        %v4008 = vsel %vm2109, %v3944, %v3469
        %v4010 = vsel %vm2109, %v3946, %v3471
        %v4012 = vsel %vm2109, %v3948, %v3473
        %v4014 = vsel %vm2109, %v3950, %v3475
        %v4016 = vsel %vm2109, %v3952, %v3477
        %v4018 = vsel %vm2109, %v3954, %v3479
        %v4020 = vsel %vm2109, %v3956, %v3481
        %v4022 = vsel %vm2109, %v3958, %v3483
        %v4024 = vsel %vm2109, %v3960, %v3485
        %v4026 = vsel %vm2109, %v3962, %v3487
        %v4028 = vsel %vm2109, %v3964, %v3489
        %v4030 = vsel %vm2109, %v3966, %v3491
        %v4032 = vsel %vm2109, %v3968, %v3493
        %v4034 = vsel %vm2109, %v3970, %v3495
        %v4036 = vsel %vm2109, %v3972, %v3497
        %v4038 = vsel %vm2109, %v3974, %v3499
        %v4040 = vsel %vm2109, %v3976, %v3501
        %v4042 = vsel %vm2109, %v3978, %v3503
        %v4044 = vsel %vm2109, %v3980, %v3505
        %v4046 = vsel %vm2109, %v3982, %v3507
        %v4048 = vsel %vm2109, %v3984, %v3509
        %v4050 = vsel %vm2109, %v3986, %v3511
        %v4052 = vsel %vm2109, %v3988, %v3513
        %v4054 = vsel %vm2109, %v3990, %v3515
        %v4056 = vsel %vm2109, %v3992, %v3517
        %v4058 = vsel %vm2109, %v3994, %v3519
        %v4060 = vsel %vm2109, %v3996, %v3521
        %v4062 = vsel %vm2109, %v3998, %v3523
        %v4064 = vsel %vm2109, %v4000, %v3525
        %v4066 = vsel %vm2109, %v4002, %v3527
        %v4068 = vsel %vm2109, %v4004, %v3529
        %vm4069 = vcmask 326656
        %v4071 = vsel %vm4069, %v4006, %v3536
        %v4073 = vsel %vm4069, %v4008, %v3538
        %v4075 = vsel %vm4069, %v4010, %v3540
        %v4077 = vsel %vm4069, %v4012, %v3542
        %v4079 = vsel %vm4069, %v4014, %v3544
        %v4081 = vsel %vm4069, %v4016, %v3546
        %v4083 = vsel %vm4069, %v4018, %v3548
        %v4085 = vsel %vm4069, %v4020, %v3550
        %v4087 = vsel %vm4069, %v4022, %v3552
        %v4089 = vsel %vm4069, %v4024, %v3554
        %v4091 = vsel %vm4069, %v4026, %v3556
        %v4093 = vsel %vm4069, %v4028, %v3558
        %v4095 = vsel %vm4069, %v4030, %v3560
        %v4097 = vsel %vm4069, %v4032, %v3562
        %v4099 = vsel %vm4069, %v4034, %v3564
        %v4101 = vsel %vm4069, %v4036, %v3566
        %v4103 = vsel %vm4069, %v4038, %v3568
        %v4105 = vsel %vm4069, %v4040, %v3570
        %v4107 = vsel %vm4069, %v4042, %v3572
        %v4109 = vsel %vm4069, %v4044, %v3574
        %v4111 = vsel %vm4069, %v4046, %v3576
        %v4113 = vsel %vm4069, %v4048, %v3578
        %v4115 = vsel %vm4069, %v4050, %v3580
        %v4117 = vsel %vm4069, %v4052, %v3582
        %v4119 = vsel %vm4069, %v4054, %v3584
        %v4121 = vsel %vm4069, %v4056, %v3586
        %v4123 = vsel %vm4069, %v4058, %v3588
        %v4125 = vsel %vm4069, %v4060, %v3590
        %v4127 = vsel %vm4069, %v4062, %v3592
        %v4129 = vsel %vm4069, %v4064, %v3594
        %v4131 = vsel %vm4069, %v4066, %v3596
        %v4133 = vsel %vm4069, %v4068, %v3598
        %vm4134 = vcmask 392192
        %v4136 = vsel %vm4134, %v4071, %v3601
        %v4138 = vsel %vm4134, %v4073, %v3603
        %v4140 = vsel %vm4134, %v4075, %v3605
        %v4142 = vsel %vm4134, %v4077, %v3607
        %v4144 = vsel %vm4134, %v4079, %v3609
        %v4146 = vsel %vm4134, %v4081, %v3611
        %v4148 = vsel %vm4134, %v4083, %v3613
        %v4150 = vsel %vm4134, %v4085, %v3615
        %v4152 = vsel %vm4134, %v4087, %v3617
        %v4154 = vsel %vm4134, %v4089, %v3619
        %v4156 = vsel %vm4134, %v4091, %v3621
        %v4158 = vsel %vm4134, %v4093, %v3623
        %v4160 = vsel %vm4134, %v4095, %v3625
        %v4162 = vsel %vm4134, %v4097, %v3627
        %v4164 = vsel %vm4134, %v4099, %v3629
        %v4166 = vsel %vm4134, %v4101, %v3631
        %v4168 = vsel %vm4134, %v4103, %v3633
        %v4170 = vsel %vm4134, %v4105, %v3635
        %v4172 = vsel %vm4134, %v4107, %v3637
        %v4174 = vsel %vm4134, %v4109, %v3639
        %v4176 = vsel %vm4134, %v4111, %v3641
        %v4178 = vsel %vm4134, %v4113, %v3643
        %v4180 = vsel %vm4134, %v4115, %v3645
        %v4182 = vsel %vm4134, %v4117, %v3647
        %v4184 = vsel %vm4134, %v4119, %v3649
        %v4186 = vsel %vm4134, %v4121, %v3651
        %v4188 = vsel %vm4134, %v4123, %v3653
        %v4190 = vsel %vm4134, %v4125, %v3655
        %v4192 = vsel %vm4134, %v4127, %v3657
        %v4194 = vsel %vm4134, %v4129, %v3659
        %v4196 = vsel %vm4134, %v4131, %v3661
        %v4198 = vsel %vm4134, %v4133, %v3663
        %vm4199 = vcmask 457728
        %v4201 = vsel %vm4199, %v4136, %v3681
        %v4203 = vsel %vm4199, %v4138, %v3683
        %v4205 = vsel %vm4199, %v4140, %v3685
        %v4207 = vsel %vm4199, %v4142, %v3687
        %v4209 = vsel %vm4199, %v4144, %v3689
        %v4211 = vsel %vm4199, %v4146, %v3691
        %v4213 = vsel %vm4199, %v4148, %v3693
        %v4215 = vsel %vm4199, %v4150, %v3695
        %v4217 = vsel %vm4199, %v4152, %v3697
        %v4219 = vsel %vm4199, %v4154, %v3699
        %v4221 = vsel %vm4199, %v4156, %v3701
        %v4223 = vsel %vm4199, %v4158, %v3703
        %v4225 = vsel %vm4199, %v4160, %v3705
        %v4227 = vsel %vm4199, %v4162, %v3707
        %v4229 = vsel %vm4199, %v4164, %v3709
        %v4231 = vsel %vm4199, %v4166, %v3711
        %v4233 = vsel %vm4199, %v4168, %v3713
        %v4235 = vsel %vm4199, %v4170, %v3715
        %v4237 = vsel %vm4199, %v4172, %v3717
        %v4239 = vsel %vm4199, %v4174, %v3719
        %v4241 = vsel %vm4199, %v4176, %v3721
        %v4243 = vsel %vm4199, %v4178, %v3723
        %v4245 = vsel %vm4199, %v4180, %v3725
        %v4247 = vsel %vm4199, %v4182, %v3727
        %v4249 = vsel %vm4199, %v4184, %v3729
        %v4251 = vsel %vm4199, %v4186, %v3731
        %v4253 = vsel %vm4199, %v4188, %v3733
        %v4255 = vsel %vm4199, %v4190, %v3735
        %v4257 = vsel %vm4199, %v4192, %v3737
        %v4259 = vsel %vm4199, %v4194, %v3739
        %v4261 = vsel %vm4199, %v4196, %v3741
        %v4263 = vsel %vm4199, %v4198, %v3743
        %vm4264 = vcmask 523264
        %v4266 = vsel %vm4264, %v4201, %v3750
        %v4268 = vsel %vm4264, %v4203, %v3752
        %v4270 = vsel %vm4264, %v4205, %v3754
        %v4272 = vsel %vm4264, %v4207, %v3756
        %v4274 = vsel %vm4264, %v4209, %v3758
        %v4276 = vsel %vm4264, %v4211, %v3760
        %v4278 = vsel %vm4264, %v4213, %v3762
        %v4280 = vsel %vm4264, %v4215, %v3764
        %v4282 = vsel %vm4264, %v4217, %v3766
        %v4284 = vsel %vm4264, %v4219, %v3768
        %v4286 = vsel %vm4264, %v4221, %v3770
        %v4288 = vsel %vm4264, %v4223, %v3772
        %v4290 = vsel %vm4264, %v4225, %v3774
        %v4292 = vsel %vm4264, %v4227, %v3776
        %v4294 = vsel %vm4264, %v4229, %v3778
        %v4296 = vsel %vm4264, %v4231, %v3780
        %v4298 = vsel %vm4264, %v4233, %v3782
        %v4300 = vsel %vm4264, %v4235, %v3784
        %v4302 = vsel %vm4264, %v4237, %v3786
        %v4304 = vsel %vm4264, %v4239, %v3788
        %v4306 = vsel %vm4264, %v4241, %v3790
        %v4308 = vsel %vm4264, %v4243, %v3792
        %v4310 = vsel %vm4264, %v4245, %v3794
        %v4312 = vsel %vm4264, %v4247, %v3796
        %v4314 = vsel %vm4264, %v4249, %v3798
        %v4316 = vsel %vm4264, %v4251, %v3800
        %v4318 = vsel %vm4264, %v4253, %v3802
        %v4320 = vsel %vm4264, %v4255, %v3804
        %v4322 = vsel %vm4264, %v4257, %v3806
        %v4324 = vsel %vm4264, %v4259, %v3808
        %v4326 = vsel %vm4264, %v4261, %v3810
        %v4328 = vsel %vm4264, %v4263, %v3812
        %v4330 = vlaneseq
        %v4331 = vshrl.u32 %v4330, 7
        %v4332 = vsub.s32 0, %v4331
        %v4333 = vrot.slane %v2578, %v4332
        %v4344 = vunpack.c.l.b16 %v2569
        %v4345 = vunpack.c.l.b16 %v2570
        %v4346 = vunpack.c.l.b16 %v2571
        %v4347 = vunpack.c.l.b16 %v2572
        %v4348 = vunpack.c.l.b16 %v2573
        %v4349 = vunpack.c.l.b16 %v2574
        %v4350 = vunpack.c.l.b16 %v2575
        %v4351 = vunpack.c.l.b16 %v2576
        %v4352 = vunpack.c.l.b16 %v2577
        %v4353 = vpack.c.b16 %v4345, %v4344
        %v4354 = vpack.c.b16 %v4347, %v4346
        %v4355 = vpack.c.b16 %v4349, %v4348
        %v4356 = vpack.c.b16 %v4351, %v4350
        %v4357 = vpack.c.b16 %v4352, %v4352
        %vm4362 = vcmask 588800
        %v4363 = vsel %vm4362, %v4266, 0
        %v4365 = vsel %vm4362, %v4268, 0
        %v4367 = vsel %vm4362, %v4270, 0
        %v4369 = vsel %vm4362, %v4272, 0
        %v4371 = vsel %vm4362, %v4274, 0
        %v4373 = vsel %vm4362, %v4276, 0
        %v4375 = vsel %vm4362, %v4278, 0
        %v4377 = vsel %vm4362, %v4280, 0
        %v4379 = vsel %vm4362, %v4282, 0
        %v4381 = vsel %vm4362, %v4284, 0
        %v4383 = vsel %vm4362, %v4286, 0
        %v4385 = vsel %vm4362, %v4288, 0
        %v4387 = vsel %vm4362, %v4290, 0
        %v4389 = vsel %vm4362, %v4292, 0
        %v4391 = vsel %vm4362, %v4294, 0
        %v4393 = vsel %vm4362, %v4296, 0
        %v4395 = vsel %vm4362, %v4298, 0
        %v4397 = vsel %vm4362, %v4300, 0
        %v4399 = vsel %vm4362, %v4302, 0
        %v4401 = vsel %vm4362, %v4304, 0
        %v4403 = vsel %vm4362, %v4306, 0
        %v4405 = vsel %vm4362, %v4308, 0
        %v4407 = vsel %vm4362, %v4310, 0
        %v4409 = vsel %vm4362, %v4312, 0
        %v4411 = vsel %vm4362, %v4314, 0
        %v4413 = vsel %vm4362, %v4316, 0
        %v4415 = vsel %vm4362, %v4318, 0
        %v4417 = vsel %vm4362, %v4320, 0
        %v4419 = vsel %vm4362, %v4322, 0
        %v4421 = vsel %vm4362, %v4324, 0
        %v4423 = vsel %vm4362, %v4326, 0
        %v4425 = vsel %vm4362, %v4328, 0
        %vm4427 = vcmask 1043456
        %v4429 = vsel %vm4427, %v4357, 0
        %4431 = vmatprep.subr.bf16.mxu0 0
        %4432 = vmatpush1.bf16.msra.mxu0 %v4353
        %4433 = vmatprep.subr.bf16.mxu0 0
        %4434 = vmatpush1.bf16.msra.mxu0 %v4354
        %4435 = vmatprep.subr.bf16.mxu0 0
        %4436 = vmatpush1.bf16.msra.mxu0 %v4355
        %4437 = vmatprep.subr.bf16.mxu0 0
        %4438 = vmatpush1.bf16.msra.mxu0 %v4356
        %4439 = vmatprep.subr.bf16.mxu0 0
        %4440 = vmatpush1.bf16.msra.mxu0 %v4429
        %4441 = vmatprep.subr.bf16.mxu0 0
        %4442 = vmatpush1.bf16.msra.mxu0 0
        %4443 = vmatprep.subr.bf16.mxu0 0
        %4444 = vmatpush1.bf16.msra.mxu0 0
        %4445 = vmatprep.subr.bf16.mxu0 0
        %4446 = vmatpush1.bf16.msra.mxu0 0
        %4447 = vmatprep.subr.bf16.mxu0 0
        %4448 = vmatpush1.bf16.msra.mxu0 0
        %4449 = vmatprep.subr.bf16.mxu0 0
        %4450 = vmatpush1.bf16.msra.mxu0 0
        %4451 = vmatprep.subr.bf16.mxu0 0
        %4452 = vmatpush1.bf16.msra.mxu0 0
        %4453 = vmatprep.subr.bf16.mxu0 0
        %4454 = vmatpush1.bf16.msra.mxu0 0
        %4455 = vmatprep.subr.bf16.mxu0 0
        %4456 = vmatpush1.bf16.msra.mxu0 0
        %4457 = vmatprep.subr.bf16.mxu0 0
        %4458 = vmatpush1.bf16.msra.mxu0 0
        %4459 = vmatprep.subr.bf16.mxu0 0
        %4460 = vmatpush1.bf16.msra.mxu0 0
        %4461 = vmatprep.subr.bf16.mxu0 0
        %4462 = vmatpush1.bf16.msra.mxu0 0
        %4463 = vmatprep.mubr.bf16.mxu0 0
        %4464 = vmatmul.mubr.bf16.gmra.mrb[0].mxu0 %v4363
        %v4465 = vpop.f32.mrb[0].mxu0
        %v4466 = vadd.f32 %v4333, %v4465
        %v4467 = vpop.f32.mrb[0].mxu0
        %v4468 = vpop.f32.mrb[0].mxu0
        %v4469 = vadd.f32 %v4333, %v4468
        %v4470 = vpop.f32.mrb[0].mxu0
        %4471 = vmatprep.mubr.bf16.mxu0 0
        %4472 = vmatmul.mubr.bf16.gmra.mrb[0].mxu0 %v4365
        %v4473 = vpop.f32.mrb[0].mxu0
        %v4474 = vpop.f32.mrb[0].mxu0
        %v4475 = vpop.f32.mrb[0].mxu0
        %v4476 = vpop.f32.mrb[0].mxu0
        %4477 = vmatprep.mubr.bf16.mxu0 0
        %4478 = vmatmul.mubr.bf16.gmra.mrb[0].mxu0 %v4367
        %v4479 = vpop.f32.mrb[0].mxu0
        %v4480 = vadd.f32 %v4333, %v4479
        %v4481 = vpop.f32.mrb[0].mxu0
        %v4482 = vpop.f32.mrb[0].mxu0
        %v4483 = vadd.f32 %v4333, %v4482
        %v4484 = vpop.f32.mrb[0].mxu0
        %4485 = vmatprep.mubr.bf16.mxu0 0
        %4486 = vmatmul.mubr.bf16.gmra.mrb[0].mxu0 %v4369
        %v4487 = vpop.f32.mrb[0].mxu0
        %v4488 = vpop.f32.mrb[0].mxu0
        %v4489 = vpop.f32.mrb[0].mxu0
        %v4490 = vpop.f32.mrb[0].mxu0
        %4491 = vmatprep.mubr.bf16.mxu0 0
        %4492 = vmatmul.mubr.bf16.gmra.mrb[0].mxu0 %v4371
        %v4493 = vpop.f32.mrb[0].mxu0
        %v4494 = vadd.f32 %v4333, %v4493
        %v4495 = vpop.f32.mrb[0].mxu0
        %v4496 = vpop.f32.mrb[0].mxu0
        %v4497 = vadd.f32 %v4333, %v4496
        %v4498 = vpop.f32.mrb[0].mxu0
        %4499 = vmatprep.mubr.bf16.mxu0 0
        %4500 = vmatmul.mubr.bf16.gmra.mrb[0].mxu0 %v4373
        %v4501 = vpop.f32.mrb[0].mxu0
        %v4502 = vpop.f32.mrb[0].mxu0
        %v4503 = vpop.f32.mrb[0].mxu0
        %v4504 = vpop.f32.mrb[0].mxu0
        %4505 = vmatprep.mubr.bf16.mxu0 0
        %4506 = vmatmul.mubr.bf16.gmra.mrb[0].mxu0 %v4375
        %v4507 = vpop.f32.mrb[0].mxu0
        %v4508 = vadd.f32 %v4333, %v4507
        %v4509 = vpop.f32.mrb[0].mxu0
        %v4510 = vpop.f32.mrb[0].mxu0
        %v4511 = vadd.f32 %v4333, %v4510
        %v4512 = vpop.f32.mrb[0].mxu0
        %4513 = vmatprep.mubr.bf16.mxu0 0
        %4514 = vmatmul.mubr.bf16.gmra.mrb[0].mxu0 %v4377
        %v4515 = vpop.f32.mrb[0].mxu0
        %v4516 = vpop.f32.mrb[0].mxu0
        %v4517 = vpop.f32.mrb[0].mxu0
        %v4518 = vpop.f32.mrb[0].mxu0
        %4519 = vmatprep.mubr.bf16.mxu0 0
        %4520 = vmatmul.mubr.bf16.gmra.mrb[0].mxu0 %v4379
        %v4521 = vpop.f32.mrb[0].mxu0
        %v4522 = vadd.f32 %v4333, %v4521
        %v4523 = vpop.f32.mrb[0].mxu0
        %v4524 = vpop.f32.mrb[0].mxu0
        %v4525 = vadd.f32 %v4333, %v4524
        %v4526 = vpop.f32.mrb[0].mxu0
        %4527 = vmatprep.mubr.bf16.mxu0 0
        %4528 = vmatmul.mubr.bf16.gmra.mrb[0].mxu0 %v4381
        %v4529 = vpop.f32.mrb[0].mxu0
        %v4530 = vpop.f32.mrb[0].mxu0
        %v4531 = vpop.f32.mrb[0].mxu0
        %v4532 = vpop.f32.mrb[0].mxu0
        %4533 = vmatprep.mubr.bf16.mxu0 0
        %4534 = vmatmul.mubr.bf16.gmra.mrb[0].mxu0 %v4383
        %v4535 = vpop.f32.mrb[0].mxu0
        %v4536 = vadd.f32 %v4333, %v4535
        %v4537 = vpop.f32.mrb[0].mxu0
        %v4538 = vpop.f32.mrb[0].mxu0
        %v4539 = vadd.f32 %v4333, %v4538
        %v4540 = vpop.f32.mrb[0].mxu0
        %4541 = vmatprep.mubr.bf16.mxu0 0
        %4542 = vmatmul.mubr.bf16.gmra.mrb[0].mxu0 %v4385
        %v4543 = vpop.f32.mrb[0].mxu0
        %v4544 = vpop.f32.mrb[0].mxu0
        %v4545 = vpop.f32.mrb[0].mxu0
        %v4546 = vpop.f32.mrb[0].mxu0
        %4547 = vmatprep.mubr.bf16.mxu0 0
        %4548 = vmatmul.mubr.bf16.gmra.mrb[0].mxu0 %v4387
        %v4549 = vpop.f32.mrb[0].mxu0
        %v4550 = vadd.f32 %v4333, %v4549
        %v4551 = vpop.f32.mrb[0].mxu0
        %v4552 = vpop.f32.mrb[0].mxu0
        %v4553 = vadd.f32 %v4333, %v4552
        %v4554 = vpop.f32.mrb[0].mxu0
        %4555 = vmatprep.mubr.bf16.mxu0 0
        %4556 = vmatmul.mubr.bf16.gmra.mrb[0].mxu0 %v4389
        %v4557 = vpop.f32.mrb[0].mxu0
        %v4558 = vpop.f32.mrb[0].mxu0
        %v4559 = vpop.f32.mrb[0].mxu0
        %v4560 = vpop.f32.mrb[0].mxu0
        %4561 = vmatprep.mubr.bf16.mxu0 0
        %4562 = vmatmul.mubr.bf16.gmra.mrb[0].mxu0 %v4391
        %v4563 = vpop.f32.mrb[0].mxu0
        %v4564 = vadd.f32 %v4333, %v4563
        %v4565 = vpop.f32.mrb[0].mxu0
        %v4566 = vpop.f32.mrb[0].mxu0
        %v4567 = vadd.f32 %v4333, %v4566
        %v4568 = vpop.f32.mrb[0].mxu0
        %4569 = vmatprep.mubr.bf16.mxu0 0
        %4570 = vmatmul.mubr.bf16.gmra.mrb[0].mxu0 %v4393
        %v4571 = vpop.f32.mrb[0].mxu0
        %v4572 = vpop.f32.mrb[0].mxu0
        %v4573 = vpop.f32.mrb[0].mxu0
        %v4574 = vpop.f32.mrb[0].mxu0
        %4575 = vmatprep.mubr.bf16.mxu0 0
        %4576 = vmatmul.mubr.bf16.gmra.mrb[0].mxu0 %v4395
        %v4577 = vpop.f32.mrb[0].mxu0
        %v4578 = vadd.f32 %v4333, %v4577
        %v4579 = vpop.f32.mrb[0].mxu0
        %v4580 = vpop.f32.mrb[0].mxu0
        %v4581 = vadd.f32 %v4333, %v4580
        %v4582 = vpop.f32.mrb[0].mxu0
        %4583 = vmatprep.mubr.bf16.mxu0 0
        %4584 = vmatmul.mubr.bf16.gmra.mrb[0].mxu0 %v4397
        %v4585 = vpop.f32.mrb[0].mxu0
        %v4586 = vpop.f32.mrb[0].mxu0
        %v4587 = vpop.f32.mrb[0].mxu0
        %v4588 = vpop.f32.mrb[0].mxu0
        %4589 = vmatprep.mubr.bf16.mxu0 0
        %4590 = vmatmul.mubr.bf16.gmra.mrb[0].mxu0 %v4399
        %v4591 = vpop.f32.mrb[0].mxu0
        %v4592 = vadd.f32 %v4333, %v4591
        %v4593 = vpop.f32.mrb[0].mxu0
        %v4594 = vpop.f32.mrb[0].mxu0
        %v4595 = vadd.f32 %v4333, %v4594
        %v4596 = vpop.f32.mrb[0].mxu0
        %4597 = vmatprep.mubr.bf16.mxu0 0
        %4598 = vmatmul.mubr.bf16.gmra.mrb[0].mxu0 %v4401
        %v4599 = vpop.f32.mrb[0].mxu0
        %v4600 = vpop.f32.mrb[0].mxu0
        %v4601 = vpop.f32.mrb[0].mxu0
        %v4602 = vpop.f32.mrb[0].mxu0
        %4603 = vmatprep.mubr.bf16.mxu0 0
        %4604 = vmatmul.mubr.bf16.gmra.mrb[0].mxu0 %v4403
        %v4605 = vpop.f32.mrb[0].mxu0
        %v4606 = vadd.f32 %v4333, %v4605
        %v4607 = vpop.f32.mrb[0].mxu0
        %v4608 = vpop.f32.mrb[0].mxu0
        %v4609 = vadd.f32 %v4333, %v4608
        %v4610 = vpop.f32.mrb[0].mxu0
        %4611 = vmatprep.mubr.bf16.mxu0 0
        %4612 = vmatmul.mubr.bf16.gmra.mrb[0].mxu0 %v4405
        %v4613 = vpop.f32.mrb[0].mxu0
        %v4614 = vpop.f32.mrb[0].mxu0
        %v4615 = vpop.f32.mrb[0].mxu0
        %v4616 = vpop.f32.mrb[0].mxu0
        %4617 = vmatprep.mubr.bf16.mxu0 0
        %4618 = vmatmul.mubr.bf16.gmra.mrb[0].mxu0 %v4407
        %v4619 = vpop.f32.mrb[0].mxu0
        %v4620 = vadd.f32 %v4333, %v4619
        %v4621 = vpop.f32.mrb[0].mxu0
        %v4622 = vpop.f32.mrb[0].mxu0
        %v4623 = vadd.f32 %v4333, %v4622
        %v4624 = vpop.f32.mrb[0].mxu0
        %4625 = vmatprep.mubr.bf16.mxu0 0
        %4626 = vmatmul.mubr.bf16.gmra.mrb[0].mxu0 %v4409
        %v4627 = vpop.f32.mrb[0].mxu0
        %v4628 = vpop.f32.mrb[0].mxu0
        %v4629 = vpop.f32.mrb[0].mxu0
        %v4630 = vpop.f32.mrb[0].mxu0
        %4631 = vmatprep.mubr.bf16.mxu0 0
        %4632 = vmatmul.mubr.bf16.gmra.mrb[0].mxu0 %v4411
        %v4633 = vpop.f32.mrb[0].mxu0
        %v4634 = vadd.f32 %v4333, %v4633
        %v4635 = vpop.f32.mrb[0].mxu0
        %v4636 = vpop.f32.mrb[0].mxu0
        %v4637 = vadd.f32 %v4333, %v4636
        %v4638 = vpop.f32.mrb[0].mxu0
        %4639 = vmatprep.mubr.bf16.mxu0 0
        %4640 = vmatmul.mubr.bf16.gmra.mrb[0].mxu0 %v4413
        %v4641 = vpop.f32.mrb[0].mxu0
        %v4642 = vpop.f32.mrb[0].mxu0
        %v4643 = vpop.f32.mrb[0].mxu0
        %v4644 = vpop.f32.mrb[0].mxu0
        %4645 = vmatprep.mubr.bf16.mxu0 0
        %4646 = vmatmul.mubr.bf16.gmra.mrb[0].mxu0 %v4415
        %v4647 = vpop.f32.mrb[0].mxu0
        %v4648 = vadd.f32 %v4333, %v4647
        %v4649 = vpop.f32.mrb[0].mxu0
        %v4650 = vpop.f32.mrb[0].mxu0
        %v4651 = vadd.f32 %v4333, %v4650
        %v4652 = vpop.f32.mrb[0].mxu0
        %4653 = vmatprep.mubr.bf16.mxu0 0
        %4654 = vmatmul.mubr.bf16.gmra.mrb[0].mxu0 %v4417
        %v4655 = vpop.f32.mrb[0].mxu0
        %v4656 = vpop.f32.mrb[0].mxu0
        %v4657 = vpop.f32.mrb[0].mxu0
        %v4658 = vpop.f32.mrb[0].mxu0
        %4659 = vmatprep.mubr.bf16.mxu0 0
        %4660 = vmatmul.mubr.bf16.gmra.mrb[0].mxu0 %v4419
        %v4661 = vpop.f32.mrb[0].mxu0
        %v4662 = vadd.f32 %v4333, %v4661
        %v4663 = vpop.f32.mrb[0].mxu0
        %v4664 = vpop.f32.mrb[0].mxu0
        %v4665 = vadd.f32 %v4333, %v4664
        %v4666 = vpop.f32.mrb[0].mxu0
        %4667 = vmatprep.mubr.bf16.mxu0 0
        %4668 = vmatmul.mubr.bf16.gmra.mrb[0].mxu0 %v4421
        %v4669 = vpop.f32.mrb[0].mxu0
        %v4670 = vpop.f32.mrb[0].mxu0
        %v4671 = vpop.f32.mrb[0].mxu0
        %v4672 = vpop.f32.mrb[0].mxu0
        %4673 = vmatprep.mubr.bf16.mxu0 0
        %4674 = vmatmul.mubr.bf16.gmra.mrb[0].mxu0 %v4423
        %v4675 = vpop.f32.mrb[0].mxu0
        %v4676 = vadd.f32 %v4333, %v4675
        %v4677 = vpop.f32.mrb[0].mxu0
        %v4678 = vpop.f32.mrb[0].mxu0
        %v4679 = vadd.f32 %v4333, %v4678
        %v4680 = vpop.f32.mrb[0].mxu0
        %4681 = vmatprep.mubr.bf16.mxu0 0
        %4682 = vmatmul.mubr.bf16.gmra.mrb[0].mxu0 %v4425
        %v4683 = vpop.f32.mrb[0].mxu0
        %v4684 = vpop.f32.mrb[0].mxu0
        %v4685 = vpop.f32.mrb[0].mxu0
        %v4686 = vpop.f32.mrb[0].mxu0
        %4687 = vdwg.mxu0
        %v4688 = vmax.f32 %v4466, 0.0
        %v4689 = vmax.f32 %v4469, 0.0
        %v4690 = vmax.f32 %v4480, 0.0
        %v4691 = vmax.f32 %v4483, 0.0
        %v4692 = vmax.f32 %v4494, 0.0
        %v4693 = vmax.f32 %v4497, 0.0
        %v4694 = vmax.f32 %v4508, 0.0
        %v4695 = vmax.f32 %v4511, 0.0
        %v4696 = vmax.f32 %v4522, 0.0
        %v4697 = vmax.f32 %v4525, 0.0
        %v4698 = vmax.f32 %v4536, 0.0
        %v4699 = vmax.f32 %v4539, 0.0
        %v4700 = vmax.f32 %v4550, 0.0
        %v4701 = vmax.f32 %v4553, 0.0
        %v4702 = vmax.f32 %v4564, 0.0
        %v4703 = vmax.f32 %v4567, 0.0
        %v4704 = vmax.f32 %v4578, 0.0
        %v4705 = vmax.f32 %v4581, 0.0
        %v4706 = vmax.f32 %v4592, 0.0
        %v4707 = vmax.f32 %v4595, 0.0
        %v4708 = vmax.f32 %v4606, 0.0
        %v4709 = vmax.f32 %v4609, 0.0
        %v4710 = vmax.f32 %v4620, 0.0
        %v4711 = vmax.f32 %v4623, 0.0
        %v4712 = vmax.f32 %v4634, 0.0
        %v4713 = vmax.f32 %v4637, 0.0
        %v4714 = vmax.f32 %v4648, 0.0
        %v4715 = vmax.f32 %v4651, 0.0
        %v4716 = vmax.f32 %v4662, 0.0
        %v4717 = vmax.f32 %v4665, 0.0
        %v4718 = vmax.f32 %v4676, 0.0
        %v4719 = vmax.f32 %v4679, 0.0
        %4720 = vst.msk [vmem:[%s296] sm:$0xff] %vm1719, %v4688
        %4721 = vst.msk [vmem:[%s296 + $0x8] sm:$0xff] %vm1719, %v4689
        %4722 = vst.msk [vmem:[%s296 + $0x10] sm:$0xff] %vm1719, %v4690
        %4723 = vst.msk [vmem:[%s296 + $0x18] sm:$0xff] %vm1719, %v4691
        %4724 = vst.msk [vmem:[%s296 + $0x20] sm:$0xff] %vm1719, %v4692
        %4725 = vst.msk [vmem:[%s296 + $0x28] sm:$0xff] %vm1719, %v4693
        %4726 = vst.msk [vmem:[%s296 + $0x30] sm:$0xff] %vm1719, %v4694
        %4727 = vst.msk [vmem:[%s296 + $0x38] sm:$0xff] %vm1719, %v4695
        %4728 = vst.msk [vmem:[%s296 + $0x40] sm:$0xff] %vm1719, %v4696
        %4729 = vst.msk [vmem:[%s296 + $0x48] sm:$0xff] %vm1719, %v4697
        %4730 = vst.msk [vmem:[%s296 + $0x50] sm:$0xff] %vm1719, %v4698
        %4731 = vst.msk [vmem:[%s296 + $0x58] sm:$0xff] %vm1719, %v4699
        %4732 = vst.msk [vmem:[%s296 + $0x60] sm:$0xff] %vm1719, %v4700
        %4733 = vst.msk [vmem:[%s296 + $0x68] sm:$0xff] %vm1719, %v4701
        %4734 = vst.msk [vmem:[%s296 + $0x70] sm:$0xff] %vm1719, %v4702
        %4735 = vst.msk [vmem:[%s296 + $0x78] sm:$0xff] %vm1719, %v4703
        %4736 = vst.msk [vmem:[%s296 + $0x80] sm:$0xff] %vm1719, %v4704
        %4737 = vst.msk [vmem:[%s296 + $0x88] sm:$0xff] %vm1719, %v4705
        %4738 = vst.msk [vmem:[%s296 + $0x90] sm:$0xff] %vm1719, %v4706
        %4739 = vst.msk [vmem:[%s296 + $0x98] sm:$0xff] %vm1719, %v4707
        %4740 = vst.msk [vmem:[%s296 + $0xa0] sm:$0xff] %vm1719, %v4708
        %4741 = vst.msk [vmem:[%s296 + $0xa8] sm:$0xff] %vm1719, %v4709
        %4742 = vst.msk [vmem:[%s296 + $0xb0] sm:$0xff] %vm1719, %v4710
        %4743 = vst.msk [vmem:[%s296 + $0xb8] sm:$0xff] %vm1719, %v4711
        %4744 = vst.msk [vmem:[%s296 + $0xc0] sm:$0xff] %vm1719, %v4712
        %4745 = vst.msk [vmem:[%s296 + $0xc8] sm:$0xff] %vm1719, %v4713
        %4746 = vst.msk [vmem:[%s296 + $0xd0] sm:$0xff] %vm1719, %v4714
        %4747 = vst.msk [vmem:[%s296 + $0xd8] sm:$0xff] %vm1719, %v4715
        %4748 = vst.msk [vmem:[%s296 + $0xe0] sm:$0xff] %vm1719, %v4716
        %4749 = vst.msk [vmem:[%s296 + $0xe8] sm:$0xff] %vm1719, %v4717
        %4750 = vst.msk [vmem:[%s296 + $0xf0] sm:$0xff] %vm1719, %v4718
        %4751 = vst.msk [vmem:[%s296 + $0xf8] sm:$0xff] %vm1719, %v4719
        %s4752 = sand.u32 %s142, 1
        %s4753 = scalar_lea.sflag [#allocation6], %s4752
        %s4754 = sand.u32 %s142, 1
        %s4755 = smul.addr %s4754, 256
        %s4756 = scalar_lea.vmem [#allocation13], %s4755
        // Predicated region
        $region61: #{tpu_custom_call.1} parent=39 // pred_check
          %p4757 = pneg %p152
        $region62: #{tpu_custom_call.1} parent=39 // pred_check_branch
          %4759 = sbr.rel (%p4757) target = $region64
        $region63: #{tpu_custom_call.1} parent=39 // pred_region
          %s4761 = ssub.s32 4096, 4096
          %4762 = vsyncadd %s4753, %s4761
          %s4763 = smul.addr %s24, 32
          %s4764 = smul.addr %s4763, 128
          %s4765 = scalar_lea.hbm %s5, %s4764
          %s4766 = sshll.u32 %s4756, 4
          %s4767 = int_to_ptr.vmem [resolvable:$true] %s4766
          %4772 = dma.vmem_to_hbm [thread:$0]  %s4767, 4096, %s4765, %s4753, 128, 128, 8
        $region64: #{tpu_custom_call.1} parent=39 // pred_fallthru
          _
      $region40: #{tpu_custom_call.1} parent=5 // pred_fallthru
        _
      %p4773 = scmp.le.s32.totalorder 2, %s19
      // Predicated region
      $region65: #{tpu_custom_call.1} parent=5 // pred_check
        %p4774 = pneg %p4773
      $region66: #{tpu_custom_call.1} parent=5 // pred_check_branch
        %4776 = sbr.rel (%p4774) target = $region68
      $region67: #{tpu_custom_call.1} parent=5 // pred_region
        %s4777 = ssub.s32 %s19, 2
        // Predicated region
        $region69: #{tpu_custom_call.1} parent=67 // pred_check
          %p4778 = pneg %p158
        $region70: #{tpu_custom_call.1} parent=67 // pred_check_branch
          %4780 = sbr.rel (%p4778) target = $region72
        $region71: #{tpu_custom_call.1} parent=67 // pred_region
          %s4781 = sand.u32 %s143, 1
          %s4782 = scalar_lea.sflag [#allocation6], %s4781
          %s4783 = sand.u32 %s143, 1
          %s4784 = smul.addr %s4783, 256
          %s4785 = scalar_lea.vmem [#allocation13], %s4784
          %4786 = dma.done %s4782, 4096
        $region72: #{tpu_custom_call.1} parent=67 // pred_fallthru
          _
      $region68: #{tpu_custom_call.1} parent=5 // pred_fallthru
        _
    $region6: #{tpu_custom_call.1} parent=1 // loop_footer
      %s23 = sadd.s32 1, %s19
    $region7: #{tpu_custom_call.1} parent=1 // loop_footer_branch
      %18 = sbr.rel target = $region3
    $region8: #{tpu_custom_call.1} parent=1 // loop_exit
      _
    %4787 = vsyncpa [#allocation5], 1
    %s4788 = scalar_lea.sflag [#allocation5], 1
    %4789 = vsyncpa %s4788, 1
    %4790 = vsyncpa [#allocation8], 1
    %4791 = vsyncpa [#allocation11], 1
    %4792 = vsyncpa [#allocation6], 1
    %s4793 = scalar_lea.sflag [#allocation6], 1
    %4794 = vsyncpa %s4793, 1

</llo_original>
